<compile_context>
chip_gen: v7x
topology: tpu7x:2x2x1
jax: 0.10.0
libtpu: 0.0.40
codegen_flags: <defaults>
</compile_context>

<pallas_src>
import jax
import jax.numpy as jnp
from jax.experimental import pallas as pl
from jax.experimental.pallas import tpu as pltpu

LEAKY_SLOPE = 0.1
BN_EPS = 1e-5


def _vmem_limit_bytes():
    cap = 128 * 1024 * 1024
    try:
        cap = int(pltpu.get_tpu_info().vmem_capacity_bytes)
    except Exception:
        pass
    # Leave headroom for compiler scratch: <=48 MiB on v7x (64 MiB physical),
    # up to 96 MiB on v5e/v6e (128 MiB physical).
    return int(min(cap * 3 // 4, 96 * 1024 * 1024))


_VMEM_LIMIT = _vmem_limit_bytes()


# ----------------------------------------------------------------------------
# Kernel 1: ConvTranspose2d(kernel=2, stride=2).
# Per image: 4 matmuls (one per (ki,kj) tap), each (Cout, Cin) @ (Cin, H*W) -> (Cout, H*W).
# Output is stored un-interleaved as (ki, kj, Cout, H*W); the 2x2 pixel interleave is a
# single small bf16 transpose in the wrapper.
# ----------------------------------------------------------------------------
def _upsample_kernel(x_ref, w_ref, b_ref, o_ref):
    x = x_ref[0]                                   # (Cin, HW) bf16
    for ki in range(2):
        for kj in range(2):
            t = jnp.dot(w_ref[ki * 2 + kj], x, preferred_element_type=jnp.float32)
            o_ref[0, ki, kj] = (t + b_ref[...]).astype(o_ref.dtype)


def conv_transpose_2x2(bot_ncs, w_iohw, b, Hb, Wb):
    """bot_ncs: (N, Cin, Hb*Wb) bf16; w_iohw: (Cin, Cout, 2, 2) (PyTorch layout).

    Returns the upsampled image as (N, Cout, 2*Hb, 2*Wb) bf16.
    """
    N, Cin, HWb = bot_ncs.shape
    Cout = int(w_iohw.shape[1])

    # (Cin, Cout, ki, kj) -> (ki, kj, Cout, Cin) -> (4, Cout, Cin)
    wk = jnp.transpose(w_iohw, (2, 3, 1, 0)).reshape(4, Cout, Cin).astype(jnp.bfloat16)
    bc = b.reshape(Cout, 1).astype(jnp.float32)

    flops = 2 * N * HWb * Cin * 4 * Cout
    bytes_accessed = int(bot_ncs.size * 2 + wk.size * 2 + bc.size * 4
                         + N * 4 * Cout * HWb * 2)

    y = pl.pallas_call(
        _upsample_kernel,
        out_shape=jax.ShapeDtypeStruct((N, 2, 2, Cout, HWb), jnp.bfloat16),
        grid=(N,),
        in_specs=[
            pl.BlockSpec((1, Cin, HWb), lambda n: (n, 0, 0)),
            pl.BlockSpec((4, Cout, Cin), lambda n: (0, 0, 0)),
            pl.BlockSpec((Cout, 1), lambda n: (0, 0)),
        ],
        out_specs=pl.BlockSpec((1, 2, 2, Cout, HWb), lambda n: (n, 0, 0, 0, 0)),
        compiler_params=pltpu.CompilerParams(
            dimension_semantics=("parallel",), vmem_limit_bytes=_VMEM_LIMIT),
        cost_estimate=pl.CostEstimate(flops=flops, transcendentals=0,
                                      bytes_accessed=bytes_accessed),
    )(bot_ncs, wk, bc)

    # 2x2 pixel interleave: (n, ki, kj, co, h, w) -> (n, co, 2h+ki, 2w+kj).
    # TODO(synk): fold this interleave into the kernel output layout (lane-level 2x2
    # swizzle) to drop this small bf16 XLA transpose pass entirely.
    y = y.reshape(N, 2, 2, Cout, Hb, Wb)
    y = jnp.transpose(y, (0, 3, 4, 1, 5, 2)).reshape(N, Cout, 2 * Hb, 2 * Wb)
    return y


# ----------------------------------------------------------------------------
# Kernel 2: fused Conv2d(3x3, pad=1) + BatchNorm2d(eval, folded) + LeakyReLU(0.1)
# over the channel-concat of `n_in` inputs (torch.cat fused as split-K matmuls).
# Per tap (kh, kw): t = sum_i W_i[tap] @ x_i  (Cout, HW), then pltpu.roll along lanes to
# align to the target pixel and a (1, HW) border mask; accumulate in f32.
# ----------------------------------------------------------------------------
def _make_conv3x3_bn_lrelu_kernel(n_in, H, W):
    HW = H * W

    def kernel(*refs):
        x_refs = refs[:n_in]
        w_refs = refs[n_in:2 * n_in]
        hh_ref, ww_ref, scale_ref, shift_ref, o_ref = refs[2 * n_in:]

        xs = [x_refs[i][0] for i in range(n_in)]          # (ci, HW) bf16, no copies
        Cout = o_ref.shape[1]

        # Tiny (1, HW) index planes -> border masks, broadcast at compute time.
        hh = hh_ref[...]
        ww = ww_ref[...]
        top = hh == 0
        bottom = hh == H - 1
        left = ww == 0
        right = ww == W - 1

        acc = jnp.zeros((Cout, HW), jnp.float32)
        for kh in range(3):
            for kw in range(3):
                tap = kh * 3 + kw
                t = jnp.dot(w_refs[0][tap], xs[0], preferred_element_type=jnp.float32)
                for i in range(1, n_in):
                    t = t + jnp.dot(w_refs[i][tap], xs[i],
                                    preferred_element_type=jnp.float32)
                # Align tap to its target pixel with a lane roll (XLU) instead of a halo
                # buffer / kh-replicated copy; mask the border wrap-around.
                s = (-((kh - 1) * W + (kw - 1))) % HW
                if s:
                    t = pltpu.roll(t, shift=s, axis=1)
                invalid = None
                if kh == 0:
                    invalid = top
                elif kh == 2:
                    invalid = bottom
                if kw == 0:
                    invalid = left if invalid is None else jnp.logical_or(invalid, left)
                elif kw == 2:
                    invalid = right if invalid is None else jnp.logical_or(invalid, right)
                if invalid is not None:
                    t = jnp.where(invalid, 0.0, t)
                acc = acc + t

        # f32 epilogue: folded conv-bias + BatchNorm(eval), then LeakyReLU(0.1) as one max.
        y = acc * scale_ref[...] + shift_ref[...]
        y = jnp.maximum(y, LEAKY_SLOPE * y)
        o_ref[0] = y.astype(o_ref.dtype)               # lane-dense (Cout, HW) store

    return kernel


def conv3x3_bn_lrelu(xs, H, W, w_oihw, b, gamma, beta, run_mean, run_var):
    """Conv2d(3x3, pad=1) over concat(xs, channel) -> BatchNorm2d(eval) -> LeakyReLU(0.1).

    xs: list of (N, ci, H*W) bf16 arrays. Returns (N, Cout, H*W) bf16.
    """
    N = xs[0].shape[0]
    HW = H * W
    cins = [int(x.shape[1]) for x in xs]
    Ct = sum(cins)
    Cout = int(w_oihw.shape[0])
    assert int(w_oihw.shape[1]) == Ct

    # Per-input tap weights: (Cout, Ct, 3, 3) -> slice I -> (kh, kw, co, ci) -> (9, Cout, ci).
    # TODO(synk): at real channel counts pad K/N to MXU tile multiples (128 / 256).
    ws = []
    off = 0
    for ci in cins:
        wi = w_oihw[:, off:off + ci]
        wi = jnp.transpose(wi, (2, 3, 0, 1)).reshape(9, Cout, ci).astype(jnp.bfloat16)
        ws.append(wi)
        off += ci

    scale = (gamma / jnp.sqrt(run_var + BN_EPS)).astype(jnp.float32)
    shift = (beta + (b - run_mean) * scale).astype(jnp.float32)

    # Small (1, HW) row / column index planes for the border masks (no in-kernel iota/div).
    pidx = jnp.arange(HW, dtype=jnp.int32)
    hh = (pidx // W).reshape(1, HW)
    ww = (pidx % W).reshape(1, HW)

    in_specs = [pl.BlockSpec((1, int(ci), HW), lambda n: (n, 0, 0)) for ci in cins]
    in_specs += [pl.BlockSpec((9, Cout, int(ci)), lambda n: (0, 0, 0)) for ci in cins]
    in_specs += [
        pl.BlockSpec((1, HW), lambda n: (0, 0)),
        pl.BlockSpec((1, HW), lambda n: (0, 0)),
        pl.BlockSpec((Cout, 1), lambda n: (0, 0)),
        pl.BlockSpec((Cout, 1), lambda n: (0, 0)),
    ]

    flops = 2 * N * HW * 9 * Ct * Cout
    bytes_accessed = int(sum(x.size * 2 for x in xs) + sum(w.size * 2 for w in ws)
                         + 8 * HW + 8 * Cout + N * Cout * HW * 2)

    # TODO(synk): add spatial tiling (halo'd blocks over H) for large images so the per-step
    # footprint stays under v7x's 64 MiB VMEM and both TensorCores get work; whole-image
    # blocks are fine at these sizes.
    return pl.pallas_call(
        _make_conv3x3_bn_lrelu_kernel(len(xs), H, W),
        out_shape=jax.ShapeDtypeStruct((N, Cout, HW), jnp.bfloat16),
        grid=(N,),
        in_specs=in_specs,
        out_specs=pl.BlockSpec((1, Cout, HW), lambda n: (n, 0, 0)),
        compiler_params=pltpu.CompilerParams(
            dimension_semantics=("parallel",), vmem_limit_bytes=_VMEM_LIMIT),
        cost_estimate=pl.CostEstimate(flops=flops, transcendentals=0,
                                      bytes_accessed=bytes_accessed),
    )(*xs, *ws, hh, ww, scale.reshape(Cout, 1), shift.reshape(Cout, 1))


# ----------------------------------------------------------------------------
# _Up forward: upsample(bot) -> pad to lhs spatial size -> (fused concat) ->
# two fused conv layers (skip=False, dropout=False -> passthrough).
# ----------------------------------------------------------------------------
@jax.jit
def up_forward(lhs_nchw, bot_nchw, params):
    N, Cl, H, W = lhs_nchw.shape
    _, Cb, Hb, Wb = bot_nchw.shape

    # Channels-first flattened-spatial layout: free reshape from NCHW (no transposes);
    # bf16 activations in HBM between kernels.
    lhs = lhs_nchw.astype(jnp.bfloat16).reshape(N, Cl, H * W)
    bot = bot_nchw.astype(jnp.bfloat16).reshape(N, Cb, Hb * Wb)

    upbot = conv_transpose_2x2(bot, params["up_w"], params["up_b"], Hb, Wb)

    dh = H - upbot.shape[2]
    dw = W - upbot.shape[3]
    assert dh >= 0 and dw >= 0, "lhs must be >= upsampled bottom path spatially"
    if dh or dw:
        upbot = jnp.pad(upbot, ((0, 0), (0, 0),
                                (dh // 2, dh - dh // 2), (dw // 2, dw - dw // 2)))
    upbot = upbot.reshape(N, upbot.shape[1], H * W)

    # torch.cat((lhs, upbot), dim=1) is fused into the first conv as split-K matmuls.
    x_parts = [lhs, upbot]
    x = None
    for layer in params["layers"]:
        x = conv3x3_bn_lrelu(x_parts, H, W, layer["w"], layer["b"], layer["gamma"],
                             layer["beta"], layer["mean"], layer["var"])
        x_parts = [x]
    # TODO(synk): Dropout2d / _MultiConvSkip branches omitted (module defaults
    # skip=False, dropout=False -> passthrough).
    return x.reshape(N, x.shape[1], H, W).astype(jnp.float32)


# ----------------------------------------------------------------------------
# Pure-JAX (NCHW, f32) reference for validation.
# ----------------------------------------------------------------------------
def up_forward_ref(lhs, bot, params):
    N, Cin, H, W = bot.shape
    Cout = params["up_w"].shape[1]
    up = jnp.einsum("ncij,cokl->noikjl", bot, params["up_w"])
    up = up + params["up_b"][None, :, None, None, None, None]
    up = up.reshape(N, Cout, 2 * H, 2 * W)

    dh = lhs.shape[2] - up.shape[2]
    dw = lhs.shape[3] - up.shape[3]
    up = jnp.pad(up, ((0, 0), (0, 0),
                      (dh // 2, dh - dh // 2), (dw // 2, dw - dw // 2)))

    x = jnp.concatenate([lhs, up], axis=1)
    for layer in params["layers"]:
        x = jax.lax.conv_general_dilated(
            x, layer["w"], window_strides=(1, 1), padding=((1, 1), (1, 1)),
            dimension_numbers=("NCHW", "OIHW", "NCHW"))
        x = x + layer["b"][None, :, None, None]
        x = (x - layer["mean"][None, :, None, None]) / jnp.sqrt(
            layer["var"][None, :, None, None] + BN_EPS)
        x = x * layer["gamma"][None, :, None, None] + layer["beta"][None, :, None, None]
        x = jnp.where(x >= 0.0, x, LEAKY_SLOPE * x)
    return x


def init_params(key, in_chan, out_chan, n=2):
    ks = jax.random.split(key, 2 + 4 * n)
    params = {
        "up_w": 0.1 * jax.random.normal(ks[0], (in_chan, in_chan // 2, 2, 2), jnp.float32),
        "up_b": 0.1 * jax.random.normal(ks[1], (in_chan // 2,), jnp.float32),
        "layers": [],
    }
    cin = in_chan
    for i in range(n):
        k0, k1, k2, k3 = ks[2 + 4 * i: 6 + 4 * i]
        params["layers"].append({
            "w": 0.1 * jax.random.normal(k0, (out_chan, cin, 3, 3), jnp.float32),
            "b": 0.1 * jax.random.normal(k1, (out_chan,), jnp.float32),
            "gamma": 1.0 + 0.1 * jax.random.normal(k2, (out_chan,), jnp.float32),
            "beta": 0.1 * jax.random.normal(k3, (out_chan,), jnp.float32),
            # BatchNorm eval-mode running statistics (defaults).
            "mean": jnp.zeros((out_chan,), jnp.float32),
            "var": jnp.ones((out_chan,), jnp.float32),
        })
        cin = out_chan
    return params


if __name__ == "__main__":
    key = jax.random.PRNGKey(0)
    k_lhs, k_bot, k_p = jax.random.split(key, 3)

    in_chan, out_chan = 8, 8
    batch = 2
    # lhs: encoder skip path (in_chan//2 channels, full res);
    # bot: bottleneck path (in_chan channels, half res).
    lhs = jax.random.normal(k_lhs, (batch, in_chan // 2, 16, 16), jnp.float32)
    bot = jax.random.normal(k_bot, (batch, in_chan, 8, 8), jnp.float32)

    params = init_params(k_p, in_chan, out_chan, n=2)

    out = jax.block_until_ready(up_forward(lhs, bot, params))
    ref = jax.block_until_ready(up_forward_ref(lhs, bot, params))

    assert out.shape == (batch, out_chan, 16, 16), out.shape
    max_err = float(jnp.max(jnp.abs(out - ref)))
    assert jnp.allclose(out, ref, atol=5e-2, rtol=5e-2), max_err

    print("KERNEL_OK")
</pallas_src>

<mosaic_0001>
module attributes {stable_mosaic.version = 11 : i64} {
  func.func @_upsample_kernel(%arg0: i32, %arg1: memref<1x8x64xbf16, #tpu.memory_space<vmem>>, %arg2: memref<4x4x8xbf16, #tpu.memory_space<vmem>>, %arg3: memref<4x1xf32, #tpu.memory_space<vmem>>, %arg4: memref<1x2x2x4x64xbf16, #tpu.memory_space<vmem>>) attributes {dimension_semantics = [#tpu.dimension_semantics<parallel>], iteration_bounds = array<i64: 2>, scalar_prefetch = 0 : i64, scratch_operands = 0 : i64, tpu.core_type = #tpu.core_type<tc>, window_params = [{transform_indices = @transform_0, window_bounds = array<i64: 1, 8, 64>}, {pipeline_mode = #tpu.pipeline_mode<synchronous>, transform_indices = @transform_1, window_bounds = array<i64: 4, 4, 8>}, {pipeline_mode = #tpu.pipeline_mode<synchronous>, transform_indices = @transform_2, window_bounds = array<i64: 4, 1>}, {transform_indices = @transform_3, window_bounds = array<i64: 1, 2, 2, 4, 64>}]} {
    %c0 = arith.constant 0 : index
    %c0_0 = arith.constant 0 : index
    %c0_1 = arith.constant 0 : index
    %0 = vector.load %arg1[%c0, %c0_0, %c0_1] : memref<1x8x64xbf16, #tpu.memory_space<vmem>>, vector<1x8x64xbf16>
    %1 = vector.shape_cast %0 : vector<1x8x64xbf16> to vector<8x64xbf16>
    %c0_2 = arith.constant 0 : index
    %c0_3 = arith.constant 0 : index
    %c0_4 = arith.constant 0 : index
    %2 = vector.load %arg2[%c0_2, %c0_3, %c0_4] : memref<4x4x8xbf16, #tpu.memory_space<vmem>>, vector<1x4x8xbf16>
    %3 = vector.shape_cast %2 : vector<1x4x8xbf16> to vector<4x8xbf16>
    %cst = arith.constant dense<0.000000e+00> : vector<4x64xf32>
    %4 = tpu.matmul %3, %1, %cst {dimension_numbers = #tpu.dot_dimension_numbers<[1], [0], [0], [1], [0, 0, 1, 1], [], []>} : vector<4x8xbf16>, vector<8x64xbf16>, vector<4x64xf32> -> vector<4x64xf32>
    %c0_5 = arith.constant 0 : index
    %c0_6 = arith.constant 0 : index
    %5 = vector.load %arg3[%c0_5, %c0_6] : memref<4x1xf32, #tpu.memory_space<vmem>>, vector<4x1xf32>
    %6 = vector.broadcast %5 : vector<4x1xf32> to vector<4x64xf32>
    %7 = arith.addf %4, %6 : vector<4x64xf32>
    %8 = arith.truncf %7 : vector<4x64xf32> to vector<4x64xbf16>
    %c0_7 = arith.constant 0 : index
    %c0_8 = arith.constant 0 : index
    %c0_9 = arith.constant 0 : index
    %c0_10 = arith.constant 0 : index
    %c0_11 = arith.constant 0 : index
    %9 = vector.load %arg4[%c0_7, %c0_8, %c0_9, %c0_10, %c0_11] : memref<1x2x2x4x64xbf16, #tpu.memory_space<vmem>>, vector<1x1x1x4x64xbf16>
    %10 = vector.shape_cast %9 : vector<1x1x1x4x64xbf16> to vector<4x64xbf16>
    %11 = vector.shape_cast %8 : vector<4x64xbf16> to vector<1x1x1x4x64xbf16>
    tpu.vector_store %arg4[%c0_7, %c0_8, %c0_9, %c0_10, %c0_11], %11 {strides = array<i32>} : memref<1x2x2x4x64xbf16, #tpu.memory_space<vmem>>, vector<1x1x1x4x64xbf16>,
    %c1 = arith.constant 1 : index
    %c0_12 = arith.constant 0 : index
    %c0_13 = arith.constant 0 : index
    %12 = vector.load %arg2[%c1, %c0_12, %c0_13] : memref<4x4x8xbf16, #tpu.memory_space<vmem>>, vector<1x4x8xbf16>
    %13 = vector.shape_cast %12 : vector<1x4x8xbf16> to vector<4x8xbf16>
    %cst_14 = arith.constant dense<0.000000e+00> : vector<4x64xf32>
    %14 = tpu.matmul %13, %1, %cst_14 {dimension_numbers = #tpu.dot_dimension_numbers<[1], [0], [0], [1], [0, 0, 1, 1], [], []>} : vector<4x8xbf16>, vector<8x64xbf16>, vector<4x64xf32> -> vector<4x64xf32>
    %c0_15 = arith.constant 0 : index
    %c0_16 = arith.constant 0 : index
    %15 = vector.load %arg3[%c0_15, %c0_16] : memref<4x1xf32, #tpu.memory_space<vmem>>, vector<4x1xf32>
    %16 = vector.broadcast %15 : vector<4x1xf32> to vector<4x64xf32>
    %17 = arith.addf %14, %16 : vector<4x64xf32>
    %18 = arith.truncf %17 : vector<4x64xf32> to vector<4x64xbf16>
    %c0_17 = arith.constant 0 : index
    %c0_18 = arith.constant 0 : index
    %c1_19 = arith.constant 1 : index
    %c0_20 = arith.constant 0 : index
    %c0_21 = arith.constant 0 : index
    %19 = vector.load %arg4[%c0_17, %c0_18, %c1_19, %c0_20, %c0_21] : memref<1x2x2x4x64xbf16, #tpu.memory_space<vmem>>, vector<1x1x1x4x64xbf16>
    %20 = vector.shape_cast %19 : vector<1x1x1x4x64xbf16> to vector<4x64xbf16>
    %21 = vector.shape_cast %18 : vector<4x64xbf16> to vector<1x1x1x4x64xbf16>
    tpu.vector_store %arg4[%c0_17, %c0_18, %c1_19, %c0_20, %c0_21], %21 {strides = array<i32>} : memref<1x2x2x4x64xbf16, #tpu.memory_space<vmem>>, vector<1x1x1x4x64xbf16>,
    %c2 = arith.constant 2 : index
    %c0_22 = arith.constant 0 : index
    %c0_23 = arith.constant 0 : index
    %22 = vector.load %arg2[%c2, %c0_22, %c0_23] : memref<4x4x8xbf16, #tpu.memory_space<vmem>>, vector<1x4x8xbf16>
    %23 = vector.shape_cast %22 : vector<1x4x8xbf16> to vector<4x8xbf16>
    %cst_24 = arith.constant dense<0.000000e+00> : vector<4x64xf32>
    %24 = tpu.matmul %23, %1, %cst_24 {dimension_numbers = #tpu.dot_dimension_numbers<[1], [0], [0], [1], [0, 0, 1, 1], [], []>} : vector<4x8xbf16>, vector<8x64xbf16>, vector<4x64xf32> -> vector<4x64xf32>
    %c0_25 = arith.constant 0 : index
    %c0_26 = arith.constant 0 : index
    %25 = vector.load %arg3[%c0_25, %c0_26] : memref<4x1xf32, #tpu.memory_space<vmem>>, vector<4x1xf32>
    %26 = vector.broadcast %25 : vector<4x1xf32> to vector<4x64xf32>
    %27 = arith.addf %24, %26 : vector<4x64xf32>
    %28 = arith.truncf %27 : vector<4x64xf32> to vector<4x64xbf16>
    %c0_27 = arith.constant 0 : index
    %c1_28 = arith.constant 1 : index
    %c0_29 = arith.constant 0 : index
    %c0_30 = arith.constant 0 : index
    %c0_31 = arith.constant 0 : index
    %29 = vector.load %arg4[%c0_27, %c1_28, %c0_29, %c0_30, %c0_31] : memref<1x2x2x4x64xbf16, #tpu.memory_space<vmem>>, vector<1x1x1x4x64xbf16>
    %30 = vector.shape_cast %29 : vector<1x1x1x4x64xbf16> to vector<4x64xbf16>
    %31 = vector.shape_cast %28 : vector<4x64xbf16> to vector<1x1x1x4x64xbf16>
    tpu.vector_store %arg4[%c0_27, %c1_28, %c0_29, %c0_30, %c0_31], %31 {strides = array<i32>} : memref<1x2x2x4x64xbf16, #tpu.memory_space<vmem>>, vector<1x1x1x4x64xbf16>,
    %c3 = arith.constant 3 : index
    %c0_32 = arith.constant 0 : index
    %c0_33 = arith.constant 0 : index
    %32 = vector.load %arg2[%c3, %c0_32, %c0_33] : memref<4x4x8xbf16, #tpu.memory_space<vmem>>, vector<1x4x8xbf16>
    %33 = vector.shape_cast %32 : vector<1x4x8xbf16> to vector<4x8xbf16>
    %cst_34 = arith.constant dense<0.000000e+00> : vector<4x64xf32>
    %34 = tpu.matmul %33, %1, %cst_34 {dimension_numbers = #tpu.dot_dimension_numbers<[1], [0], [0], [1], [0, 0, 1, 1], [], []>} : vector<4x8xbf16>, vector<8x64xbf16>, vector<4x64xf32> -> vector<4x64xf32>
    %c0_35 = arith.constant 0 : index
    %c0_36 = arith.constant 0 : index
    %35 = vector.load %arg3[%c0_35, %c0_36] : memref<4x1xf32, #tpu.memory_space<vmem>>, vector<4x1xf32>
    %36 = vector.broadcast %35 : vector<4x1xf32> to vector<4x64xf32>
    %37 = arith.addf %34, %36 : vector<4x64xf32>
    %38 = arith.truncf %37 : vector<4x64xf32> to vector<4x64xbf16>
    %c0_37 = arith.constant 0 : index
    %c1_38 = arith.constant 1 : index
    %c1_39 = arith.constant 1 : index
    %c0_40 = arith.constant 0 : index
    %c0_41 = arith.constant 0 : index
    %39 = vector.load %arg4[%c0_37, %c1_38, %c1_39, %c0_40, %c0_41] : memref<1x2x2x4x64xbf16, #tpu.memory_space<vmem>>, vector<1x1x1x4x64xbf16>
    %40 = vector.shape_cast %39 : vector<1x1x1x4x64xbf16> to vector<4x64xbf16>
    %41 = vector.shape_cast %38 : vector<4x64xbf16> to vector<1x1x1x4x64xbf16>
    tpu.vector_store %arg4[%c0_37, %c1_38, %c1_39, %c0_40, %c0_41], %41 {strides = array<i32>} : memref<1x2x2x4x64xbf16, #tpu.memory_space<vmem>>, vector<1x1x1x4x64xbf16>,
    return
  }
  func.func @transform_0(%arg0: i32) -> (i32, i32, i32) {
    %c0_i32 = arith.constant 0 : i32
    %c0_i32_0 = arith.constant 0 : i32
    %c0_i32_1 = arith.constant 0 : i32
    return %arg0, %c0_i32, %c0_i32_0 : i32, i32, i32
  }
  func.func @transform_1(%arg0: i32) -> (i32, i32, i32) {
    %c0_i32 = arith.constant 0 : i32
    %c0_i32_0 = arith.constant 0 : i32
    %c0_i32_1 = arith.constant 0 : i32
    %c0_i32_2 = arith.constant 0 : i32
    return %c0_i32, %c0_i32_0, %c0_i32_1 : i32, i32, i32
  }
  func.func @transform_2(%arg0: i32) -> (i32, i32) {
    %c0_i32 = arith.constant 0 : i32
    %c0_i32_0 = arith.constant 0 : i32
    %c0_i32_1 = arith.constant 0 : i32
    return %c0_i32, %c0_i32_0 : i32, i32
  }
  func.func @transform_3(%arg0: i32) -> (i32, i32, i32, i32, i32) {
    %c0_i32 = arith.constant 0 : i32
    %c0_i32_0 = arith.constant 0 : i32
    %c0_i32_1 = arith.constant 0 : i32
    %c0_i32_2 = arith.constant 0 : i32
    %c0_i32_3 = arith.constant 0 : i32
    return %arg0, %c0_i32, %c0_i32_0, %c0_i32_1, %c0_i32_2 : i32, i32, i32, i32, i32
  }
}

module attributes {stable_mosaic.version = 11 : i64} {
  func.func @kernel(%arg0: i32, %arg1: memref<1x4x256xbf16, #tpu.memory_space<vmem>>, %arg2: memref<1x4x256xbf16, #tpu.memory_space<vmem>>, %arg3: memref<9x8x4xbf16, #tpu.memory_space<vmem>>, %arg4: memref<9x8x4xbf16, #tpu.memory_space<vmem>>, %arg5: memref<1x256xi32, #tpu.memory_space<vmem>>, %arg6: memref<1x256xi32, #tpu.memory_space<vmem>>, %arg7: memref<8x1xf32, #tpu.memory_space<vmem>>, %arg8: memref<8x1xf32, #tpu.memory_space<vmem>>, %arg9: memref<1x8x256xbf16, #tpu.memory_space<vmem>>) attributes {dimension_semantics = [#tpu.dimension_semantics<parallel>], iteration_bounds = array<i64: 2>, scalar_prefetch = 0 : i64, scratch_operands = 0 : i64, tpu.core_type = #tpu.core_type<tc>, window_params = [{transform_indices = @transform_0, window_bounds = array<i64: 1, 4, 256>}, {transform_indices = @transform_1, window_bounds = array<i64: 1, 4, 256>}, {pipeline_mode = #tpu.pipeline_mode<synchronous>, transform_indices = @transform_2, window_bounds = array<i64: 9, 8, 4>}, {pipeline_mode = #tpu.pipeline_mode<synchronous>, transform_indices = @transform_3, window_bounds = array<i64: 9, 8, 4>}, {pipeline_mode = #tpu.pipeline_mode<synchronous>, transform_indices = @transform_4, window_bounds = array<i64: 1, 256>}, {pipeline_mode = #tpu.pipeline_mode<synchronous>, transform_indices = @transform_5, window_bounds = array<i64: 1, 256>}, {pipeline_mode = #tpu.pipeline_mode<synchronous>, transform_indices = @transform_6, window_bounds = array<i64: 8, 1>}, {pipeline_mode = #tpu.pipeline_mode<synchronous>, transform_indices = @transform_7, window_bounds = array<i64: 8, 1>}, {transform_indices = @transform_8, window_bounds = array<i64: 1, 8, 256>}]} {
    %c0 = arith.constant 0 : index
    %c0_0 = arith.constant 0 : index
    %c0_1 = arith.constant 0 : index
    %0 = vector.load %arg1[%c0, %c0_0, %c0_1] : memref<1x4x256xbf16, #tpu.memory_space<vmem>>, vector<1x4x256xbf16>
    %1 = vector.shape_cast %0 : vector<1x4x256xbf16> to vector<4x256xbf16>
    %c0_2 = arith.constant 0 : index
    %c0_3 = arith.constant 0 : index
    %c0_4 = arith.constant 0 : index
    %2 = vector.load %arg2[%c0_2, %c0_3, %c0_4] : memref<1x4x256xbf16, #tpu.memory_space<vmem>>, vector<1x4x256xbf16>
    %3 = vector.shape_cast %2 : vector<1x4x256xbf16> to vector<4x256xbf16>
    %c0_5 = arith.constant 0 : index
    %c0_6 = arith.constant 0 : index
    %4 = vector.load %arg5[%c0_5, %c0_6] : memref<1x256xi32, #tpu.memory_space<vmem>>, vector<1x256xi32>
    %c0_7 = arith.constant 0 : index
    %c0_8 = arith.constant 0 : index
    %5 = vector.load %arg6[%c0_7, %c0_8] : memref<1x256xi32, #tpu.memory_space<vmem>>, vector<1x256xi32>
    %c0_i32 = arith.constant 0 : i32
    %6 = vector.broadcast %c0_i32 : i32 to vector<1x256xi32>
    %7 = arith.cmpi eq, %4, %6 : vector<1x256xi32>
    %c15_i32 = arith.constant 15 : i32
    %8 = vector.broadcast %c15_i32 : i32 to vector<1x256xi32>
    %9 = arith.cmpi eq, %4, %8 : vector<1x256xi32>
    %c0_i32_9 = arith.constant 0 : i32
    %10 = vector.broadcast %c0_i32_9 : i32 to vector<1x256xi32>
    %11 = arith.cmpi eq, %5, %10 : vector<1x256xi32>
    %c15_i32_10 = arith.constant 15 : i32
    %12 = vector.broadcast %c15_i32_10 : i32 to vector<1x256xi32>
    %13 = arith.cmpi eq, %5, %12 : vector<1x256xi32>
    %cst = arith.constant 0.000000e+00 : f32
    %14 = vector.broadcast %cst : f32 to vector<8x256xf32>
    %c0_11 = arith.constant 0 : index
    %c0_12 = arith.constant 0 : index
    %c0_13 = arith.constant 0 : index
    %15 = vector.load %arg3[%c0_11, %c0_12, %c0_13] : memref<9x8x4xbf16, #tpu.memory_space<vmem>>, vector<1x8x4xbf16>
    %16 = vector.shape_cast %15 : vector<1x8x4xbf16> to vector<8x4xbf16>
    %cst_14 = arith.constant dense<0.000000e+00> : vector<8x256xf32>
    %17 = tpu.matmul %16, %1, %cst_14 {dimension_numbers = #tpu.dot_dimension_numbers<[1], [0], [0], [1], [0, 0, 1, 1], [], []>} : vector<8x4xbf16>, vector<4x256xbf16>, vector<8x256xf32> -> vector<8x256xf32>
    %c0_15 = arith.constant 0 : index
    %c0_16 = arith.constant 0 : index
    %c0_17 = arith.constant 0 : index
    %18 = vector.load %arg4[%c0_15, %c0_16, %c0_17] : memref<9x8x4xbf16, #tpu.memory_space<vmem>>, vector<1x8x4xbf16>
    %19 = vector.shape_cast %18 : vector<1x8x4xbf16> to vector<8x4xbf16>
    %cst_18 = arith.constant dense<0.000000e+00> : vector<8x256xf32>
    %20 = tpu.matmul %19, %3, %cst_18 {dimension_numbers = #tpu.dot_dimension_numbers<[1], [0], [0], [1], [0, 0, 1, 1], [], []>} : vector<8x4xbf16>, vector<4x256xbf16>, vector<8x256xf32> -> vector<8x256xf32>
    %21 = arith.addf %17, %20 : vector<8x256xf32>
    %c17_i32 = arith.constant 17 : i32
    %22 = tpu.dynamic_rotate %21 by %c17_i32 dim 1 : vector<8x256xf32>, i32 -> vector<8x256xf32>
    %23 = arith.ori %7, %11 : vector<1x256xi1>
    %cst_19 = arith.constant 0.000000e+00 : f32
    %24 = vector.shape_cast %23 : vector<1x256xi1> to vector<1x256xi1>
    %25 = vector.broadcast %24 : vector<1x256xi1> to vector<8x256xi1>
    %26 = vector.broadcast %cst_19 : f32 to vector<8x256xf32>
    %27 = arith.select %25, %26, %22 : vector<8x256xi1>, vector<8x256xf32>
    %28 = arith.addf %14, %27 : vector<8x256xf32>
    %c1 = arith.constant 1 : index
    %c0_20 = arith.constant 0 : index
    %c0_21 = arith.constant 0 : index
    %29 = vector.load %arg3[%c1, %c0_20, %c0_21] : memref<9x8x4xbf16, #tpu.memory_space<vmem>>, vector<1x8x4xbf16>
    %30 = vector.shape_cast %29 : vector<1x8x4xbf16> to vector<8x4xbf16>
    %cst_22 = arith.constant dense<0.000000e+00> : vector<8x256xf32>
    %31 = tpu.matmul %30, %1, %cst_22 {dimension_numbers = #tpu.dot_dimension_numbers<[1], [0], [0], [1], [0, 0, 1, 1], [], []>} : vector<8x4xbf16>, vector<4x256xbf16>, vector<8x256xf32> -> vector<8x256xf32>
    %c1_23 = arith.constant 1 : index
    %c0_24 = arith.constant 0 : index
    %c0_25 = arith.constant 0 : index
    %32 = vector.load %arg4[%c1_23, %c0_24, %c0_25] : memref<9x8x4xbf16, #tpu.memory_space<vmem>>, vector<1x8x4xbf16>
    %33 = vector.shape_cast %32 : vector<1x8x4xbf16> to vector<8x4xbf16>
    %cst_26 = arith.constant dense<0.000000e+00> : vector<8x256xf32>
    %34 = tpu.matmul %33, %3, %cst_26 {dimension_numbers = #tpu.dot_dimension_numbers<[1], [0], [0], [1], [0, 0, 1, 1], [], []>} : vector<8x4xbf16>, vector<4x256xbf16>, vector<8x256xf32> -> vector<8x256xf32>
    %35 = arith.addf %31, %34 : vector<8x256xf32>
    %c16_i32 = arith.constant 16 : i32
    %36 = tpu.dynamic_rotate %35 by %c16_i32 dim 1 : vector<8x256xf32>, i32 -> vector<8x256xf32>
    %cst_27 = arith.constant 0.000000e+00 : f32
    %37 = vector.shape_cast %7 : vector<1x256xi1> to vector<1x256xi1>
    %38 = vector.broadcast %37 : vector<1x256xi1> to vector<8x256xi1>
    %39 = vector.broadcast %cst_27 : f32 to vector<8x256xf32>
    %40 = arith.select %38, %39, %36 : vector<8x256xi1>, vector<8x256xf32>
    %41 = arith.addf %28, %40 : vector<8x256xf32>
    %c2 = arith.constant 2 : index
    %c0_28 = arith.constant 0 : index
    %c0_29 = arith.constant 0 : index
    %42 = vector.load %arg3[%c2, %c0_28, %c0_29] : memref<9x8x4xbf16, #tpu.memory_space<vmem>>, vector<1x8x4xbf16>
    %43 = vector.shape_cast %42 : vector<1x8x4xbf16> to vector<8x4xbf16>
    %cst_30 = arith.constant dense<0.000000e+00> : vector<8x256xf32>
    %44 = tpu.matmul %43, %1, %cst_30 {dimension_numbers = #tpu.dot_dimension_numbers<[1], [0], [0], [1], [0, 0, 1, 1], [], []>} : vector<8x4xbf16>, vector<4x256xbf16>, vector<8x256xf32> -> vector<8x256xf32>
    %c2_31 = arith.constant 2 : index
    %c0_32 = arith.constant 0 : index
    %c0_33 = arith.constant 0 : index
    %45 = vector.load %arg4[%c2_31, %c0_32, %c0_33] : memref<9x8x4xbf16, #tpu.memory_space<vmem>>, vector<1x8x4xbf16>
    %46 = vector.shape_cast %45 : vector<1x8x4xbf16> to vector<8x4xbf16>
    %cst_34 = arith.constant dense<0.000000e+00> : vector<8x256xf32>
    %47 = tpu.matmul %46, %3, %cst_34 {dimension_numbers = #tpu.dot_dimension_numbers<[1], [0], [0], [1], [0, 0, 1, 1], [], []>} : vector<8x4xbf16>, vector<4x256xbf16>, vector<8x256xf32> -> vector<8x256xf32>
    %48 = arith.addf %44, %47 : vector<8x256xf32>
    %c15_i32_35 = arith.constant 15 : i32
    %49 = tpu.dynamic_rotate %48 by %c15_i32_35 dim 1 : vector<8x256xf32>, i32 -> vector<8x256xf32>
    %50 = arith.ori %7, %13 : vector<1x256xi1>
    %cst_36 = arith.constant 0.000000e+00 : f32
    %51 = vector.shape_cast %50 : vector<1x256xi1> to vector<1x256xi1>
    %52 = vector.broadcast %51 : vector<1x256xi1> to vector<8x256xi1>
    %53 = vector.broadcast %cst_36 : f32 to vector<8x256xf32>
    %54 = arith.select %52, %53, %49 : vector<8x256xi1>, vector<8x256xf32>
    %55 = arith.addf %41, %54 : vector<8x256xf32>
    %c3 = arith.constant 3 : index
    %c0_37 = arith.constant 0 : index
    %c0_38 = arith.constant 0 : index
    %56 = vector.load %arg3[%c3, %c0_37, %c0_38] : memref<9x8x4xbf16, #tpu.memory_space<vmem>>, vector<1x8x4xbf16>
    %57 = vector.shape_cast %56 : vector<1x8x4xbf16> to vector<8x4xbf16>
    %cst_39 = arith.constant dense<0.000000e+00> : vector<8x256xf32>
    %58 = tpu.matmul %57, %1, %cst_39 {dimension_numbers = #tpu.dot_dimension_numbers<[1], [0], [0], [1], [0, 0, 1, 1], [], []>} : vector<8x4xbf16>, vector<4x256xbf16>, vector<8x256xf32> -> vector<8x256xf32>
    %c3_40 = arith.constant 3 : index
    %c0_41 = arith.constant 0 : index
    %c0_42 = arith.constant 0 : index
    %59 = vector.load %arg4[%c3_40, %c0_41, %c0_42] : memref<9x8x4xbf16, #tpu.memory_space<vmem>>, vector<1x8x4xbf16>
    %60 = vector.shape_cast %59 : vector<1x8x4xbf16> to vector<8x4xbf16>
    %cst_43 = arith.constant dense<0.000000e+00> : vector<8x256xf32>
    %61 = tpu.matmul %60, %3, %cst_43 {dimension_numbers = #tpu.dot_dimension_numbers<[1], [0], [0], [1], [0, 0, 1, 1], [], []>} : vector<8x4xbf16>, vector<4x256xbf16>, vector<8x256xf32> -> vector<8x256xf32>
    %62 = arith.addf %58, %61 : vector<8x256xf32>
    %c1_i32 = arith.constant 1 : i32
    %63 = tpu.dynamic_rotate %62 by %c1_i32 dim 1 : vector<8x256xf32>, i32 -> vector<8x256xf32>
    %cst_44 = arith.constant 0.000000e+00 : f32
    %64 = vector.shape_cast %11 : vector<1x256xi1> to vector<1x256xi1>
    %65 = vector.broadcast %64 : vector<1x256xi1> to vector<8x256xi1>
    %66 = vector.broadcast %cst_44 : f32 to vector<8x256xf32>
    %67 = arith.select %65, %66, %63 : vector<8x256xi1>, vector<8x256xf32>
    %68 = arith.addf %55, %67 : vector<8x256xf32>
    %c4 = arith.constant 4 : index
    %c0_45 = arith.constant 0 : index
    %c0_46 = arith.constant 0 : index
    %69 = vector.load %arg3[%c4, %c0_45, %c0_46] : memref<9x8x4xbf16, #tpu.memory_space<vmem>>, vector<1x8x4xbf16>
    %70 = vector.shape_cast %69 : vector<1x8x4xbf16> to vector<8x4xbf16>
    %cst_47 = arith.constant dense<0.000000e+00> : vector<8x256xf32>
    %71 = tpu.matmul %70, %1, %cst_47 {dimension_numbers = #tpu.dot_dimension_numbers<[1], [0], [0], [1], [0, 0, 1, 1], [], []>} : vector<8x4xbf16>, vector<4x256xbf16>, vector<8x256xf32> -> vector<8x256xf32>
    %c4_48 = arith.constant 4 : index
    %c0_49 = arith.constant 0 : index
    %c0_50 = arith.constant 0 : index
    %72 = vector.load %arg4[%c4_48, %c0_49, %c0_50] : memref<9x8x4xbf16, #tpu.memory_space<vmem>>, vector<1x8x4xbf16>
    %73 = vector.shape_cast %72 : vector<1x8x4xbf16> to vector<8x4xbf16>
    %cst_51 = arith.constant dense<0.000000e+00> : vector<8x256xf32>
    %74 = tpu.matmul %73, %3, %cst_51 {dimension_numbers = #tpu.dot_dimension_numbers<[1], [0], [0], [1], [0, 0, 1, 1], [], []>} : vector<8x4xbf16>, vector<4x256xbf16>, vector<8x256xf32> -> vector<8x256xf32>
    %75 = arith.addf %71, %74 : vector<8x256xf32>
    %76 = arith.addf %68, %75 : vector<8x256xf32>
    %c5 = arith.constant 5 : index
    %c0_52 = arith.constant 0 : index
    %c0_53 = arith.constant 0 : index
    %77 = vector.load %arg3[%c5, %c0_52, %c0_53] : memref<9x8x4xbf16, #tpu.memory_space<vmem>>, vector<1x8x4xbf16>
    %78 = vector.shape_cast %77 : vector<1x8x4xbf16> to vector<8x4xbf16>
    %cst_54 = arith.constant dense<0.000000e+00> : vector<8x256xf32>
    %79 = tpu.matmul %78, %1, %cst_54 {dimension_numbers = #tpu.dot_dimension_numbers<[1], [0], [0], [1], [0, 0, 1, 1], [], []>} : vector<8x4xbf16>, vector<4x256xbf16>, vector<8x256xf32> -> vector<8x256xf32>
    %c5_55 = arith.constant 5 : index
    %c0_56 = arith.constant 0 : index
    %c0_57 = arith.constant 0 : index
    %80 = vector.load %arg4[%c5_55, %c0_56, %c0_57] : memref<9x8x4xbf16, #tpu.memory_space<vmem>>, vector<1x8x4xbf16>
    %81 = vector.shape_cast %80 : vector<1x8x4xbf16> to vector<8x4xbf16>
    %cst_58 = arith.constant dense<0.000000e+00> : vector<8x256xf32>
    %82 = tpu.matmul %81, %3, %cst_58 {dimension_numbers = #tpu.dot_dimension_numbers<[1], [0], [0], [1], [0, 0, 1, 1], [], []>} : vector<8x4xbf16>, vector<4x256xbf16>, vector<8x256xf32> -> vector<8x256xf32>
    %83 = arith.addf %79, %82 : vector<8x256xf32>
    %c255_i32 = arith.constant 255 : i32
    %84 = tpu.dynamic_rotate %83 by %c255_i32 dim 1 : vector<8x256xf32>, i32 -> vector<8x256xf32>
    %cst_59 = arith.constant 0.000000e+00 : f32
    %85 = vector.shape_cast %13 : vector<1x256xi1> to vector<1x256xi1>
    %86 = vector.broadcast %85 : vector<1x256xi1> to vector<8x256xi1>
    %87 = vector.broadcast %cst_59 : f32 to vector<8x256xf32>
    %88 = arith.select %86, %87, %84 : vector<8x256xi1>, vector<8x256xf32>
    %89 = arith.addf %76, %88 : vector<8x256xf32>
    %c6 = arith.constant 6 : index
    %c0_60 = arith.constant 0 : index
    %c0_61 = arith.constant 0 : index
    %90 = vector.load %arg3[%c6, %c0_60, %c0_61] : memref<9x8x4xbf16, #tpu.memory_space<vmem>>, vector<1x8x4xbf16>
    %91 = vector.shape_cast %90 : vector<1x8x4xbf16> to vector<8x4xbf16>
    %cst_62 = arith.constant dense<0.000000e+00> : vector<8x256xf32>
    %92 = tpu.matmul %91, %1, %cst_62 {dimension_numbers = #tpu.dot_dimension_numbers<[1], [0], [0], [1], [0, 0, 1, 1], [], []>} : vector<8x4xbf16>, vector<4x256xbf16>, vector<8x256xf32> -> vector<8x256xf32>
    %c6_63 = arith.constant 6 : index
    %c0_64 = arith.constant 0 : index
    %c0_65 = arith.constant 0 : index
    %93 = vector.load %arg4[%c6_63, %c0_64, %c0_65] : memref<9x8x4xbf16, #tpu.memory_space<vmem>>, vector<1x8x4xbf16>
    %94 = vector.shape_cast %93 : vector<1x8x4xbf16> to vector<8x4xbf16>
    %cst_66 = arith.constant dense<0.000000e+00> : vector<8x256xf32>
    %95 = tpu.matmul %94, %3, %cst_66 {dimension_numbers = #tpu.dot_dimension_numbers<[1], [0], [0], [1], [0, 0, 1, 1], [], []>} : vector<8x4xbf16>, vector<4x256xbf16>, vector<8x256xf32> -> vector<8x256xf32>
    %96 = arith.addf %92, %95 : vector<8x256xf32>
    %c241_i32 = arith.constant 241 : i32
    %97 = tpu.dynamic_rotate %96 by %c241_i32 dim 1 : vector<8x256xf32>, i32 -> vector<8x256xf32>
    %98 = arith.ori %9, %11 : vector<1x256xi1>
    %cst_67 = arith.constant 0.000000e+00 : f32
    %99 = vector.shape_cast %98 : vector<1x256xi1> to vector<1x256xi1>
    %100 = vector.broadcast %99 : vector<1x256xi1> to vector<8x256xi1>
    %101 = vector.broadcast %cst_67 : f32 to vector<8x256xf32>
    %102 = arith.select %100, %101, %97 : vector<8x256xi1>, vector<8x256xf32>
    %103 = arith.addf %89, %102 : vector<8x256xf32>
    %c7 = arith.constant 7 : index
    %c0_68 = arith.constant 0 : index
    %c0_69 = arith.constant 0 : index
    %104 = vector.load %arg3[%c7, %c0_68, %c0_69] : memref<9x8x4xbf16, #tpu.memory_space<vmem>>, vector<1x8x4xbf16>
    %105 = vector.shape_cast %104 : vector<1x8x4xbf16> to vector<8x4xbf16>
    %cst_70 = arith.constant dense<0.000000e+00> : vector<8x256xf32>
    %106 = tpu.matmul %105, %1, %cst_70 {dimension_numbers = #tpu.dot_dimension_numbers<[1], [0], [0], [1], [0, 0, 1, 1], [], []>} : vector<8x4xbf16>, vector<4x256xbf16>, vector<8x256xf32> -> vector<8x256xf32>
    %c7_71 = arith.constant 7 : index
    %c0_72 = arith.constant 0 : index
    %c0_73 = arith.constant 0 : index
    %107 = vector.load %arg4[%c7_71, %c0_72, %c0_73] : memref<9x8x4xbf16, #tpu.memory_space<vmem>>, vector<1x8x4xbf16>
    %108 = vector.shape_cast %107 : vector<1x8x4xbf16> to vector<8x4xbf16>
    %cst_74 = arith.constant dense<0.000000e+00> : vector<8x256xf32>
    %109 = tpu.matmul %108, %3, %cst_74 {dimension_numbers = #tpu.dot_dimension_numbers<[1], [0], [0], [1], [0, 0, 1, 1], [], []>} : vector<8x4xbf16>, vector<4x256xbf16>, vector<8x256xf32> -> vector<8x256xf32>
    %110 = arith.addf %106, %109 : vector<8x256xf32>
    %c240_i32 = arith.constant 240 : i32
    %111 = tpu.dynamic_rotate %110 by %c240_i32 dim 1 : vector<8x256xf32>, i32 -> vector<8x256xf32>
    %cst_75 = arith.constant 0.000000e+00 : f32
    %112 = vector.shape_cast %9 : vector<1x256xi1> to vector<1x256xi1>
    %113 = vector.broadcast %112 : vector<1x256xi1> to vector<8x256xi1>
    %114 = vector.broadcast %cst_75 : f32 to vector<8x256xf32>
    %115 = arith.select %113, %114, %111 : vector<8x256xi1>, vector<8x256xf32>
    %116 = arith.addf %103, %115 : vector<8x256xf32>
    %c8 = arith.constant 8 : index
    %c0_76 = arith.constant 0 : index
    %c0_77 = arith.constant 0 : index
    %117 = vector.load %arg3[%c8, %c0_76, %c0_77] : memref<9x8x4xbf16, #tpu.memory_space<vmem>>, vector<1x8x4xbf16>
    %118 = vector.shape_cast %117 : vector<1x8x4xbf16> to vector<8x4xbf16>
    %cst_78 = arith.constant dense<0.000000e+00> : vector<8x256xf32>
    %119 = tpu.matmul %118, %1, %cst_78 {dimension_numbers = #tpu.dot_dimension_numbers<[1], [0], [0], [1], [0, 0, 1, 1], [], []>} : vector<8x4xbf16>, vector<4x256xbf16>, vector<8x256xf32> -> vector<8x256xf32>
    %c8_79 = arith.constant 8 : index
    %c0_80 = arith.constant 0 : index
    %c0_81 = arith.constant 0 : index
    %120 = vector.load %arg4[%c8_79, %c0_80, %c0_81] : memref<9x8x4xbf16, #tpu.memory_space<vmem>>, vector<1x8x4xbf16>
    %121 = vector.shape_cast %120 : vector<1x8x4xbf16> to vector<8x4xbf16>
    %cst_82 = arith.constant dense<0.000000e+00> : vector<8x256xf32>
    %122 = tpu.matmul %121, %3, %cst_82 {dimension_numbers = #tpu.dot_dimension_numbers<[1], [0], [0], [1], [0, 0, 1, 1], [], []>} : vector<8x4xbf16>, vector<4x256xbf16>, vector<8x256xf32> -> vector<8x256xf32>
    %123 = arith.addf %119, %122 : vector<8x256xf32>
    %c239_i32 = arith.constant 239 : i32
    %124 = tpu.dynamic_rotate %123 by %c239_i32 dim 1 : vector<8x256xf32>, i32 -> vector<8x256xf32>
    %125 = arith.ori %9, %13 : vector<1x256xi1>
    %cst_83 = arith.constant 0.000000e+00 : f32
    %126 = vector.shape_cast %125 : vector<1x256xi1> to vector<1x256xi1>
    %127 = vector.broadcast %126 : vector<1x256xi1> to vector<8x256xi1>
    %128 = vector.broadcast %cst_83 : f32 to vector<8x256xf32>
    %129 = arith.select %127, %128, %124 : vector<8x256xi1>, vector<8x256xf32>
    %130 = arith.addf %116, %129 : vector<8x256xf32>
    %c0_84 = arith.constant 0 : index
    %c0_85 = arith.constant 0 : index
    %131 = vector.load %arg7[%c0_84, %c0_85] : memref<8x1xf32, #tpu.memory_space<vmem>>, vector<8x1xf32>
    %132 = vector.broadcast %131 : vector<8x1xf32> to vector<8x256xf32>
    %133 = arith.mulf %130, %132 : vector<8x256xf32>
    %c0_86 = arith.constant 0 : index
    %c0_87 = arith.constant 0 : index
    %134 = vector.load %arg8[%c0_86, %c0_87] : memref<8x1xf32, #tpu.memory_space<vmem>>, vector<8x1xf32>
    %135 = vector.broadcast %134 : vector<8x1xf32> to vector<8x256xf32>
    %136 = arith.addf %133, %135 : vector<8x256xf32>
    %cst_88 = arith.constant 1.000000e-01 : f32
    %137 = vector.broadcast %cst_88 : f32 to vector<8x256xf32>
    %138 = arith.mulf %137, %136 : vector<8x256xf32>
    %139 = arith.maximumf %136, %138 : vector<8x256xf32>
    %140 = arith.truncf %139 : vector<8x256xf32> to vector<8x256xbf16>
    %c0_89 = arith.constant 0 : index
    %c0_90 = arith.constant 0 : index
    %c0_91 = arith.constant 0 : index
    %141 = vector.load %arg9[%c0_89, %c0_90, %c0_91] : memref<1x8x256xbf16, #tpu.memory_space<vmem>>, vector<1x8x256xbf16>
    %142 = vector.shape_cast %141 : vector<1x8x256xbf16> to vector<8x256xbf16>
    %143 = vector.shape_cast %140 : vector<8x256xbf16> to vector<1x8x256xbf16>
    tpu.vector_store %arg9[%c0_89, %c0_90, %c0_91], %143 {strides = array<i32>} : memref<1x8x256xbf16, #tpu.memory_space<vmem>>, vector<1x8x256xbf16>,
    return
  }
  func.func @transform_0(%arg0: i32) -> (i32, i32, i32) {
    %c0_i32 = arith.constant 0 : i32
    %c0_i32_0 = arith.constant 0 : i32
    %c0_i32_1 = arith.constant 0 : i32
    return %arg0, %c0_i32, %c0_i32_0 : i32, i32, i32
  }
  func.func @transform_1(%arg0: i32) -> (i32, i32, i32) {
    %c0_i32 = arith.constant 0 : i32
    %c0_i32_0 = arith.constant 0 : i32
    %c0_i32_1 = arith.constant 0 : i32
    return %arg0, %c0_i32, %c0_i32_0 : i32, i32, i32
  }
  func.func @transform_2(%arg0: i32) -> (i32, i32, i32) {
    %c0_i32 = arith.constant 0 : i32
    %c0_i32_0 = arith.constant 0 : i32
    %c0_i32_1 = arith.constant 0 : i32
    %c0_i32_2 = arith.constant 0 : i32
    return %c0_i32, %c0_i32_0, %c0_i32_1 : i32, i32, i32
  }
  func.func @transform_3(%arg0: i32) -> (i32, i32, i32) {
    %c0_i32 = arith.constant 0 : i32
    %c0_i32_0 = arith.constant 0 : i32
    %c0_i32_1 = arith.constant 0 : i32
    %c0_i32_2 = arith.constant 0 : i32
    return %c0_i32, %c0_i32_0, %c0_i32_1 : i32, i32, i32
  }
  func.func @transform_4(%arg0: i32) -> (i32, i32) {
    %c0_i32 = arith.constant 0 : i32
    %c0_i32_0 = arith.constant 0 : i32
    %c0_i32_1 = arith.constant 0 : i32
    return %c0_i32, %c0_i32_0 : i32, i32
  }
  func.func @transform_5(%arg0: i32) -> (i32, i32) {
    %c0_i32 = arith.constant 0 : i32
    %c0_i32_0 = arith.constant 0 : i32
    %c0_i32_1 = arith.constant 0 : i32
    return %c0_i32, %c0_i32_0 : i32, i32
  }
  func.func @transform_6(%arg0: i32) -> (i32, i32) {
    %c0_i32 = arith.constant 0 : i32
    %c0_i32_0 = arith.constant 0 : i32
    %c0_i32_1 = arith.constant 0 : i32
    return %c0_i32, %c0_i32_0 : i32, i32
  }
  func.func @transform_7(%arg0: i32) -> (i32, i32) {
    %c0_i32 = arith.constant 0 : i32
    %c0_i32_0 = arith.constant 0 : i32
    %c0_i32_1 = arith.constant 0 : i32
    return %c0_i32, %c0_i32_0 : i32, i32
  }
  func.func @transform_8(%arg0: i32) -> (i32, i32, i32) {
    %c0_i32 = arith.constant 0 : i32
    %c0_i32_0 = arith.constant 0 : i32
    %c0_i32_1 = arith.constant 0 : i32
    return %arg0, %c0_i32, %c0_i32_0 : i32, i32, i32
  }
}

module attributes {stable_mosaic.version = 11 : i64} {
  func.func @kernel(%arg0: i32, %arg1: memref<1x8x256xbf16, #tpu.memory_space<vmem>>, %arg2: memref<9x8x8xbf16, #tpu.memory_space<vmem>>, %arg3: memref<1x256xi32, #tpu.memory_space<vmem>>, %arg4: memref<1x256xi32, #tpu.memory_space<vmem>>, %arg5: memref<8x1xf32, #tpu.memory_space<vmem>>, %arg6: memref<8x1xf32, #tpu.memory_space<vmem>>, %arg7: memref<1x8x256xbf16, #tpu.memory_space<vmem>>) attributes {dimension_semantics = [#tpu.dimension_semantics<parallel>], iteration_bounds = array<i64: 2>, scalar_prefetch = 0 : i64, scratch_operands = 0 : i64, tpu.core_type = #tpu.core_type<tc>, window_params = [{transform_indices = @transform_0, window_bounds = array<i64: 1, 8, 256>}, {pipeline_mode = #tpu.pipeline_mode<synchronous>, transform_indices = @transform_1, window_bounds = array<i64: 9, 8, 8>}, {pipeline_mode = #tpu.pipeline_mode<synchronous>, transform_indices = @transform_2, window_bounds = array<i64: 1, 256>}, {pipeline_mode = #tpu.pipeline_mode<synchronous>, transform_indices = @transform_3, window_bounds = array<i64: 1, 256>}, {pipeline_mode = #tpu.pipeline_mode<synchronous>, transform_indices = @transform_4, window_bounds = array<i64: 8, 1>}, {pipeline_mode = #tpu.pipeline_mode<synchronous>, transform_indices = @transform_5, window_bounds = array<i64: 8, 1>}, {transform_indices = @transform_6, window_bounds = array<i64: 1, 8, 256>}]} {
    %c0 = arith.constant 0 : index
    %c0_0 = arith.constant 0 : index
    %c0_1 = arith.constant 0 : index
    %0 = vector.load %arg1[%c0, %c0_0, %c0_1] : memref<1x8x256xbf16, #tpu.memory_space<vmem>>, vector<1x8x256xbf16>
    %1 = vector.shape_cast %0 : vector<1x8x256xbf16> to vector<8x256xbf16>
    %c0_2 = arith.constant 0 : index
    %c0_3 = arith.constant 0 : index
    %2 = vector.load %arg3[%c0_2, %c0_3] : memref<1x256xi32, #tpu.memory_space<vmem>>, vector<1x256xi32>
    %c0_4 = arith.constant 0 : index
    %c0_5 = arith.constant 0 : index
    %3 = vector.load %arg4[%c0_4, %c0_5] : memref<1x256xi32, #tpu.memory_space<vmem>>, vector<1x256xi32>
    %c0_i32 = arith.constant 0 : i32
    %4 = vector.broadcast %c0_i32 : i32 to vector<1x256xi32>
    %5 = arith.cmpi eq, %2, %4 : vector<1x256xi32>
    %c15_i32 = arith.constant 15 : i32
    %6 = vector.broadcast %c15_i32 : i32 to vector<1x256xi32>
    %7 = arith.cmpi eq, %2, %6 : vector<1x256xi32>
    %c0_i32_6 = arith.constant 0 : i32
    %8 = vector.broadcast %c0_i32_6 : i32 to vector<1x256xi32>
    %9 = arith.cmpi eq, %3, %8 : vector<1x256xi32>
    %c15_i32_7 = arith.constant 15 : i32
    %10 = vector.broadcast %c15_i32_7 : i32 to vector<1x256xi32>
    %11 = arith.cmpi eq, %3, %10 : vector<1x256xi32>
    %cst = arith.constant 0.000000e+00 : f32
    %12 = vector.broadcast %cst : f32 to vector<8x256xf32>
    %c0_8 = arith.constant 0 : index
    %c0_9 = arith.constant 0 : index
    %c0_10 = arith.constant 0 : index
    %13 = vector.load %arg2[%c0_8, %c0_9, %c0_10] : memref<9x8x8xbf16, #tpu.memory_space<vmem>>, vector<1x8x8xbf16>
    %14 = vector.shape_cast %13 : vector<1x8x8xbf16> to vector<8x8xbf16>
    %cst_11 = arith.constant dense<0.000000e+00> : vector<8x256xf32>
    %15 = tpu.matmul %14, %1, %cst_11 {dimension_numbers = #tpu.dot_dimension_numbers<[1], [0], [0], [1], [0, 0, 1, 1], [], []>} : vector<8x8xbf16>, vector<8x256xbf16>, vector<8x256xf32> -> vector<8x256xf32>
    %c17_i32 = arith.constant 17 : i32
    %16 = tpu.dynamic_rotate %15 by %c17_i32 dim 1 : vector<8x256xf32>, i32 -> vector<8x256xf32>
    %17 = arith.ori %5, %9 : vector<1x256xi1>
    %cst_12 = arith.constant 0.000000e+00 : f32
    %18 = vector.shape_cast %17 : vector<1x256xi1> to vector<1x256xi1>
    %19 = vector.broadcast %18 : vector<1x256xi1> to vector<8x256xi1>
    %20 = vector.broadcast %cst_12 : f32 to vector<8x256xf32>
    %21 = arith.select %19, %20, %16 : vector<8x256xi1>, vector<8x256xf32>
    %22 = arith.addf %12, %21 : vector<8x256xf32>
    %c1 = arith.constant 1 : index
    %c0_13 = arith.constant 0 : index
    %c0_14 = arith.constant 0 : index
    %23 = vector.load %arg2[%c1, %c0_13, %c0_14] : memref<9x8x8xbf16, #tpu.memory_space<vmem>>, vector<1x8x8xbf16>
    %24 = vector.shape_cast %23 : vector<1x8x8xbf16> to vector<8x8xbf16>
    %cst_15 = arith.constant dense<0.000000e+00> : vector<8x256xf32>
    %25 = tpu.matmul %24, %1, %cst_15 {dimension_numbers = #tpu.dot_dimension_numbers<[1], [0], [0], [1], [0, 0, 1, 1], [], []>} : vector<8x8xbf16>, vector<8x256xbf16>, vector<8x256xf32> -> vector<8x256xf32>
    %c16_i32 = arith.constant 16 : i32
    %26 = tpu.dynamic_rotate %25 by %c16_i32 dim 1 : vector<8x256xf32>, i32 -> vector<8x256xf32>
    %cst_16 = arith.constant 0.000000e+00 : f32
    %27 = vector.shape_cast %5 : vector<1x256xi1> to vector<1x256xi1>
    %28 = vector.broadcast %27 : vector<1x256xi1> to vector<8x256xi1>
    %29 = vector.broadcast %cst_16 : f32 to vector<8x256xf32>
    %30 = arith.select %28, %29, %26 : vector<8x256xi1>, vector<8x256xf32>
    %31 = arith.addf %22, %30 : vector<8x256xf32>
    %c2 = arith.constant 2 : index
    %c0_17 = arith.constant 0 : index
    %c0_18 = arith.constant 0 : index
    %32 = vector.load %arg2[%c2, %c0_17, %c0_18] : memref<9x8x8xbf16, #tpu.memory_space<vmem>>, vector<1x8x8xbf16>
    %33 = vector.shape_cast %32 : vector<1x8x8xbf16> to vector<8x8xbf16>
    %cst_19 = arith.constant dense<0.000000e+00> : vector<8x256xf32>
    %34 = tpu.matmul %33, %1, %cst_19 {dimension_numbers = #tpu.dot_dimension_numbers<[1], [0], [0], [1], [0, 0, 1, 1], [], []>} : vector<8x8xbf16>, vector<8x256xbf16>, vector<8x256xf32> -> vector<8x256xf32>
    %c15_i32_20 = arith.constant 15 : i32
    %35 = tpu.dynamic_rotate %34 by %c15_i32_20 dim 1 : vector<8x256xf32>, i32 -> vector<8x256xf32>
    %36 = arith.ori %5, %11 : vector<1x256xi1>
    %cst_21 = arith.constant 0.000000e+00 : f32
    %37 = vector.shape_cast %36 : vector<1x256xi1> to vector<1x256xi1>
    %38 = vector.broadcast %37 : vector<1x256xi1> to vector<8x256xi1>
    %39 = vector.broadcast %cst_21 : f32 to vector<8x256xf32>
    %40 = arith.select %38, %39, %35 : vector<8x256xi1>, vector<8x256xf32>
    %41 = arith.addf %31, %40 : vector<8x256xf32>
    %c3 = arith.constant 3 : index
    %c0_22 = arith.constant 0 : index
    %c0_23 = arith.constant 0 : index
    %42 = vector.load %arg2[%c3, %c0_22, %c0_23] : memref<9x8x8xbf16, #tpu.memory_space<vmem>>, vector<1x8x8xbf16>
    %43 = vector.shape_cast %42 : vector<1x8x8xbf16> to vector<8x8xbf16>
    %cst_24 = arith.constant dense<0.000000e+00> : vector<8x256xf32>
    %44 = tpu.matmul %43, %1, %cst_24 {dimension_numbers = #tpu.dot_dimension_numbers<[1], [0], [0], [1], [0, 0, 1, 1], [], []>} : vector<8x8xbf16>, vector<8x256xbf16>, vector<8x256xf32> -> vector<8x256xf32>
    %c1_i32 = arith.constant 1 : i32
    %45 = tpu.dynamic_rotate %44 by %c1_i32 dim 1 : vector<8x256xf32>, i32 -> vector<8x256xf32>
    %cst_25 = arith.constant 0.000000e+00 : f32
    %46 = vector.shape_cast %9 : vector<1x256xi1> to vector<1x256xi1>
    %47 = vector.broadcast %46 : vector<1x256xi1> to vector<8x256xi1>
    %48 = vector.broadcast %cst_25 : f32 to vector<8x256xf32>
    %49 = arith.select %47, %48, %45 : vector<8x256xi1>, vector<8x256xf32>
    %50 = arith.addf %41, %49 : vector<8x256xf32>
    %c4 = arith.constant 4 : index
    %c0_26 = arith.constant 0 : index
    %c0_27 = arith.constant 0 : index
    %51 = vector.load %arg2[%c4, %c0_26, %c0_27] : memref<9x8x8xbf16, #tpu.memory_space<vmem>>, vector<1x8x8xbf16>
    %52 = vector.shape_cast %51 : vector<1x8x8xbf16> to vector<8x8xbf16>
    %cst_28 = arith.constant dense<0.000000e+00> : vector<8x256xf32>
    %53 = tpu.matmul %52, %1, %cst_28 {dimension_numbers = #tpu.dot_dimension_numbers<[1], [0], [0], [1], [0, 0, 1, 1], [], []>} : vector<8x8xbf16>, vector<8x256xbf16>, vector<8x256xf32> -> vector<8x256xf32>
    %54 = arith.addf %50, %53 : vector<8x256xf32>
    %c5 = arith.constant 5 : index
    %c0_29 = arith.constant 0 : index
    %c0_30 = arith.constant 0 : index
    %55 = vector.load %arg2[%c5, %c0_29, %c0_30] : memref<9x8x8xbf16, #tpu.memory_space<vmem>>, vector<1x8x8xbf16>
    %56 = vector.shape_cast %55 : vector<1x8x8xbf16> to vector<8x8xbf16>
    %cst_31 = arith.constant dense<0.000000e+00> : vector<8x256xf32>
    %57 = tpu.matmul %56, %1, %cst_31 {dimension_numbers = #tpu.dot_dimension_numbers<[1], [0], [0], [1], [0, 0, 1, 1], [], []>} : vector<8x8xbf16>, vector<8x256xbf16>, vector<8x256xf32> -> vector<8x256xf32>
    %c255_i32 = arith.constant 255 : i32
    %58 = tpu.dynamic_rotate %57 by %c255_i32 dim 1 : vector<8x256xf32>, i32 -> vector<8x256xf32>
    %cst_32 = arith.constant 0.000000e+00 : f32
    %59 = vector.shape_cast %11 : vector<1x256xi1> to vector<1x256xi1>
    %60 = vector.broadcast %59 : vector<1x256xi1> to vector<8x256xi1>
    %61 = vector.broadcast %cst_32 : f32 to vector<8x256xf32>
    %62 = arith.select %60, %61, %58 : vector<8x256xi1>, vector<8x256xf32>
    %63 = arith.addf %54, %62 : vector<8x256xf32>
    %c6 = arith.constant 6 : index
    %c0_33 = arith.constant 0 : index
    %c0_34 = arith.constant 0 : index
    %64 = vector.load %arg2[%c6, %c0_33, %c0_34] : memref<9x8x8xbf16, #tpu.memory_space<vmem>>, vector<1x8x8xbf16>
    %65 = vector.shape_cast %64 : vector<1x8x8xbf16> to vector<8x8xbf16>
    %cst_35 = arith.constant dense<0.000000e+00> : vector<8x256xf32>
    %66 = tpu.matmul %65, %1, %cst_35 {dimension_numbers = #tpu.dot_dimension_numbers<[1], [0], [0], [1], [0, 0, 1, 1], [], []>} : vector<8x8xbf16>, vector<8x256xbf16>, vector<8x256xf32> -> vector<8x256xf32>
    %c241_i32 = arith.constant 241 : i32
    %67 = tpu.dynamic_rotate %66 by %c241_i32 dim 1 : vector<8x256xf32>, i32 -> vector<8x256xf32>
    %68 = arith.ori %7, %9 : vector<1x256xi1>
    %cst_36 = arith.constant 0.000000e+00 : f32
    %69 = vector.shape_cast %68 : vector<1x256xi1> to vector<1x256xi1>
    %70 = vector.broadcast %69 : vector<1x256xi1> to vector<8x256xi1>
    %71 = vector.broadcast %cst_36 : f32 to vector<8x256xf32>
    %72 = arith.select %70, %71, %67 : vector<8x256xi1>, vector<8x256xf32>
    %73 = arith.addf %63, %72 : vector<8x256xf32>
    %c7 = arith.constant 7 : index
    %c0_37 = arith.constant 0 : index
    %c0_38 = arith.constant 0 : index
    %74 = vector.load %arg2[%c7, %c0_37, %c0_38] : memref<9x8x8xbf16, #tpu.memory_space<vmem>>, vector<1x8x8xbf16>
    %75 = vector.shape_cast %74 : vector<1x8x8xbf16> to vector<8x8xbf16>
    %cst_39 = arith.constant dense<0.000000e+00> : vector<8x256xf32>
    %76 = tpu.matmul %75, %1, %cst_39 {dimension_numbers = #tpu.dot_dimension_numbers<[1], [0], [0], [1], [0, 0, 1, 1], [], []>} : vector<8x8xbf16>, vector<8x256xbf16>, vector<8x256xf32> -> vector<8x256xf32>
    %c240_i32 = arith.constant 240 : i32
    %77 = tpu.dynamic_rotate %76 by %c240_i32 dim 1 : vector<8x256xf32>, i32 -> vector<8x256xf32>
    %cst_40 = arith.constant 0.000000e+00 : f32
    %78 = vector.shape_cast %7 : vector<1x256xi1> to vector<1x256xi1>
    %79 = vector.broadcast %78 : vector<1x256xi1> to vector<8x256xi1>
    %80 = vector.broadcast %cst_40 : f32 to vector<8x256xf32>
    %81 = arith.select %79, %80, %77 : vector<8x256xi1>, vector<8x256xf32>
    %82 = arith.addf %73, %81 : vector<8x256xf32>
    %c8 = arith.constant 8 : index
    %c0_41 = arith.constant 0 : index
    %c0_42 = arith.constant 0 : index
    %83 = vector.load %arg2[%c8, %c0_41, %c0_42] : memref<9x8x8xbf16, #tpu.memory_space<vmem>>, vector<1x8x8xbf16>
    %84 = vector.shape_cast %83 : vector<1x8x8xbf16> to vector<8x8xbf16>
    %cst_43 = arith.constant dense<0.000000e+00> : vector<8x256xf32>
    %85 = tpu.matmul %84, %1, %cst_43 {dimension_numbers = #tpu.dot_dimension_numbers<[1], [0], [0], [1], [0, 0, 1, 1], [], []>} : vector<8x8xbf16>, vector<8x256xbf16>, vector<8x256xf32> -> vector<8x256xf32>
    %c239_i32 = arith.constant 239 : i32
    %86 = tpu.dynamic_rotate %85 by %c239_i32 dim 1 : vector<8x256xf32>, i32 -> vector<8x256xf32>
    %87 = arith.ori %7, %11 : vector<1x256xi1>
    %cst_44 = arith.constant 0.000000e+00 : f32
    %88 = vector.shape_cast %87 : vector<1x256xi1> to vector<1x256xi1>
    %89 = vector.broadcast %88 : vector<1x256xi1> to vector<8x256xi1>
    %90 = vector.broadcast %cst_44 : f32 to vector<8x256xf32>
    %91 = arith.select %89, %90, %86 : vector<8x256xi1>, vector<8x256xf32>
    %92 = arith.addf %82, %91 : vector<8x256xf32>
    %c0_45 = arith.constant 0 : index
    %c0_46 = arith.constant 0 : index
    %93 = vector.load %arg5[%c0_45, %c0_46] : memref<8x1xf32, #tpu.memory_space<vmem>>, vector<8x1xf32>
    %94 = vector.broadcast %93 : vector<8x1xf32> to vector<8x256xf32>
    %95 = arith.mulf %92, %94 : vector<8x256xf32>
    %c0_47 = arith.constant 0 : index
    %c0_48 = arith.constant 0 : index
    %96 = vector.load %arg6[%c0_47, %c0_48] : memref<8x1xf32, #tpu.memory_space<vmem>>, vector<8x1xf32>
    %97 = vector.broadcast %96 : vector<8x1xf32> to vector<8x256xf32>
    %98 = arith.addf %95, %97 : vector<8x256xf32>
    %cst_49 = arith.constant 1.000000e-01 : f32
    %99 = vector.broadcast %cst_49 : f32 to vector<8x256xf32>
    %100 = arith.mulf %99, %98 : vector<8x256xf32>
    %101 = arith.maximumf %98, %100 : vector<8x256xf32>
    %102 = arith.truncf %101 : vector<8x256xf32> to vector<8x256xbf16>
    %c0_50 = arith.constant 0 : index
    %c0_51 = arith.constant 0 : index
    %c0_52 = arith.constant 0 : index
    %103 = vector.load %arg7[%c0_50, %c0_51, %c0_52] : memref<1x8x256xbf16, #tpu.memory_space<vmem>>, vector<1x8x256xbf16>
    %104 = vector.shape_cast %103 : vector<1x8x256xbf16> to vector<8x256xbf16>
    %105 = vector.shape_cast %102 : vector<8x256xbf16> to vector<1x8x256xbf16>
    tpu.vector_store %arg7[%c0_50, %c0_51, %c0_52], %105 {strides = array<i32>} : memref<1x8x256xbf16, #tpu.memory_space<vmem>>, vector<1x8x256xbf16>,
    return
  }
  func.func @transform_0(%arg0: i32) -> (i32, i32, i32) {
    %c0_i32 = arith.constant 0 : i32
    %c0_i32_0 = arith.constant 0 : i32
    %c0_i32_1 = arith.constant 0 : i32
    return %arg0, %c0_i32, %c0_i32_0 : i32, i32, i32
  }
  func.func @transform_1(%arg0: i32) -> (i32, i32, i32) {
    %c0_i32 = arith.constant 0 : i32
    %c0_i32_0 = arith.constant 0 : i32
    %c0_i32_1 = arith.constant 0 : i32
    %c0_i32_2 = arith.constant 0 : i32
    return %c0_i32, %c0_i32_0, %c0_i32_1 : i32, i32, i32
  }
  func.func @transform_2(%arg0: i32) -> (i32, i32) {
    %c0_i32 = arith.constant 0 : i32
    %c0_i32_0 = arith.constant 0 : i32
    %c0_i32_1 = arith.constant 0 : i32
    return %c0_i32, %c0_i32_0 : i32, i32
  }
  func.func @transform_3(%arg0: i32) -> (i32, i32) {
    %c0_i32 = arith.constant 0 : i32
    %c0_i32_0 = arith.constant 0 : i32
    %c0_i32_1 = arith.constant 0 : i32
    return %c0_i32, %c0_i32_0 : i32, i32
  }
  func.func @transform_4(%arg0: i32) -> (i32, i32) {
    %c0_i32 = arith.constant 0 : i32
    %c0_i32_0 = arith.constant 0 : i32
    %c0_i32_1 = arith.constant 0 : i32
    return %c0_i32, %c0_i32_0 : i32, i32
  }
  func.func @transform_5(%arg0: i32) -> (i32, i32) {
    %c0_i32 = arith.constant 0 : i32
    %c0_i32_0 = arith.constant 0 : i32
    %c0_i32_1 = arith.constant 0 : i32
    return %c0_i32, %c0_i32_0 : i32, i32
  }
  func.func @transform_6(%arg0: i32) -> (i32, i32, i32) {
    %c0_i32 = arith.constant 0 : i32
    %c0_i32_0 = arith.constant 0 : i32
    %c0_i32_1 = arith.constant 0 : i32
    return %arg0, %c0_i32, %c0_i32_0 : i32, i32, i32
  }
}

</mosaic_0001>

<llo_original>
// kernel: up_forward.3
$region0: #{up_forward.3}
  #allocation0 [shape = 'u32[]', space=smem, size = 0x4, offset = 0x4, fixed_abs, tag = 'smem constant byte address 0x4 - core index']
  #allocation1 [shape = 'u32[144,128]{1,0:T(1,128)}', space=vmem, size = 0x12000, scoped, tag = 'internal scratch']
  %s0 = inlined_call_operand.hbm [shape: bf16[2,8,64], index: 0, kind: input, shape index: {}]
  %s1 = inlined_call_operand.hbm [shape: bf16[4,4,8], index: 1, kind: input, shape index: {}]
  %s2 = inlined_call_operand.hbm [shape: f32[4,1], index: 2, kind: input, shape index: {}]
  %s3 = inlined_call_operand.hbm [shape: bf16[2,2,2,4,64], index: 3, kind: output, shape index: {}]
  %s4 = sld [smem:[#allocation0]]
  $region57: #{up_forward.3} parent=0
    _
  %s6 = ssub.s32 1, %s4
  %s7 = scalar_select 0, %s6, %s4
  $region1: #{up_forward.3} parent=0
    #allocation2 [shape = 'u8[4096]{0}', space=vmem, size = 0x1000, scoped, tag = 'input window, operand 0']
    #allocation3 [shape = 's32[2]{0}', space=sflag, size = 0x8, scoped, tag = 'scoped memory for up_forward.3']
    #allocation4 [shape = 's32[2]{0}', space=sflag, size = 0x8, scoped, tag = 'scoped memory for up_forward.3']
    #allocation5 [shape = 'u8[4096]{0}', space=vmem, size = 0x1000, scoped, tag = 'input window, operand 1, single buffered']
    #allocation6 [shape = 's32[1]{0}', space=sflag, size = 0x4, scoped, tag = 'scoped memory for up_forward.3']
    #allocation7 [shape = 'u8[2048]{0}', space=vmem, size = 0x800, scoped, tag = 'input window, operand 2, single buffered']
    #allocation8 [shape = 'u8[8192]{0}', space=vmem, size = 0x2000, scoped, tag = 'output window, operand 0']
    %8 = vsyncpa [#allocation3], 0
    %s9 = scalar_lea.sflag [#allocation3], 1
    %10 = vsyncpa %s9, 0
    %11 = vsyncpa [#allocation6], 0
    %12 = vsyncpa [#allocation4], 0
    %s13 = scalar_lea.sflag [#allocation4], 1
    %14 = vsyncpa %s13, 0
    loop: start=0, step=1, limit=4
    $region2: #{up_forward.3} parent=1 // loop_pre_header
      _
    $region3: #{up_forward.3} parent=1 // loop_header
      %s16 = sphi 0, %s20
      %p17 = scmp.ge.s32.totalorder %s16, 4
      %s26 = sphi 0, %s28
      %s29 = sphi 0, %s26
      %s30 = sphi 0, %s29
      %s46 = sphi 0, %s30
      %s50 = sphi 0, %s50
      %s52 = sphi 0, %s50
      %s53 = sphi 0, %s52
      %s67 = sphi 0, %s53
      %s71 = sphi 0, %s71
      %s73 = sphi 0, %s71
      %s74 = sphi 0, %s73
      %s88 = sphi 0, %s74
      %s94 = sphi 0, %s96
      %s97 = sphi 0, %s94
      %s98 = sphi 0, %s97
      %s114 = sphi 0, %s98
    $region4: #{up_forward.3} parent=1 // loop_header_branch
      %19 = sbr.rel (%p17) target = $region8
    $region5: #{up_forward.3} parent=1 // loop_body
      %s21 = ssub.s32 %s16, 1
      %s22 = ssub.s32 %s16, 2
      %s23 = sadd.s32 %s16, 1
      %s24 = ssub.s32 %s16, %s23
      %p25 = scmp.eq.s32.totalorder %s24, 0
      %s27 = sadd.s32 %s26, 1
      %s28 = scalar_select %p25, %s26, %s27
      %p31 = pneg %p25
      %p32 = scmp.eq.s32.totalorder %s16, 1
      %p33 = por %p31, %p32
      %p34 = scmp.ne.s32.totalorder %s26, %s29
      %p35 = scmp.eq.s32.totalorder %s16, 0
      %p36 = por %p34, %p35
      %p37 = scmp.ne.s32.totalorder %s26, %s29
      %p38 = scmp.eq.s32.totalorder %s21, 1
      %p39 = por %p37, %p38
      %p40 = scmp.ne.s32.totalorder %s29, %s30
      %p41 = scmp.eq.s32.totalorder %s21, 0
      %p42 = por %p40, %p41
      %p43 = scmp.ne.s32.totalorder %s29, %s30
      %p44 = scmp.eq.s32.totalorder %s22, 1
      %p45 = por %p43, %p44
      %p47 = scmp.ne.s32.totalorder %s30, %s46
      %p48 = scmp.eq.s32.totalorder %s22, 0
      %p49 = por %p47, %p48
      %s51 = sadd.s32 %s50, 1
      %p54 = scmp.eq.s32.totalorder %s16, 1
      %p55 = scmp.ne.s32.totalorder %s50, %s52
      %p56 = scmp.eq.s32.totalorder %s16, 0
      %p57 = por %p55, %p56
      %p58 = scmp.ne.s32.totalorder %s50, %s52
      %p59 = scmp.eq.s32.totalorder %s21, 1
      %p60 = por %p58, %p59
      %p61 = scmp.ne.s32.totalorder %s52, %s53
      %p62 = scmp.eq.s32.totalorder %s21, 0
      %p63 = por %p61, %p62
      %p64 = scmp.ne.s32.totalorder %s52, %s53
      %p65 = scmp.eq.s32.totalorder %s22, 1
      %p66 = por %p64, %p65
      %p68 = scmp.ne.s32.totalorder %s53, %s67
      %p69 = scmp.eq.s32.totalorder %s22, 0
      %p70 = por %p68, %p69
      %s72 = sadd.s32 %s71, 1
      %p75 = scmp.eq.s32.totalorder %s16, 1
      %p76 = scmp.ne.s32.totalorder %s71, %s73
      %p77 = scmp.eq.s32.totalorder %s16, 0
      %p78 = por %p76, %p77
      %p79 = scmp.ne.s32.totalorder %s71, %s73
      %p80 = scmp.eq.s32.totalorder %s21, 1
      %p81 = por %p79, %p80
      %p82 = scmp.ne.s32.totalorder %s73, %s74
      %p83 = scmp.eq.s32.totalorder %s21, 0
      %p84 = por %p82, %p83
      %p85 = scmp.ne.s32.totalorder %s73, %s74
      %p86 = scmp.eq.s32.totalorder %s22, 1
      %p87 = por %p85, %p86
      %p89 = scmp.ne.s32.totalorder %s74, %s88
      %p90 = scmp.eq.s32.totalorder %s22, 0
      %p91 = por %p89, %p90
      %s92 = ssub.s32 %s16, %s23
      %p93 = scmp.eq.s32.totalorder %s92, 0
      %s95 = sadd.s32 %s94, 1
      %s96 = scalar_select %p93, %s94, %s95
      %p99 = pneg %p93
      %p100 = scmp.eq.s32.totalorder %s16, 1
      %p101 = por %p99, %p100
      %p102 = scmp.ne.s32.totalorder %s94, %s97
      %p103 = scmp.eq.s32.totalorder %s16, 0
      %p104 = por %p102, %p103
      %p105 = scmp.ne.s32.totalorder %s94, %s97
      %p106 = scmp.eq.s32.totalorder %s21, 1
      %p107 = por %p105, %p106
      %p108 = scmp.ne.s32.totalorder %s97, %s98
      %p109 = scmp.eq.s32.totalorder %s21, 0
      %p110 = por %p108, %p109
      %p111 = scmp.ne.s32.totalorder %s97, %s98
      %p112 = scmp.eq.s32.totalorder %s22, 1
      %p113 = por %p111, %p112
      %p115 = scmp.ne.s32.totalorder %s98, %s114
      %p116 = scmp.eq.s32.totalorder %s22, 0
      %p117 = por %p115, %p116
      %p118 = scmp.le.s32.totalorder 1, %s16
      %p119 = scmp.lt.s32.totalorder %s16, 3
      %p120 = pnand %p118, %p119
      %p121 = pneg %p120
      // Predicated region
      $region9: #{up_forward.3} parent=5 // pred_check
        _
      $region10: #{up_forward.3} parent=5 // pred_check_branch
        %123 = sbr.rel (%p120) target = $region12
      $region11: #{up_forward.3} parent=5 // pred_region
        %s124 = ssub.s32 %s16, 1
        // Predicated region
        $region13: #{up_forward.3} parent=11 // pred_check
          %p125 = pneg %p63
        $region14: #{up_forward.3} parent=11 // pred_check_branch
          %127 = sbr.rel (%p125) target = $region16
        $region15: #{up_forward.3} parent=11 // pred_region
          %s129 = ssub.s32 128, 128
          %130 = vsyncadd [#allocation6], %s129
          %s131 = sshll.u32 [#allocation5], 4
          %s132 = int_to_ptr.vmem [resolvable:$true] %s131
          %137 = dma.hbm_to_vmem [thread:$0]  %s1, 128, %s132, [#allocation6], 32, 32, 2
        $region16: #{up_forward.3} parent=11 // pred_fallthru
          _
        // Predicated region
        $region17: #{up_forward.3} parent=11 // pred_check
          %p138 = pneg %p84
        $region18: #{up_forward.3} parent=11 // pred_check_branch
          %140 = sbr.rel (%p138) target = $region20
        $region19: #{up_forward.3} parent=11 // pred_region
          %s142 = ssub.s32 64, 64
          %143 = vsyncadd [#allocation6], %s142
          %s145 = sshll.u32 [#allocation7], 4
          %s146 = int_to_ptr.vmem [resolvable:$true] %s145
          %148 = dma.hbm_to_vmem [thread:$0]  %s2, 64, %s146, [#allocation6]
        $region20: #{up_forward.3} parent=11 // pred_fallthru
          _
      $region12: #{up_forward.3} parent=5 // pred_fallthru
        _
      %p149 = scmp.lt.s32.totalorder %s16, 2
      // Predicated region
      $region21: #{up_forward.3} parent=5 // pred_check
        %p150 = pneg %p149
      $region22: #{up_forward.3} parent=5 // pred_check_branch
        %152 = sbr.rel (%p150) target = $region24
      $region23: #{up_forward.3} parent=5 // pred_region
        // Predicated region
        $region25: #{up_forward.3} parent=23 // pred_check
          %p153 = pneg %p36
        $region26: #{up_forward.3} parent=23 // pred_check_branch
          %155 = sbr.rel (%p153) target = $region28
        $region27: #{up_forward.3} parent=23 // pred_region
          %s156 = sand.u32 %s26, 1
          %s157 = scalar_lea.sflag [#allocation3], %s156
          %s158 = sand.u32 %s26, 1
          %s159 = smul.addr %s158, 4
          %s160 = scalar_lea.vmem [#allocation2], %s159
          %s162 = ssub.s32 64, 64
          %163 = vsyncadd %s157, %s162
          %s164 = smul.addr %s16, 64
          %s165 = scalar_lea.hbm %s0, %s164
          %s167 = sshll.u32 %s160, 4
          %s168 = int_to_ptr.vmem [resolvable:$true] %s167
          %170 = dma.hbm_to_vmem [thread:$0]  %s165, 64, %s168, %s157
        $region28: #{up_forward.3} parent=23 // pred_fallthru
          _
      $region24: #{up_forward.3} parent=5 // pred_fallthru
        _
      %p171 = scmp.le.s32.totalorder 1, %s16
      %p172 = scmp.lt.s32.totalorder %s16, 3
      %p173 = pnand %p171, %p172
      %p174 = pneg %p173
      // Predicated region
      $region29: #{up_forward.3} parent=5 // pred_check
        _
      $region30: #{up_forward.3} parent=5 // pred_check_branch
        %176 = sbr.rel (%p173) target = $region32
      $region31: #{up_forward.3} parent=5 // pred_region
        %s177 = ssub.s32 %s16, 1
        %s178 = sand.u32 %s29, 1
        %s179 = scalar_lea.sflag [#allocation3], %s178
        %s180 = sand.u32 %s29, 1
        %s181 = smul.addr %s180, 4
        %s182 = scalar_lea.vmem [#allocation2], %s181
        // Predicated region
        $region33: #{up_forward.3} parent=31 // pred_check
          %p183 = pneg %p42
        $region34: #{up_forward.3} parent=31 // pred_check_branch
          %185 = sbr.rel (%p183) target = $region36
        $region35: #{up_forward.3} parent=31 // pred_region
          %186 = dma.done %s179, 64
        $region36: #{up_forward.3} parent=31 // pred_fallthru
          _
        // Predicated region
        $region37: #{up_forward.3} parent=31 // pred_check
          %p187 = pneg %p63
        $region38: #{up_forward.3} parent=31 // pred_check_branch
          %189 = sbr.rel (%p187) target = $region40
        $region39: #{up_forward.3} parent=31 // pred_region
          %190 = dma.done [#allocation6], 128
        $region40: #{up_forward.3} parent=31 // pred_fallthru
          _
        // Predicated region
        $region41: #{up_forward.3} parent=31 // pred_check
          %p191 = pneg %p84
        $region42: #{up_forward.3} parent=31 // pred_check_branch
          %193 = sbr.rel (%p191) target = $region44
        $region43: #{up_forward.3} parent=31 // pred_region
          %194 = dma.done [#allocation6], 64
        $region44: #{up_forward.3} parent=31 // pred_fallthru
          _
        %s195 = sand.u32 %s29, 1
        %s196 = scalar_lea.sflag [#allocation3], %s195
        %s197 = sand.u32 %s29, 1
        %s198 = smul.addr %s197, 4
        %s199 = scalar_lea.vmem [#allocation2], %s198
        %p200 = pneg %p42
        %p201 = pneg %p39
        %p202 = pneg %p63
        %p203 = pneg %p60
        %p204 = pneg %p84
        %p205 = pneg %p81
        %p206 = pneg %p110
        %p207 = pneg %p107
        %s208 = sand.u32 %s97, 1
        %s209 = scalar_lea.sflag [#allocation4], %s208
        %s210 = sand.u32 %s97, 1
        %s211 = smul.addr %s210, 8
        %s212 = scalar_lea.vmem [#allocation8], %s211
        %v214 = vld [vmem:[%s182] sm:$0xf]
        %v215 = vld [vmem:[#allocation5] sm:$0x3]
        %v216 = vld [vmem:[#allocation7] sm:$0xf]
        %218 = vset.pattern.permute.xlu0 0
        %219 = vperm.xlu0 %218, %v216
        %v220 = vpop.permute.xlu0 %219
        %vm222 = vcmask 64512
        %v224 = vsel %vm222, %v215, 0
        %vm226 = vcmask 1043456
        %v228 = vsel %vm226, %v214, 0
        %230 = vmatprep.subr.bf16.mxu0 0
        %231 = vmatpush1.bf16.msra.mxu0 %v228
        %232 = vmatprep.subr.bf16.mxu0 0
        %233 = vmatpush1.bf16.msra.mxu0 0
        %234 = vmatprep.subr.bf16.mxu0 0
        %235 = vmatpush1.bf16.msra.mxu0 0
        %236 = vmatprep.subr.bf16.mxu0 0
        %237 = vmatpush1.bf16.msra.mxu0 0
        %238 = vmatprep.subr.bf16.mxu0 0
        %239 = vmatpush1.bf16.msra.mxu0 0
        %240 = vmatprep.subr.bf16.mxu0 0
        %241 = vmatpush1.bf16.msra.mxu0 0
        %242 = vmatprep.subr.bf16.mxu0 0
        %243 = vmatpush1.bf16.msra.mxu0 0
        %244 = vmatprep.subr.bf16.mxu0 0
        %245 = vmatpush1.bf16.msra.mxu0 0
        %246 = vmatprep.subr.bf16.mxu0 0
        %247 = vmatpush1.bf16.msra.mxu0 0
        %248 = vmatprep.subr.bf16.mxu0 0
        %249 = vmatpush1.bf16.msra.mxu0 0
        %250 = vmatprep.subr.bf16.mxu0 0
        %251 = vmatpush1.bf16.msra.mxu0 0
        %252 = vmatprep.subr.bf16.mxu0 0
        %253 = vmatpush1.bf16.msra.mxu0 0
        %254 = vmatprep.subr.bf16.mxu0 0
        %255 = vmatpush1.bf16.msra.mxu0 0
        %256 = vmatprep.subr.bf16.mxu0 0
        %257 = vmatpush1.bf16.msra.mxu0 0
        %258 = vmatprep.subr.bf16.mxu0 0
        %259 = vmatpush1.bf16.msra.mxu0 0
        %260 = vmatprep.subr.bf16.mxu0 0
        %261 = vmatpush1.bf16.msra.mxu0 0
        %262 = vmatprep.mubr.bf16.mxu0 0
        %263 = vmatmul.mubr.bf16.gmra.mrb[0].mxu0 %v224
        %v264 = vpop.f32.mrb[0].mxu0
        %v265 = vadd.f32 %v220, %v264
        %v266 = vpop.f32.mrb[0].mxu0
        %v267 = vpop.f32.mrb[0].mxu0
        %v268 = vpop.f32.mrb[0].mxu0
        %269 = vdwg.mxu0
        %v270 = vpack.c.bf16 %v265, %v265
        %vm271 = vcmask 517120
        %272 = vst.msk [vmem:[%s212] sm:$0x3] %vm271, %v270
        %s273 = scalar_lea.vmem [#allocation5], 2
        %v274 = vld [vmem:[%s273] sm:$0x3]
        %v275 = vld [vmem:[#allocation7] sm:$0xf]
        %277 = vset.pattern.permute.xlu0 0
        %278 = vperm.xlu0 %277, %v275
        %v279 = vpop.permute.xlu0 %278
        %v282 = vsel %vm222, %v274, 0
        %284 = vmatprep.subr.bf16.mxu0 0
        %285 = vmatpush1.bf16.msra.mxu0 %v228
        %286 = vmatprep.subr.bf16.mxu0 0
        %287 = vmatpush1.bf16.msra.mxu0 0
        %288 = vmatprep.subr.bf16.mxu0 0
        %289 = vmatpush1.bf16.msra.mxu0 0
        %290 = vmatprep.subr.bf16.mxu0 0
        %291 = vmatpush1.bf16.msra.mxu0 0
        %292 = vmatprep.subr.bf16.mxu0 0
        %293 = vmatpush1.bf16.msra.mxu0 0
        %294 = vmatprep.subr.bf16.mxu0 0
        %295 = vmatpush1.bf16.msra.mxu0 0
        %296 = vmatprep.subr.bf16.mxu0 0
        %297 = vmatpush1.bf16.msra.mxu0 0
        %298 = vmatprep.subr.bf16.mxu0 0
        %299 = vmatpush1.bf16.msra.mxu0 0
        %300 = vmatprep.subr.bf16.mxu0 0
        %301 = vmatpush1.bf16.msra.mxu0 0
        %302 = vmatprep.subr.bf16.mxu0 0
        %303 = vmatpush1.bf16.msra.mxu0 0
        %304 = vmatprep.subr.bf16.mxu0 0
        %305 = vmatpush1.bf16.msra.mxu0 0
        %306 = vmatprep.subr.bf16.mxu0 0
        %307 = vmatpush1.bf16.msra.mxu0 0
        %308 = vmatprep.subr.bf16.mxu0 0
        %309 = vmatpush1.bf16.msra.mxu0 0
        %310 = vmatprep.subr.bf16.mxu0 0
        %311 = vmatpush1.bf16.msra.mxu0 0
        %312 = vmatprep.subr.bf16.mxu0 0
        %313 = vmatpush1.bf16.msra.mxu0 0
        %314 = vmatprep.subr.bf16.mxu0 0
        %315 = vmatpush1.bf16.msra.mxu0 0
        %316 = vmatprep.mubr.bf16.mxu0 0
        %317 = vmatmul.mubr.bf16.gmra.mrb[0].mxu0 %v282
        %v318 = vpop.f32.mrb[0].mxu0
        %v319 = vadd.f32 %v279, %v318
        %v320 = vpop.f32.mrb[0].mxu0
        %v321 = vpop.f32.mrb[0].mxu0
        %v322 = vpop.f32.mrb[0].mxu0
        %323 = vdwg.mxu0
        %v324 = vpack.c.bf16 %v319, %v319
        %s325 = scalar_lea.vmem %s212, 2 [#allocation8]
        %326 = vst.msk [vmem:[%s325] sm:$0x3] %vm271, %v324
        %s327 = scalar_lea.vmem [#allocation5], 4
        %v328 = vld [vmem:[%s327] sm:$0x3]
        %v329 = vld [vmem:[#allocation7] sm:$0xf]
        %331 = vset.pattern.permute.xlu0 0
        %332 = vperm.xlu0 %331, %v329
        %v333 = vpop.permute.xlu0 %332
        %v336 = vsel %vm222, %v328, 0
        %338 = vmatprep.subr.bf16.mxu0 0
        %339 = vmatpush1.bf16.msra.mxu0 %v228
        %340 = vmatprep.subr.bf16.mxu0 0
        %341 = vmatpush1.bf16.msra.mxu0 0
        %342 = vmatprep.subr.bf16.mxu0 0
        %343 = vmatpush1.bf16.msra.mxu0 0
        %344 = vmatprep.subr.bf16.mxu0 0
        %345 = vmatpush1.bf16.msra.mxu0 0
        %346 = vmatprep.subr.bf16.mxu0 0
        %347 = vmatpush1.bf16.msra.mxu0 0
        %348 = vmatprep.subr.bf16.mxu0 0
        %349 = vmatpush1.bf16.msra.mxu0 0
        %350 = vmatprep.subr.bf16.mxu0 0
        %351 = vmatpush1.bf16.msra.mxu0 0
        %352 = vmatprep.subr.bf16.mxu0 0
        %353 = vmatpush1.bf16.msra.mxu0 0
        %354 = vmatprep.subr.bf16.mxu0 0
        %355 = vmatpush1.bf16.msra.mxu0 0
        %356 = vmatprep.subr.bf16.mxu0 0
        %357 = vmatpush1.bf16.msra.mxu0 0
        %358 = vmatprep.subr.bf16.mxu0 0
        %359 = vmatpush1.bf16.msra.mxu0 0
        %360 = vmatprep.subr.bf16.mxu0 0
        %361 = vmatpush1.bf16.msra.mxu0 0
        %362 = vmatprep.subr.bf16.mxu0 0
        %363 = vmatpush1.bf16.msra.mxu0 0
        %364 = vmatprep.subr.bf16.mxu0 0
        %365 = vmatpush1.bf16.msra.mxu0 0
        %366 = vmatprep.subr.bf16.mxu0 0
        %367 = vmatpush1.bf16.msra.mxu0 0
        %368 = vmatprep.subr.bf16.mxu0 0
        %369 = vmatpush1.bf16.msra.mxu0 0
        %370 = vmatprep.mubr.bf16.mxu0 0
        %371 = vmatmul.mubr.bf16.gmra.mrb[0].mxu0 %v336
        %v372 = vpop.f32.mrb[0].mxu0
        %v373 = vadd.f32 %v333, %v372
        %v374 = vpop.f32.mrb[0].mxu0
        %v375 = vpop.f32.mrb[0].mxu0
        %v376 = vpop.f32.mrb[0].mxu0
        %377 = vdwg.mxu0
        %v378 = vpack.c.bf16 %v373, %v373
        %s379 = scalar_lea.vmem %s212, 4 [#allocation8]
        %380 = vst.msk [vmem:[%s379] sm:$0x3] %vm271, %v378
        %s381 = scalar_lea.vmem [#allocation5], 6
        %v382 = vld [vmem:[%s381] sm:$0x3]
        %v383 = vld [vmem:[#allocation7] sm:$0xf]
        %385 = vset.pattern.permute.xlu0 0
        %386 = vperm.xlu0 %385, %v383
        %v387 = vpop.permute.xlu0 %386
        %v390 = vsel %vm222, %v382, 0
        %392 = vmatprep.subr.bf16.mxu0 0
        %393 = vmatpush1.bf16.msra.mxu0 %v228
        %394 = vmatprep.subr.bf16.mxu0 0
        %395 = vmatpush1.bf16.msra.mxu0 0
        %396 = vmatprep.subr.bf16.mxu0 0
        %397 = vmatpush1.bf16.msra.mxu0 0
        %398 = vmatprep.subr.bf16.mxu0 0
        %399 = vmatpush1.bf16.msra.mxu0 0
        %400 = vmatprep.subr.bf16.mxu0 0
        %401 = vmatpush1.bf16.msra.mxu0 0
        %402 = vmatprep.subr.bf16.mxu0 0
        %403 = vmatpush1.bf16.msra.mxu0 0
        %404 = vmatprep.subr.bf16.mxu0 0
        %405 = vmatpush1.bf16.msra.mxu0 0
        %406 = vmatprep.subr.bf16.mxu0 0
        %407 = vmatpush1.bf16.msra.mxu0 0
        %408 = vmatprep.subr.bf16.mxu0 0
        %409 = vmatpush1.bf16.msra.mxu0 0
        %410 = vmatprep.subr.bf16.mxu0 0
        %411 = vmatpush1.bf16.msra.mxu0 0
        %412 = vmatprep.subr.bf16.mxu0 0
        %413 = vmatpush1.bf16.msra.mxu0 0
        %414 = vmatprep.subr.bf16.mxu0 0
        %415 = vmatpush1.bf16.msra.mxu0 0
        %416 = vmatprep.subr.bf16.mxu0 0
        %417 = vmatpush1.bf16.msra.mxu0 0
        %418 = vmatprep.subr.bf16.mxu0 0
        %419 = vmatpush1.bf16.msra.mxu0 0
        %420 = vmatprep.subr.bf16.mxu0 0
        %421 = vmatpush1.bf16.msra.mxu0 0
        %422 = vmatprep.subr.bf16.mxu0 0
        %423 = vmatpush1.bf16.msra.mxu0 0
        %424 = vmatprep.mubr.bf16.mxu0 0
        %425 = vmatmul.mubr.bf16.gmra.mrb[0].mxu0 %v390
        %v426 = vpop.f32.mrb[0].mxu0
        %v427 = vadd.f32 %v387, %v426
        %v428 = vpop.f32.mrb[0].mxu0
        %v429 = vpop.f32.mrb[0].mxu0
        %v430 = vpop.f32.mrb[0].mxu0
        %431 = vdwg.mxu0
        %v432 = vpack.c.bf16 %v427, %v427
        %s433 = scalar_lea.vmem %s212, 6 [#allocation8]
        %434 = vst.msk [vmem:[%s433] sm:$0x3] %vm271, %v432
        %s435 = sand.u32 %s97, 1
        %s436 = scalar_lea.sflag [#allocation4], %s435
        %s437 = sand.u32 %s97, 1
        %s438 = smul.addr %s437, 8
        %s439 = scalar_lea.vmem [#allocation8], %s438
        // Predicated region
        $region45: #{up_forward.3} parent=31 // pred_check
          %p440 = pneg %p107
        $region46: #{up_forward.3} parent=31 // pred_check_branch
          %442 = sbr.rel (%p440) target = $region48
        $region47: #{up_forward.3} parent=31 // pred_region
          %s444 = ssub.s32 128, 128
          %445 = vsyncadd %s436, %s444
          %s446 = smul.addr %s21, 4
          %s447 = smul.addr %s446, 32
          %s448 = scalar_lea.hbm %s3, %s447
          %s449 = sshll.u32 %s439, 4
          %s450 = int_to_ptr.vmem [resolvable:$true] %s449
          %455 = dma.vmem_to_hbm [thread:$0]  %s450, 128, %s448, %s436, 32, 32, 2
        $region48: #{up_forward.3} parent=31 // pred_fallthru
          _
      $region32: #{up_forward.3} parent=5 // pred_fallthru
        _
      %p456 = scmp.le.s32.totalorder 2, %s16
      // Predicated region
      $region49: #{up_forward.3} parent=5 // pred_check
        %p457 = pneg %p456
      $region50: #{up_forward.3} parent=5 // pred_check_branch
        %459 = sbr.rel (%p457) target = $region52
      $region51: #{up_forward.3} parent=5 // pred_region
        %s460 = ssub.s32 %s16, 2
        // Predicated region
        $region53: #{up_forward.3} parent=51 // pred_check
          %p461 = pneg %p113
        $region54: #{up_forward.3} parent=51 // pred_check_branch
          %463 = sbr.rel (%p461) target = $region56
        $region55: #{up_forward.3} parent=51 // pred_region
          %s464 = sand.u32 %s98, 1
          %s465 = scalar_lea.sflag [#allocation4], %s464
          %s466 = sand.u32 %s98, 1
          %s467 = smul.addr %s466, 8
          %s468 = scalar_lea.vmem [#allocation8], %s467
          %469 = dma.done %s465, 128
        $region56: #{up_forward.3} parent=51 // pred_fallthru
          _
      $region52: #{up_forward.3} parent=5 // pred_fallthru
        _
    $region6: #{up_forward.3} parent=1 // loop_footer
      %s20 = sadd.s32 1, %s16
    $region7: #{up_forward.3} parent=1 // loop_footer_branch
      %15 = sbr.rel target = $region3
    $region8: #{up_forward.3} parent=1 // loop_exit
      _
    %470 = vsyncpa [#allocation3], 1
    %s471 = scalar_lea.sflag [#allocation3], 1
    %472 = vsyncpa %s471, 1
    %473 = vsyncpa [#allocation6], 1
    %474 = vsyncpa [#allocation4], 1
    %s475 = scalar_lea.sflag [#allocation4], 1
    %476 = vsyncpa %s475, 1

// kernel: up_forward.5
$region0: #{up_forward.5}
  #allocation0 [shape = 'u32[]', space=smem, size = 0x4, offset = 0x4, fixed_abs, tag = 'smem constant byte address 0x4 - core index']
  #allocation1 [shape = 'u32[144,128]{1,0:T(1,128)}', space=vmem, size = 0x12000, scoped, tag = 'internal scratch']
  %s0 = inlined_call_operand.hbm [shape: bf16[2,8,256], index: 0, kind: input, shape index: {}]
  %s1 = inlined_call_operand.hbm [shape: bf16[9,8,8], index: 1, kind: input, shape index: {}]
  %s2 = inlined_call_operand.hbm [shape: s32[1,256], index: 2, kind: input, shape index: {}]
  %s3 = inlined_call_operand.hbm [shape: s32[1,256], index: 3, kind: input, shape index: {}]
  %s4 = inlined_call_operand.hbm [shape: f32[8,1], index: 4, kind: input, shape index: {}]
  %s5 = inlined_call_operand.hbm [shape: f32[8,1], index: 5, kind: input, shape index: {}]
  %s6 = inlined_call_operand.hbm [shape: bf16[2,8,256], index: 6, kind: output, shape index: {}]
  %s7 = sld [smem:[#allocation0]]
  $region81: #{up_forward.5} parent=0
    _
  %s9 = ssub.s32 1, %s7
  %s10 = scalar_select 0, %s9, %s7
  $region1: #{up_forward.5} parent=0
    #allocation2 [shape = 'u8[8192]{0}', space=vmem, size = 0x2000, scoped, tag = 'input window, operand 0']
    #allocation3 [shape = 's32[2]{0}', space=sflag, size = 0x8, scoped, tag = 'scoped memory for up_forward.5']
    #allocation4 [shape = 's32[2]{0}', space=sflag, size = 0x8, scoped, tag = 'scoped memory for up_forward.5']
    #allocation5 [shape = 'u8[18432]{0}', space=vmem, size = 0x4800, scoped, tag = 'input window, operand 1, single buffered']
    #allocation6 [shape = 's32[1]{0}', space=sflag, size = 0x4, scoped, tag = 'scoped memory for up_forward.5']
    #allocation7 [shape = 'u8[1024]{0}', space=vmem, size = 0x400, scoped, tag = 'input window, operand 2, single buffered']
    #allocation8 [shape = 'u8[1024]{0}', space=vmem, size = 0x400, scoped, tag = 'input window, operand 3, single buffered']
    #allocation9 [shape = 's32[1]{0}', space=sflag, size = 0x4, scoped, tag = 'scoped memory for up_forward.5']
    #allocation10 [shape = 'u8[4096]{0}', space=vmem, size = 0x1000, scoped, tag = 'input window, operand 4, single buffered']
    #allocation11 [shape = 'u8[4096]{0}', space=vmem, size = 0x1000, scoped, tag = 'input window, operand 5, single buffered']
    #allocation12 [shape = 's32[1]{0}', space=sflag, size = 0x4, scoped, tag = 'scoped memory for up_forward.5']
    #allocation13 [shape = 'u8[8192]{0}', space=vmem, size = 0x2000, scoped, tag = 'output window, operand 0']
    %11 = vsyncpa [#allocation3], 0
    %s12 = scalar_lea.sflag [#allocation3], 1
    %13 = vsyncpa %s12, 0
    %14 = vsyncpa [#allocation6], 0
    %15 = vsyncpa [#allocation9], 0
    %16 = vsyncpa [#allocation12], 0
    %17 = vsyncpa [#allocation4], 0
    %s18 = scalar_lea.sflag [#allocation4], 1
    %19 = vsyncpa %s18, 0
    loop: start=0, step=1, limit=4
    $region2: #{up_forward.5} parent=1 // loop_pre_header
      _
    $region3: #{up_forward.5} parent=1 // loop_header
      %s21 = sphi 0, %s25
      %p22 = scmp.ge.s32.totalorder %s21, 4
      %s31 = sphi 0, %s33
      %s34 = sphi 0, %s31
      %s35 = sphi 0, %s34
      %s51 = sphi 0, %s35
      %s55 = sphi 0, %s55
      %s57 = sphi 0, %s55
      %s58 = sphi 0, %s57
      %s72 = sphi 0, %s58
      %s76 = sphi 0, %s76
      %s78 = sphi 0, %s76
      %s79 = sphi 0, %s78
      %s93 = sphi 0, %s79
      %s97 = sphi 0, %s97
      %s99 = sphi 0, %s97
      %s100 = sphi 0, %s99
      %s114 = sphi 0, %s100
      %s118 = sphi 0, %s118
      %s120 = sphi 0, %s118
      %s121 = sphi 0, %s120
      %s135 = sphi 0, %s121
      %s139 = sphi 0, %s139
      %s141 = sphi 0, %s139
      %s142 = sphi 0, %s141
      %s156 = sphi 0, %s142
      %s162 = sphi 0, %s164
      %s165 = sphi 0, %s162
      %s166 = sphi 0, %s165
      %s182 = sphi 0, %s166
    $region4: #{up_forward.5} parent=1 // loop_header_branch
      %24 = sbr.rel (%p22) target = $region8
    $region5: #{up_forward.5} parent=1 // loop_body
      %s26 = ssub.s32 %s21, 1
      %s27 = ssub.s32 %s21, 2
      %s28 = sadd.s32 %s21, 1
      %s29 = ssub.s32 %s21, %s28
      %p30 = scmp.eq.s32.totalorder %s29, 0
      %s32 = sadd.s32 %s31, 1
      %s33 = scalar_select %p30, %s31, %s32
      %p36 = pneg %p30
      %p37 = scmp.eq.s32.totalorder %s21, 1
      %p38 = por %p36, %p37
      %p39 = scmp.ne.s32.totalorder %s31, %s34
      %p40 = scmp.eq.s32.totalorder %s21, 0
      %p41 = por %p39, %p40
      %p42 = scmp.ne.s32.totalorder %s31, %s34
      %p43 = scmp.eq.s32.totalorder %s26, 1
      %p44 = por %p42, %p43
      %p45 = scmp.ne.s32.totalorder %s34, %s35
      %p46 = scmp.eq.s32.totalorder %s26, 0
      %p47 = por %p45, %p46
      %p48 = scmp.ne.s32.totalorder %s34, %s35
      %p49 = scmp.eq.s32.totalorder %s27, 1
      %p50 = por %p48, %p49
      %p52 = scmp.ne.s32.totalorder %s35, %s51
      %p53 = scmp.eq.s32.totalorder %s27, 0
      %p54 = por %p52, %p53
      %s56 = sadd.s32 %s55, 1
      %p59 = scmp.eq.s32.totalorder %s21, 1
      %p60 = scmp.ne.s32.totalorder %s55, %s57
      %p61 = scmp.eq.s32.totalorder %s21, 0
      %p62 = por %p60, %p61
      %p63 = scmp.ne.s32.totalorder %s55, %s57
      %p64 = scmp.eq.s32.totalorder %s26, 1
      %p65 = por %p63, %p64
      %p66 = scmp.ne.s32.totalorder %s57, %s58
      %p67 = scmp.eq.s32.totalorder %s26, 0
      %p68 = por %p66, %p67
      %p69 = scmp.ne.s32.totalorder %s57, %s58
      %p70 = scmp.eq.s32.totalorder %s27, 1
      %p71 = por %p69, %p70
      %p73 = scmp.ne.s32.totalorder %s58, %s72
      %p74 = scmp.eq.s32.totalorder %s27, 0
      %p75 = por %p73, %p74
      %s77 = sadd.s32 %s76, 1
      %p80 = scmp.eq.s32.totalorder %s21, 1
      %p81 = scmp.ne.s32.totalorder %s76, %s78
      %p82 = scmp.eq.s32.totalorder %s21, 0
      %p83 = por %p81, %p82
      %p84 = scmp.ne.s32.totalorder %s76, %s78
      %p85 = scmp.eq.s32.totalorder %s26, 1
      %p86 = por %p84, %p85
      %p87 = scmp.ne.s32.totalorder %s78, %s79
      %p88 = scmp.eq.s32.totalorder %s26, 0
      %p89 = por %p87, %p88
      %p90 = scmp.ne.s32.totalorder %s78, %s79
      %p91 = scmp.eq.s32.totalorder %s27, 1
      %p92 = por %p90, %p91
      %p94 = scmp.ne.s32.totalorder %s79, %s93
      %p95 = scmp.eq.s32.totalorder %s27, 0
      %p96 = por %p94, %p95
      %s98 = sadd.s32 %s97, 1
      %p101 = scmp.eq.s32.totalorder %s21, 1
      %p102 = scmp.ne.s32.totalorder %s97, %s99
      %p103 = scmp.eq.s32.totalorder %s21, 0
      %p104 = por %p102, %p103
      %p105 = scmp.ne.s32.totalorder %s97, %s99
      %p106 = scmp.eq.s32.totalorder %s26, 1
      %p107 = por %p105, %p106
      %p108 = scmp.ne.s32.totalorder %s99, %s100
      %p109 = scmp.eq.s32.totalorder %s26, 0
      %p110 = por %p108, %p109
      %p111 = scmp.ne.s32.totalorder %s99, %s100
      %p112 = scmp.eq.s32.totalorder %s27, 1
      %p113 = por %p111, %p112
      %p115 = scmp.ne.s32.totalorder %s100, %s114
      %p116 = scmp.eq.s32.totalorder %s27, 0
      %p117 = por %p115, %p116
      %s119 = sadd.s32 %s118, 1
      %p122 = scmp.eq.s32.totalorder %s21, 1
      %p123 = scmp.ne.s32.totalorder %s118, %s120
      %p124 = scmp.eq.s32.totalorder %s21, 0
      %p125 = por %p123, %p124
      %p126 = scmp.ne.s32.totalorder %s118, %s120
      %p127 = scmp.eq.s32.totalorder %s26, 1
      %p128 = por %p126, %p127
      %p129 = scmp.ne.s32.totalorder %s120, %s121
      %p130 = scmp.eq.s32.totalorder %s26, 0
      %p131 = por %p129, %p130
      %p132 = scmp.ne.s32.totalorder %s120, %s121
      %p133 = scmp.eq.s32.totalorder %s27, 1
      %p134 = por %p132, %p133
      %p136 = scmp.ne.s32.totalorder %s121, %s135
      %p137 = scmp.eq.s32.totalorder %s27, 0
      %p138 = por %p136, %p137
      %s140 = sadd.s32 %s139, 1
      %p143 = scmp.eq.s32.totalorder %s21, 1
      %p144 = scmp.ne.s32.totalorder %s139, %s141
      %p145 = scmp.eq.s32.totalorder %s21, 0
      %p146 = por %p144, %p145
      %p147 = scmp.ne.s32.totalorder %s139, %s141
      %p148 = scmp.eq.s32.totalorder %s26, 1
      %p149 = por %p147, %p148
      %p150 = scmp.ne.s32.totalorder %s141, %s142
      %p151 = scmp.eq.s32.totalorder %s26, 0
      %p152 = por %p150, %p151
      %p153 = scmp.ne.s32.totalorder %s141, %s142
      %p154 = scmp.eq.s32.totalorder %s27, 1
      %p155 = por %p153, %p154
      %p157 = scmp.ne.s32.totalorder %s142, %s156
      %p158 = scmp.eq.s32.totalorder %s27, 0
      %p159 = por %p157, %p158
      %s160 = ssub.s32 %s21, %s28
      %p161 = scmp.eq.s32.totalorder %s160, 0
      %s163 = sadd.s32 %s162, 1
      %s164 = scalar_select %p161, %s162, %s163
      %p167 = pneg %p161
      %p168 = scmp.eq.s32.totalorder %s21, 1
      %p169 = por %p167, %p168
      %p170 = scmp.ne.s32.totalorder %s162, %s165
      %p171 = scmp.eq.s32.totalorder %s21, 0
      %p172 = por %p170, %p171
      %p173 = scmp.ne.s32.totalorder %s162, %s165
      %p174 = scmp.eq.s32.totalorder %s26, 1
      %p175 = por %p173, %p174
      %p176 = scmp.ne.s32.totalorder %s165, %s166
      %p177 = scmp.eq.s32.totalorder %s26, 0
      %p178 = por %p176, %p177
      %p179 = scmp.ne.s32.totalorder %s165, %s166
      %p180 = scmp.eq.s32.totalorder %s27, 1
      %p181 = por %p179, %p180
      %p183 = scmp.ne.s32.totalorder %s166, %s182
      %p184 = scmp.eq.s32.totalorder %s27, 0
      %p185 = por %p183, %p184
      %p186 = scmp.le.s32.totalorder 1, %s21
      %p187 = scmp.lt.s32.totalorder %s21, 3
      %p188 = pnand %p186, %p187
      %p189 = pneg %p188
      // Predicated region
      $region9: #{up_forward.5} parent=5 // pred_check
        _
      $region10: #{up_forward.5} parent=5 // pred_check_branch
        %191 = sbr.rel (%p188) target = $region12
      $region11: #{up_forward.5} parent=5 // pred_region
        %s192 = ssub.s32 %s21, 1
        // Predicated region
        $region13: #{up_forward.5} parent=11 // pred_check
          %p193 = pneg %p68
        $region14: #{up_forward.5} parent=11 // pred_check_branch
          %195 = sbr.rel (%p193) target = $region16
        $region15: #{up_forward.5} parent=11 // pred_region
          %s197 = ssub.s32 576, 576
          %198 = vsyncadd [#allocation6], %s197
          %s199 = sshll.u32 [#allocation5], 4
          %s200 = int_to_ptr.vmem [resolvable:$true] %s199
          %205 = dma.hbm_to_vmem [thread:$0]  %s1, 576, %s200, [#allocation6], 64, 64, 4
        $region16: #{up_forward.5} parent=11 // pred_fallthru
          _
        // Predicated region
        $region17: #{up_forward.5} parent=11 // pred_check
          %p206 = pneg %p89
        $region18: #{up_forward.5} parent=11 // pred_check_branch
          %208 = sbr.rel (%p206) target = $region20
        $region19: #{up_forward.5} parent=11 // pred_region
          %s210 = ssub.s32 32, 32
          %211 = vsyncadd [#allocation6], %s210
          %s213 = sshll.u32 [#allocation7], 4
          %s214 = int_to_ptr.vmem [resolvable:$true] %s213
          %216 = dma.hbm_to_vmem [thread:$0]  %s2, 32, %s214, [#allocation6]
        $region20: #{up_forward.5} parent=11 // pred_fallthru
          _
        // Predicated region
        $region21: #{up_forward.5} parent=11 // pred_check
          %p217 = pneg %p110
        $region22: #{up_forward.5} parent=11 // pred_check_branch
          %219 = sbr.rel (%p217) target = $region24
        $region23: #{up_forward.5} parent=11 // pred_region
          %s221 = ssub.s32 32, 32
          %222 = vsyncadd [#allocation9], %s221
          %s224 = sshll.u32 [#allocation8], 4
          %s225 = int_to_ptr.vmem [resolvable:$true] %s224
          %227 = dma.hbm_to_vmem [thread:$0]  %s3, 32, %s225, [#allocation9]
        $region24: #{up_forward.5} parent=11 // pred_fallthru
          _
        // Predicated region
        $region25: #{up_forward.5} parent=11 // pred_check
          %p228 = pneg %p131
        $region26: #{up_forward.5} parent=11 // pred_check_branch
          %230 = sbr.rel (%p228) target = $region28
        $region27: #{up_forward.5} parent=11 // pred_region
          %s232 = ssub.s32 128, 128
          %233 = vsyncadd [#allocation9], %s232
          %s235 = sshll.u32 [#allocation10], 4
          %s236 = int_to_ptr.vmem [resolvable:$true] %s235
          %238 = dma.hbm_to_vmem [thread:$0]  %s4, 128, %s236, [#allocation9]
        $region28: #{up_forward.5} parent=11 // pred_fallthru
          _
        // Predicated region
        $region29: #{up_forward.5} parent=11 // pred_check
          %p239 = pneg %p152
        $region30: #{up_forward.5} parent=11 // pred_check_branch
          %241 = sbr.rel (%p239) target = $region32
        $region31: #{up_forward.5} parent=11 // pred_region
          %s243 = ssub.s32 128, 128
          %244 = vsyncadd [#allocation12], %s243
          %s246 = sshll.u32 [#allocation11], 4
          %s247 = int_to_ptr.vmem [resolvable:$true] %s246
          %249 = dma.hbm_to_vmem [thread:$0]  %s5, 128, %s247, [#allocation12]
        $region32: #{up_forward.5} parent=11 // pred_fallthru
          _
      $region12: #{up_forward.5} parent=5 // pred_fallthru
        _
      %p250 = scmp.lt.s32.totalorder %s21, 2
      // Predicated region
      $region33: #{up_forward.5} parent=5 // pred_check
        %p251 = pneg %p250
      $region34: #{up_forward.5} parent=5 // pred_check_branch
        %253 = sbr.rel (%p251) target = $region36
      $region35: #{up_forward.5} parent=5 // pred_region
        // Predicated region
        $region37: #{up_forward.5} parent=35 // pred_check
          %p254 = pneg %p41
        $region38: #{up_forward.5} parent=35 // pred_check_branch
          %256 = sbr.rel (%p254) target = $region40
        $region39: #{up_forward.5} parent=35 // pred_region
          %s257 = sand.u32 %s31, 1
          %s258 = scalar_lea.sflag [#allocation3], %s257
          %s259 = sand.u32 %s31, 1
          %s260 = smul.addr %s259, 8
          %s261 = scalar_lea.vmem [#allocation2], %s260
          %s263 = ssub.s32 128, 128
          %264 = vsyncadd %s258, %s263
          %s265 = smul.addr %s21, 2
          %s266 = smul.addr %s265, 64
          %s267 = scalar_lea.hbm %s0, %s266
          %s269 = sshll.u32 %s261, 4
          %s270 = int_to_ptr.vmem [resolvable:$true] %s269
          %272 = dma.hbm_to_vmem [thread:$0]  %s267, 128, %s270, %s258
        $region40: #{up_forward.5} parent=35 // pred_fallthru
          _
      $region36: #{up_forward.5} parent=5 // pred_fallthru
        _
      %p273 = scmp.le.s32.totalorder 1, %s21
      %p274 = scmp.lt.s32.totalorder %s21, 3
      %p275 = pnand %p273, %p274
      %p276 = pneg %p275
      // Predicated region
      $region41: #{up_forward.5} parent=5 // pred_check
        _
      $region42: #{up_forward.5} parent=5 // pred_check_branch
        %278 = sbr.rel (%p275) target = $region44
      $region43: #{up_forward.5} parent=5 // pred_region
        %s279 = ssub.s32 %s21, 1
        %s280 = sand.u32 %s34, 1
        %s281 = scalar_lea.sflag [#allocation3], %s280
        %s282 = sand.u32 %s34, 1
        %s283 = smul.addr %s282, 8
        %s284 = scalar_lea.vmem [#allocation2], %s283
        // Predicated region
        $region45: #{up_forward.5} parent=43 // pred_check
          %p285 = pneg %p47
        $region46: #{up_forward.5} parent=43 // pred_check_branch
          %287 = sbr.rel (%p285) target = $region48
        $region47: #{up_forward.5} parent=43 // pred_region
          %288 = dma.done %s281, 128
        $region48: #{up_forward.5} parent=43 // pred_fallthru
          _
        // Predicated region
        $region49: #{up_forward.5} parent=43 // pred_check
          %p289 = pneg %p68
        $region50: #{up_forward.5} parent=43 // pred_check_branch
          %291 = sbr.rel (%p289) target = $region52
        $region51: #{up_forward.5} parent=43 // pred_region
          %292 = dma.done [#allocation6], 576
        $region52: #{up_forward.5} parent=43 // pred_fallthru
          _
        // Predicated region
        $region53: #{up_forward.5} parent=43 // pred_check
          %p293 = pneg %p89
        $region54: #{up_forward.5} parent=43 // pred_check_branch
          %295 = sbr.rel (%p293) target = $region56
        $region55: #{up_forward.5} parent=43 // pred_region
          %296 = dma.done [#allocation6], 32
        $region56: #{up_forward.5} parent=43 // pred_fallthru
          _
        // Predicated region
        $region57: #{up_forward.5} parent=43 // pred_check
          %p297 = pneg %p110
        $region58: #{up_forward.5} parent=43 // pred_check_branch
          %299 = sbr.rel (%p297) target = $region60
        $region59: #{up_forward.5} parent=43 // pred_region
          %300 = dma.done [#allocation9], 32
        $region60: #{up_forward.5} parent=43 // pred_fallthru
          _
        // Predicated region
        $region61: #{up_forward.5} parent=43 // pred_check
          %p301 = pneg %p131
        $region62: #{up_forward.5} parent=43 // pred_check_branch
          %303 = sbr.rel (%p301) target = $region64
        $region63: #{up_forward.5} parent=43 // pred_region
          %304 = dma.done [#allocation9], 128
        $region64: #{up_forward.5} parent=43 // pred_fallthru
          _
        // Predicated region
        $region65: #{up_forward.5} parent=43 // pred_check
          %p305 = pneg %p152
        $region66: #{up_forward.5} parent=43 // pred_check_branch
          %307 = sbr.rel (%p305) target = $region68
        $region67: #{up_forward.5} parent=43 // pred_region
          %308 = dma.done [#allocation12], 128
        $region68: #{up_forward.5} parent=43 // pred_fallthru
          _
        %s309 = sand.u32 %s34, 1
        %s310 = scalar_lea.sflag [#allocation3], %s309
        %s311 = sand.u32 %s34, 1
        %s312 = smul.addr %s311, 8
        %s313 = scalar_lea.vmem [#allocation2], %s312
        %p314 = pneg %p47
        %p315 = pneg %p44
        %p316 = pneg %p68
        %p317 = pneg %p65
        %p318 = pneg %p89
        %p319 = pneg %p86
        %p320 = pneg %p110
        %p321 = pneg %p107
        %p322 = pneg %p131
        %p323 = pneg %p128
        %p324 = pneg %p152
        %p325 = pneg %p149
        %p326 = pneg %p178
        %p327 = pneg %p175
        %s328 = sand.u32 %s165, 1
        %s329 = scalar_lea.sflag [#allocation4], %s328
        %s330 = sand.u32 %s165, 1
        %s331 = smul.addr %s330, 8
        %s332 = scalar_lea.vmem [#allocation13], %s331
        %v334 = vld [vmem:[%s284] sm:$0xff]
        %v335 = vld [vmem:[#allocation7] sm:$0x3]
        %v336 = vld [vmem:[#allocation8] sm:$0x3]
        %vm337 = vcmp.eq.s32.totalorder %v335, 0
        %vm338 = vcmp.eq.s32.totalorder %v335, 15
        %vm339 = vcmp.eq.s32.totalorder %v336, 0
        %vm340 = vcmp.eq.s32.totalorder %v336, 15
        %v341 = vld [vmem:[#allocation5] sm:$0xf]
        %v343 = vunpack.c.l.b16 %v334
        %v344 = vunpack.c.h.b16 %v334
        %v345 = vpack.c.b16 %v343, %v343
        %v346 = vpack.c.b16 %v344, %v344
        %vm347 = vcmask 64512
        %v349 = vsel %vm347, %v341, 0
        %vm351 = vcmask 1043456
        %v353 = vsel %vm351, %v345, 0
        %v356 = vsel %vm351, %v346, 0
        %358 = vmatprep.subr.bf16.mxu0 %v356
        %359 = vmatpush1.bf16.msra.mxu0 %v353
        %360 = vmatprep.subr.bf16.mxu0 0
        %361 = vmatpush1.bf16.msra.mxu0 0
        %362 = vmatprep.subr.bf16.mxu0 0
        %363 = vmatpush1.bf16.msra.mxu0 0
        %364 = vmatprep.subr.bf16.mxu0 0
        %365 = vmatpush1.bf16.msra.mxu0 0
        %366 = vmatprep.subr.bf16.mxu0 0
        %367 = vmatpush1.bf16.msra.mxu0 0
        %368 = vmatprep.subr.bf16.mxu0 0
        %369 = vmatpush1.bf16.msra.mxu0 0
        %370 = vmatprep.subr.bf16.mxu0 0
        %371 = vmatpush1.bf16.msra.mxu0 0
        %372 = vmatprep.subr.bf16.mxu0 0
        %373 = vmatpush1.bf16.msra.mxu0 0
        %374 = vmatprep.subr.bf16.mxu0 0
        %375 = vmatpush1.bf16.msra.mxu0 0
        %376 = vmatprep.subr.bf16.mxu0 0
        %377 = vmatpush1.bf16.msra.mxu0 0
        %378 = vmatprep.subr.bf16.mxu0 0
        %379 = vmatpush1.bf16.msra.mxu0 0
        %380 = vmatprep.subr.bf16.mxu0 0
        %381 = vmatpush1.bf16.msra.mxu0 0
        %382 = vmatprep.subr.bf16.mxu0 0
        %383 = vmatpush1.bf16.msra.mxu0 0
        %384 = vmatprep.subr.bf16.mxu0 0
        %385 = vmatpush1.bf16.msra.mxu0 0
        %386 = vmatprep.subr.bf16.mxu0 0
        %387 = vmatpush1.bf16.msra.mxu0 0
        %388 = vmatprep.subr.bf16.mxu0 0
        %389 = vmatpush1.bf16.msra.mxu0 0
        %390 = vmatprep.mubr.bf16.mxu0 0
        %391 = vmatmul.mubr.bf16.gmra.mrb[0].mxu0 %v349
        %v392 = vpop.f32.mrb[0].mxu0
        %v393 = vadd.f32 0.0, %v392
        %v394 = vpop.f32.mrb[0].mxu0
        %v395 = vadd.f32 0.0, %v394
        %v396 = vpop.f32.mrb[0].mxu0
        %v397 = vpop.f32.mrb[0].mxu0
        %398 = vdwg.mxu0
        %399 = vrot.lane.b32.xlu0 %v393, 17
        %v400 = vpop.permute.xlu0 %399
        %401 = vrot.lane.b32.xlu0 %v395, 17
        %v402 = vpop.permute.xlu0 %401
        %v403 = vlaneseq
        %v404 = vand.u32 %v403, 127
        %vm405 = vcmp.lt.s32.totalorder %v404, 17
        %v406 = vsel %vm405, %v400, %v402
        %v407 = vsel %vm405, %v402, %v400
        %vm408 = vmor %vm337, %vm339
        %v409 = vsel %vm408, 1, 0
        %v410 = vlaneseq
        %v411 = vshrl.u32 %v410, 7
        %v412 = vsub.s32 0, %v411
        %v413 = vrot.slane %v409, %v412
        %v414 = vlaneseq
        %v415 = vshrl.u32 %v414, 7
        %v416 = vsub.s32 1, %v415
        %v417 = vrot.slane %v409, %v416
        %vm418 = vcmp.eq.s32.totalorder %v413, 1
        %vm419 = vcmp.eq.s32.totalorder %v417, 1
        %v420 = vsel %vm418, 0.0, %v407
        %v421 = vsel %vm419, 0.0, %v406
        %v422 = vadd.f32 %v420, 0.0
        %v423 = vadd.f32 %v421, 0.0
        %s424 = scalar_lea.vmem [#allocation5], 4
        %v425 = vld [vmem:[%s424] sm:$0xf]
        %v427 = vsel %vm347, %v425, 0
        %429 = vmatprep.subr.bf16.mxu0 %v356
        %430 = vmatpush1.bf16.msra.mxu0 %v353
        %431 = vmatprep.subr.bf16.mxu0 0
        %432 = vmatpush1.bf16.msra.mxu0 0
        %433 = vmatprep.subr.bf16.mxu0 0
        %434 = vmatpush1.bf16.msra.mxu0 0
        %435 = vmatprep.subr.bf16.mxu0 0
        %436 = vmatpush1.bf16.msra.mxu0 0
        %437 = vmatprep.subr.bf16.mxu0 0
        %438 = vmatpush1.bf16.msra.mxu0 0
        %439 = vmatprep.subr.bf16.mxu0 0
        %440 = vmatpush1.bf16.msra.mxu0 0
        %441 = vmatprep.subr.bf16.mxu0 0
        %442 = vmatpush1.bf16.msra.mxu0 0
        %443 = vmatprep.subr.bf16.mxu0 0
        %444 = vmatpush1.bf16.msra.mxu0 0
        %445 = vmatprep.subr.bf16.mxu0 0
        %446 = vmatpush1.bf16.msra.mxu0 0
        %447 = vmatprep.subr.bf16.mxu0 0
        %448 = vmatpush1.bf16.msra.mxu0 0
        %449 = vmatprep.subr.bf16.mxu0 0
        %450 = vmatpush1.bf16.msra.mxu0 0
        %451 = vmatprep.subr.bf16.mxu0 0
        %452 = vmatpush1.bf16.msra.mxu0 0
        %453 = vmatprep.subr.bf16.mxu0 0
        %454 = vmatpush1.bf16.msra.mxu0 0
        %455 = vmatprep.subr.bf16.mxu0 0
        %456 = vmatpush1.bf16.msra.mxu0 0
        %457 = vmatprep.subr.bf16.mxu0 0
        %458 = vmatpush1.bf16.msra.mxu0 0
        %459 = vmatprep.subr.bf16.mxu0 0
        %460 = vmatpush1.bf16.msra.mxu0 0
        %461 = vmatprep.mubr.bf16.mxu0 0
        %462 = vmatmul.mubr.bf16.gmra.mrb[0].mxu0 %v427
        %v463 = vpop.f32.mrb[0].mxu0
        %v464 = vadd.f32 0.0, %v463
        %v465 = vpop.f32.mrb[0].mxu0
        %v466 = vadd.f32 0.0, %v465
        %v467 = vpop.f32.mrb[0].mxu0
        %v468 = vpop.f32.mrb[0].mxu0
        %469 = vdwg.mxu0
        %470 = vrot.lane.b32.xlu0 %v464, 16
        %v471 = vpop.permute.xlu0 %470
        %472 = vrot.lane.b32.xlu0 %v466, 16
        %v473 = vpop.permute.xlu0 %472
        %vm474 = vcmp.lt.s32.totalorder %v404, 16
        %v475 = vsel %vm474, %v471, %v473
        %v476 = vsel %vm474, %v473, %v471
        %v477 = vsel %vm337, 1, 0
        %v478 = vlaneseq
        %v479 = vshrl.u32 %v478, 7
        %v480 = vsub.s32 0, %v479
        %v481 = vrot.slane %v477, %v480
        %v482 = vlaneseq
        %v483 = vshrl.u32 %v482, 7
        %v484 = vsub.s32 1, %v483
        %v485 = vrot.slane %v477, %v484
        %vm486 = vcmp.eq.s32.totalorder %v481, 1
        %vm487 = vcmp.eq.s32.totalorder %v485, 1
        %v488 = vsel %vm486, 0.0, %v476
        %v489 = vsel %vm487, 0.0, %v475
        %v490 = vadd.f32 %v422, %v488
        %v491 = vadd.f32 %v423, %v489
        %s492 = scalar_lea.vmem [#allocation5], 8
        %v493 = vld [vmem:[%s492] sm:$0xf]
        %v495 = vsel %vm347, %v493, 0
        %497 = vmatprep.subr.bf16.mxu0 %v356
        %498 = vmatpush1.bf16.msra.mxu0 %v353
        %499 = vmatprep.subr.bf16.mxu0 0
        %500 = vmatpush1.bf16.msra.mxu0 0
        %501 = vmatprep.subr.bf16.mxu0 0
        %502 = vmatpush1.bf16.msra.mxu0 0
        %503 = vmatprep.subr.bf16.mxu0 0
        %504 = vmatpush1.bf16.msra.mxu0 0
        %505 = vmatprep.subr.bf16.mxu0 0
        %506 = vmatpush1.bf16.msra.mxu0 0
        %507 = vmatprep.subr.bf16.mxu0 0
        %508 = vmatpush1.bf16.msra.mxu0 0
        %509 = vmatprep.subr.bf16.mxu0 0
        %510 = vmatpush1.bf16.msra.mxu0 0
        %511 = vmatprep.subr.bf16.mxu0 0
        %512 = vmatpush1.bf16.msra.mxu0 0
        %513 = vmatprep.subr.bf16.mxu0 0
        %514 = vmatpush1.bf16.msra.mxu0 0
        %515 = vmatprep.subr.bf16.mxu0 0
        %516 = vmatpush1.bf16.msra.mxu0 0
        %517 = vmatprep.subr.bf16.mxu0 0
        %518 = vmatpush1.bf16.msra.mxu0 0
        %519 = vmatprep.subr.bf16.mxu0 0
        %520 = vmatpush1.bf16.msra.mxu0 0
        %521 = vmatprep.subr.bf16.mxu0 0
        %522 = vmatpush1.bf16.msra.mxu0 0
        %523 = vmatprep.subr.bf16.mxu0 0
        %524 = vmatpush1.bf16.msra.mxu0 0
        %525 = vmatprep.subr.bf16.mxu0 0
        %526 = vmatpush1.bf16.msra.mxu0 0
        %527 = vmatprep.subr.bf16.mxu0 0
        %528 = vmatpush1.bf16.msra.mxu0 0
        %529 = vmatprep.mubr.bf16.mxu0 0
        %530 = vmatmul.mubr.bf16.gmra.mrb[0].mxu0 %v495
        %v531 = vpop.f32.mrb[0].mxu0
        %v532 = vadd.f32 0.0, %v531
        %v533 = vpop.f32.mrb[0].mxu0
        %v534 = vadd.f32 0.0, %v533
        %v535 = vpop.f32.mrb[0].mxu0
        %v536 = vpop.f32.mrb[0].mxu0
        %537 = vdwg.mxu0
        %538 = vrot.lane.b32.xlu0 %v532, 15
        %v539 = vpop.permute.xlu0 %538
        %540 = vrot.lane.b32.xlu0 %v534, 15
        %v541 = vpop.permute.xlu0 %540
        %vm542 = vcmp.lt.s32.totalorder %v404, 15
        %v543 = vsel %vm542, %v539, %v541
        %v544 = vsel %vm542, %v541, %v539
        %vm545 = vmor %vm337, %vm340
        %v546 = vsel %vm545, 1, 0
        %v547 = vlaneseq
        %v548 = vshrl.u32 %v547, 7
        %v549 = vsub.s32 0, %v548
        %v550 = vrot.slane %v546, %v549
        %v551 = vlaneseq
        %v552 = vshrl.u32 %v551, 7
        %v553 = vsub.s32 1, %v552
        %v554 = vrot.slane %v546, %v553
        %vm555 = vcmp.eq.s32.totalorder %v550, 1
        %vm556 = vcmp.eq.s32.totalorder %v554, 1
        %v557 = vsel %vm555, 0.0, %v544
        %v558 = vsel %vm556, 0.0, %v543
        %v559 = vadd.f32 %v490, %v557
        %v560 = vadd.f32 %v491, %v558
        %s561 = scalar_lea.vmem [#allocation5], 12
        %v562 = vld [vmem:[%s561] sm:$0xf]
        %v564 = vsel %vm347, %v562, 0
        %566 = vmatprep.subr.bf16.mxu0 %v356
        %567 = vmatpush1.bf16.msra.mxu0 %v353
        %568 = vmatprep.subr.bf16.mxu0 0
        %569 = vmatpush1.bf16.msra.mxu0 0
        %570 = vmatprep.subr.bf16.mxu0 0
        %571 = vmatpush1.bf16.msra.mxu0 0
        %572 = vmatprep.subr.bf16.mxu0 0
        %573 = vmatpush1.bf16.msra.mxu0 0
        %574 = vmatprep.subr.bf16.mxu0 0
        %575 = vmatpush1.bf16.msra.mxu0 0
        %576 = vmatprep.subr.bf16.mxu0 0
        %577 = vmatpush1.bf16.msra.mxu0 0
        %578 = vmatprep.subr.bf16.mxu0 0
        %579 = vmatpush1.bf16.msra.mxu0 0
        %580 = vmatprep.subr.bf16.mxu0 0
        %581 = vmatpush1.bf16.msra.mxu0 0
        %582 = vmatprep.subr.bf16.mxu0 0
        %583 = vmatpush1.bf16.msra.mxu0 0
        %584 = vmatprep.subr.bf16.mxu0 0
        %585 = vmatpush1.bf16.msra.mxu0 0
        %586 = vmatprep.subr.bf16.mxu0 0
        %587 = vmatpush1.bf16.msra.mxu0 0
        %588 = vmatprep.subr.bf16.mxu0 0
        %589 = vmatpush1.bf16.msra.mxu0 0
        %590 = vmatprep.subr.bf16.mxu0 0
        %591 = vmatpush1.bf16.msra.mxu0 0
        %592 = vmatprep.subr.bf16.mxu0 0
        %593 = vmatpush1.bf16.msra.mxu0 0
        %594 = vmatprep.subr.bf16.mxu0 0
        %595 = vmatpush1.bf16.msra.mxu0 0
        %596 = vmatprep.subr.bf16.mxu0 0
        %597 = vmatpush1.bf16.msra.mxu0 0
        %598 = vmatprep.mubr.bf16.mxu0 0
        %599 = vmatmul.mubr.bf16.gmra.mrb[0].mxu0 %v564
        %v600 = vpop.f32.mrb[0].mxu0
        %v601 = vadd.f32 0.0, %v600
        %v602 = vpop.f32.mrb[0].mxu0
        %v603 = vadd.f32 0.0, %v602
        %v604 = vpop.f32.mrb[0].mxu0
        %v605 = vpop.f32.mrb[0].mxu0
        %606 = vdwg.mxu0
        %607 = vrot.lane.b32.xlu0 %v601, 1
        %v608 = vpop.permute.xlu0 %607
        %609 = vrot.lane.b32.xlu0 %v603, 1
        %v610 = vpop.permute.xlu0 %609
        %vm611 = vcmp.lt.s32.totalorder %v404, 1
        %v612 = vsel %vm611, %v608, %v610
        %v613 = vsel %vm611, %v610, %v608
        %v614 = vsel %vm339, 1, 0
        %v615 = vlaneseq
        %v616 = vshrl.u32 %v615, 7
        %v617 = vsub.s32 0, %v616
        %v618 = vrot.slane %v614, %v617
        %v619 = vlaneseq
        %v620 = vshrl.u32 %v619, 7
        %v621 = vsub.s32 1, %v620
        %v622 = vrot.slane %v614, %v621
        %vm623 = vcmp.eq.s32.totalorder %v618, 1
        %vm624 = vcmp.eq.s32.totalorder %v622, 1
        %v625 = vsel %vm623, 0.0, %v613
        %v626 = vsel %vm624, 0.0, %v612
        %v627 = vadd.f32 %v559, %v625
        %v628 = vadd.f32 %v560, %v626
        %s629 = scalar_lea.vmem [#allocation5], 16
        %v630 = vld [vmem:[%s629] sm:$0xf]
        %v632 = vsel %vm347, %v630, 0
        %634 = vmatprep.subr.bf16.mxu0 %v356
        %635 = vmatpush1.bf16.msra.mxu0 %v353
        %636 = vmatprep.subr.bf16.mxu0 0
        %637 = vmatpush1.bf16.msra.mxu0 0
        %638 = vmatprep.subr.bf16.mxu0 0
        %639 = vmatpush1.bf16.msra.mxu0 0
        %640 = vmatprep.subr.bf16.mxu0 0
        %641 = vmatpush1.bf16.msra.mxu0 0
        %642 = vmatprep.subr.bf16.mxu0 0
        %643 = vmatpush1.bf16.msra.mxu0 0
        %644 = vmatprep.subr.bf16.mxu0 0
        %645 = vmatpush1.bf16.msra.mxu0 0
        %646 = vmatprep.subr.bf16.mxu0 0
        %647 = vmatpush1.bf16.msra.mxu0 0
        %648 = vmatprep.subr.bf16.mxu0 0
        %649 = vmatpush1.bf16.msra.mxu0 0
        %650 = vmatprep.subr.bf16.mxu0 0
        %651 = vmatpush1.bf16.msra.mxu0 0
        %652 = vmatprep.subr.bf16.mxu0 0
        %653 = vmatpush1.bf16.msra.mxu0 0
        %654 = vmatprep.subr.bf16.mxu0 0
        %655 = vmatpush1.bf16.msra.mxu0 0
        %656 = vmatprep.subr.bf16.mxu0 0
        %657 = vmatpush1.bf16.msra.mxu0 0
        %658 = vmatprep.subr.bf16.mxu0 0
        %659 = vmatpush1.bf16.msra.mxu0 0
        %660 = vmatprep.subr.bf16.mxu0 0
        %661 = vmatpush1.bf16.msra.mxu0 0
        %662 = vmatprep.subr.bf16.mxu0 0
        %663 = vmatpush1.bf16.msra.mxu0 0
        %664 = vmatprep.subr.bf16.mxu0 0
        %665 = vmatpush1.bf16.msra.mxu0 0
        %666 = vmatprep.mubr.bf16.mxu0 0
        %667 = vmatmul.mubr.bf16.gmra.mrb[0].mxu0 %v632
        %v668 = vpop.f32.mrb[0].mxu0
        %v669 = vadd.f32 0.0, %v668
        %v670 = vpop.f32.mrb[0].mxu0
        %v671 = vadd.f32 0.0, %v670
        %v672 = vpop.f32.mrb[0].mxu0
        %v673 = vpop.f32.mrb[0].mxu0
        %674 = vdwg.mxu0
        %v675 = vadd.f32 %v627, %v669
        %v676 = vadd.f32 %v628, %v671
        %s677 = scalar_lea.vmem [#allocation5], 20
        %v678 = vld [vmem:[%s677] sm:$0xf]
        %v680 = vsel %vm347, %v678, 0
        %682 = vmatprep.subr.bf16.mxu0 %v356
        %683 = vmatpush1.bf16.msra.mxu0 %v353
        %684 = vmatprep.subr.bf16.mxu0 0
        %685 = vmatpush1.bf16.msra.mxu0 0
        %686 = vmatprep.subr.bf16.mxu0 0
        %687 = vmatpush1.bf16.msra.mxu0 0
        %688 = vmatprep.subr.bf16.mxu0 0
        %689 = vmatpush1.bf16.msra.mxu0 0
        %690 = vmatprep.subr.bf16.mxu0 0
        %691 = vmatpush1.bf16.msra.mxu0 0
        %692 = vmatprep.subr.bf16.mxu0 0
        %693 = vmatpush1.bf16.msra.mxu0 0
        %694 = vmatprep.subr.bf16.mxu0 0
        %695 = vmatpush1.bf16.msra.mxu0 0
        %696 = vmatprep.subr.bf16.mxu0 0
        %697 = vmatpush1.bf16.msra.mxu0 0
        %698 = vmatprep.subr.bf16.mxu0 0
        %699 = vmatpush1.bf16.msra.mxu0 0
        %700 = vmatprep.subr.bf16.mxu0 0
        %701 = vmatpush1.bf16.msra.mxu0 0
        %702 = vmatprep.subr.bf16.mxu0 0
        %703 = vmatpush1.bf16.msra.mxu0 0
        %704 = vmatprep.subr.bf16.mxu0 0
        %705 = vmatpush1.bf16.msra.mxu0 0
        %706 = vmatprep.subr.bf16.mxu0 0
        %707 = vmatpush1.bf16.msra.mxu0 0
        %708 = vmatprep.subr.bf16.mxu0 0
        %709 = vmatpush1.bf16.msra.mxu0 0
        %710 = vmatprep.subr.bf16.mxu0 0
        %711 = vmatpush1.bf16.msra.mxu0 0
        %712 = vmatprep.subr.bf16.mxu0 0
        %713 = vmatpush1.bf16.msra.mxu0 0
        %714 = vmatprep.mubr.bf16.mxu0 0
        %715 = vmatmul.mubr.bf16.gmra.mrb[0].mxu0 %v680
        %v716 = vpop.f32.mrb[0].mxu0
        %v717 = vadd.f32 0.0, %v716
        %v718 = vpop.f32.mrb[0].mxu0
        %v719 = vadd.f32 0.0, %v718
        %v720 = vpop.f32.mrb[0].mxu0
        %v721 = vpop.f32.mrb[0].mxu0
        %722 = vdwg.mxu0
        %723 = vrot.lane.b32.xlu0 %v717, 127
        %v724 = vpop.permute.xlu0 %723
        %725 = vrot.lane.b32.xlu0 %v719, 127
        %v726 = vpop.permute.xlu0 %725
        %vm727 = vcmp.lt.s32.totalorder %v404, 127
        %v728 = vsel %vm727, %v724, %v726
        %v729 = vsel %vm727, %v726, %v724
        %v730 = vsel %vm340, 1, 0
        %v731 = vlaneseq
        %v732 = vshrl.u32 %v731, 7
        %v733 = vsub.s32 0, %v732
        %v734 = vrot.slane %v730, %v733
        %v735 = vlaneseq
        %v736 = vshrl.u32 %v735, 7
        %v737 = vsub.s32 1, %v736
        %v738 = vrot.slane %v730, %v737
        %vm739 = vcmp.eq.s32.totalorder %v734, 1
        %vm740 = vcmp.eq.s32.totalorder %v738, 1
        %v741 = vsel %vm739, 0.0, %v728
        %v742 = vsel %vm740, 0.0, %v729
        %v743 = vadd.f32 %v675, %v741
        %v744 = vadd.f32 %v676, %v742
        %s745 = scalar_lea.vmem [#allocation5], 24
        %v746 = vld [vmem:[%s745] sm:$0xf]
        %v748 = vsel %vm347, %v746, 0
        %750 = vmatprep.subr.bf16.mxu0 %v356
        %751 = vmatpush1.bf16.msra.mxu0 %v353
        %752 = vmatprep.subr.bf16.mxu0 0
        %753 = vmatpush1.bf16.msra.mxu0 0
        %754 = vmatprep.subr.bf16.mxu0 0
        %755 = vmatpush1.bf16.msra.mxu0 0
        %756 = vmatprep.subr.bf16.mxu0 0
        %757 = vmatpush1.bf16.msra.mxu0 0
        %758 = vmatprep.subr.bf16.mxu0 0
        %759 = vmatpush1.bf16.msra.mxu0 0
        %760 = vmatprep.subr.bf16.mxu0 0
        %761 = vmatpush1.bf16.msra.mxu0 0
        %762 = vmatprep.subr.bf16.mxu0 0
        %763 = vmatpush1.bf16.msra.mxu0 0
        %764 = vmatprep.subr.bf16.mxu0 0
        %765 = vmatpush1.bf16.msra.mxu0 0
        %766 = vmatprep.subr.bf16.mxu0 0
        %767 = vmatpush1.bf16.msra.mxu0 0
        %768 = vmatprep.subr.bf16.mxu0 0
        %769 = vmatpush1.bf16.msra.mxu0 0
        %770 = vmatprep.subr.bf16.mxu0 0
        %771 = vmatpush1.bf16.msra.mxu0 0
        %772 = vmatprep.subr.bf16.mxu0 0
        %773 = vmatpush1.bf16.msra.mxu0 0
        %774 = vmatprep.subr.bf16.mxu0 0
        %775 = vmatpush1.bf16.msra.mxu0 0
        %776 = vmatprep.subr.bf16.mxu0 0
        %777 = vmatpush1.bf16.msra.mxu0 0
        %778 = vmatprep.subr.bf16.mxu0 0
        %779 = vmatpush1.bf16.msra.mxu0 0
        %780 = vmatprep.subr.bf16.mxu0 0
        %781 = vmatpush1.bf16.msra.mxu0 0
        %782 = vmatprep.mubr.bf16.mxu0 0
        %783 = vmatmul.mubr.bf16.gmra.mrb[0].mxu0 %v748
        %v784 = vpop.f32.mrb[0].mxu0
        %v785 = vadd.f32 0.0, %v784
        %v786 = vpop.f32.mrb[0].mxu0
        %v787 = vadd.f32 0.0, %v786
        %v788 = vpop.f32.mrb[0].mxu0
        %v789 = vpop.f32.mrb[0].mxu0
        %790 = vdwg.mxu0
        %791 = vrot.lane.b32.xlu0 %v785, 113
        %v792 = vpop.permute.xlu0 %791
        %793 = vrot.lane.b32.xlu0 %v787, 113
        %v794 = vpop.permute.xlu0 %793
        %vm795 = vcmp.lt.s32.totalorder %v404, 113
        %v796 = vsel %vm795, %v792, %v794
        %v797 = vsel %vm795, %v794, %v792
        %vm798 = vmor %vm338, %vm339
        %v799 = vsel %vm798, 1, 0
        %v800 = vlaneseq
        %v801 = vshrl.u32 %v800, 7
        %v802 = vsub.s32 0, %v801
        %v803 = vrot.slane %v799, %v802
        %v804 = vlaneseq
        %v805 = vshrl.u32 %v804, 7
        %v806 = vsub.s32 1, %v805
        %v807 = vrot.slane %v799, %v806
        %vm808 = vcmp.eq.s32.totalorder %v803, 1
        %vm809 = vcmp.eq.s32.totalorder %v807, 1
        %v810 = vsel %vm808, 0.0, %v796
        %v811 = vsel %vm809, 0.0, %v797
        %v812 = vadd.f32 %v743, %v810
        %v813 = vadd.f32 %v744, %v811
        %s814 = scalar_lea.vmem [#allocation5], 28
        %v815 = vld [vmem:[%s814] sm:$0xf]
        %v817 = vsel %vm347, %v815, 0
        %819 = vmatprep.subr.bf16.mxu0 %v356
        %820 = vmatpush1.bf16.msra.mxu0 %v353
        %821 = vmatprep.subr.bf16.mxu0 0
        %822 = vmatpush1.bf16.msra.mxu0 0
        %823 = vmatprep.subr.bf16.mxu0 0
        %824 = vmatpush1.bf16.msra.mxu0 0
        %825 = vmatprep.subr.bf16.mxu0 0
        %826 = vmatpush1.bf16.msra.mxu0 0
        %827 = vmatprep.subr.bf16.mxu0 0
        %828 = vmatpush1.bf16.msra.mxu0 0
        %829 = vmatprep.subr.bf16.mxu0 0
        %830 = vmatpush1.bf16.msra.mxu0 0
        %831 = vmatprep.subr.bf16.mxu0 0
        %832 = vmatpush1.bf16.msra.mxu0 0
        %833 = vmatprep.subr.bf16.mxu0 0
        %834 = vmatpush1.bf16.msra.mxu0 0
        %835 = vmatprep.subr.bf16.mxu0 0
        %836 = vmatpush1.bf16.msra.mxu0 0
        %837 = vmatprep.subr.bf16.mxu0 0
        %838 = vmatpush1.bf16.msra.mxu0 0
        %839 = vmatprep.subr.bf16.mxu0 0
        %840 = vmatpush1.bf16.msra.mxu0 0
        %841 = vmatprep.subr.bf16.mxu0 0
        %842 = vmatpush1.bf16.msra.mxu0 0
        %843 = vmatprep.subr.bf16.mxu0 0
        %844 = vmatpush1.bf16.msra.mxu0 0
        %845 = vmatprep.subr.bf16.mxu0 0
        %846 = vmatpush1.bf16.msra.mxu0 0
        %847 = vmatprep.subr.bf16.mxu0 0
        %848 = vmatpush1.bf16.msra.mxu0 0
        %849 = vmatprep.subr.bf16.mxu0 0
        %850 = vmatpush1.bf16.msra.mxu0 0
        %851 = vmatprep.mubr.bf16.mxu0 0
        %852 = vmatmul.mubr.bf16.gmra.mrb[0].mxu0 %v817
        %v853 = vpop.f32.mrb[0].mxu0
        %v854 = vadd.f32 0.0, %v853
        %v855 = vpop.f32.mrb[0].mxu0
        %v856 = vadd.f32 0.0, %v855
        %v857 = vpop.f32.mrb[0].mxu0
        %v858 = vpop.f32.mrb[0].mxu0
        %859 = vdwg.mxu0
        %860 = vrot.lane.b32.xlu0 %v854, 112
        %v861 = vpop.permute.xlu0 %860
        %862 = vrot.lane.b32.xlu0 %v856, 112
        %v863 = vpop.permute.xlu0 %862
        %vm864 = vcmp.lt.s32.totalorder %v404, 112
        %v865 = vsel %vm864, %v861, %v863
        %v866 = vsel %vm864, %v863, %v861
        %v867 = vsel %vm338, 1, 0
        %v868 = vlaneseq
        %v869 = vshrl.u32 %v868, 7
        %v870 = vsub.s32 0, %v869
        %v871 = vrot.slane %v867, %v870
        %v872 = vlaneseq
        %v873 = vshrl.u32 %v872, 7
        %v874 = vsub.s32 1, %v873
        %v875 = vrot.slane %v867, %v874
        %vm876 = vcmp.eq.s32.totalorder %v871, 1
        %vm877 = vcmp.eq.s32.totalorder %v875, 1
        %v878 = vsel %vm876, 0.0, %v865
        %v879 = vsel %vm877, 0.0, %v866
        %v880 = vadd.f32 %v812, %v878
        %v881 = vadd.f32 %v813, %v879
        %s882 = scalar_lea.vmem [#allocation5], 32
        %v883 = vld [vmem:[%s882] sm:$0xf]
        %v885 = vsel %vm347, %v883, 0
        %887 = vmatprep.subr.bf16.mxu0 %v356
        %888 = vmatpush1.bf16.msra.mxu0 %v353
        %889 = vmatprep.subr.bf16.mxu0 0
        %890 = vmatpush1.bf16.msra.mxu0 0
        %891 = vmatprep.subr.bf16.mxu0 0
        %892 = vmatpush1.bf16.msra.mxu0 0
        %893 = vmatprep.subr.bf16.mxu0 0
        %894 = vmatpush1.bf16.msra.mxu0 0
        %895 = vmatprep.subr.bf16.mxu0 0
        %896 = vmatpush1.bf16.msra.mxu0 0
        %897 = vmatprep.subr.bf16.mxu0 0
        %898 = vmatpush1.bf16.msra.mxu0 0
        %899 = vmatprep.subr.bf16.mxu0 0
        %900 = vmatpush1.bf16.msra.mxu0 0
        %901 = vmatprep.subr.bf16.mxu0 0
        %902 = vmatpush1.bf16.msra.mxu0 0
        %903 = vmatprep.subr.bf16.mxu0 0
        %904 = vmatpush1.bf16.msra.mxu0 0
        %905 = vmatprep.subr.bf16.mxu0 0
        %906 = vmatpush1.bf16.msra.mxu0 0
        %907 = vmatprep.subr.bf16.mxu0 0
        %908 = vmatpush1.bf16.msra.mxu0 0
        %909 = vmatprep.subr.bf16.mxu0 0
        %910 = vmatpush1.bf16.msra.mxu0 0
        %911 = vmatprep.subr.bf16.mxu0 0
        %912 = vmatpush1.bf16.msra.mxu0 0
        %913 = vmatprep.subr.bf16.mxu0 0
        %914 = vmatpush1.bf16.msra.mxu0 0
        %915 = vmatprep.subr.bf16.mxu0 0
        %916 = vmatpush1.bf16.msra.mxu0 0
        %917 = vmatprep.subr.bf16.mxu0 0
        %918 = vmatpush1.bf16.msra.mxu0 0
        %919 = vmatprep.mubr.bf16.mxu0 0
        %920 = vmatmul.mubr.bf16.gmra.mrb[0].mxu0 %v885
        %v921 = vpop.f32.mrb[0].mxu0
        %v922 = vadd.f32 0.0, %v921
        %v923 = vpop.f32.mrb[0].mxu0
        %v924 = vadd.f32 0.0, %v923
        %v925 = vpop.f32.mrb[0].mxu0
        %v926 = vpop.f32.mrb[0].mxu0
        %927 = vdwg.mxu0
        %928 = vrot.lane.b32.xlu0 %v922, 111
        %v929 = vpop.permute.xlu0 %928
        %930 = vrot.lane.b32.xlu0 %v924, 111
        %v931 = vpop.permute.xlu0 %930
        %vm932 = vcmp.lt.s32.totalorder %v404, 111
        %v933 = vsel %vm932, %v929, %v931
        %v934 = vsel %vm932, %v931, %v929
        %vm935 = vmor %vm338, %vm340
        %v936 = vsel %vm935, 1, 0
        %v937 = vlaneseq
        %v938 = vshrl.u32 %v937, 7
        %v939 = vsub.s32 0, %v938
        %v940 = vrot.slane %v936, %v939
        %v941 = vlaneseq
        %v942 = vshrl.u32 %v941, 7
        %v943 = vsub.s32 1, %v942
        %v944 = vrot.slane %v936, %v943
        %vm945 = vcmp.eq.s32.totalorder %v940, 1
        %vm946 = vcmp.eq.s32.totalorder %v944, 1
        %v947 = vsel %vm945, 0.0, %v933
        %v948 = vsel %vm946, 0.0, %v934
        %v949 = vadd.f32 %v880, %v947
        %v950 = vadd.f32 %v881, %v948
        %v951 = vld [vmem:[#allocation10] sm:$0xff]
        %953 = vset.pattern.permute.xlu0 0
        %954 = vperm.xlu0 %953, %v951
        %v955 = vpop.permute.xlu0 %954
        %v957 = vmul.f32 %v949, %v955
        %v958 = vmul.f32 %v950, %v955
        %v959 = vld [vmem:[#allocation11] sm:$0xff]
        %961 = vset.pattern.permute.xlu0 0
        %962 = vperm.xlu0 %961, %v959
        %v963 = vpop.permute.xlu0 %962
        %v965 = vadd.f32 %v957, %v963
        %v966 = vadd.f32 %v958, %v963
        %v967 = vmul.f32 %v965, 0.1
        %v968 = vmul.f32 %v966, 0.1
        %v969 = vmax.f32 %v965, %v967
        %v970 = vmax.f32 %v966, %v968
        %v971 = vpack.c.bf16 %v969, %v969
        %v972 = vpack.c.bf16 %v970, %v970
        %v975 = vunpack.c.l.b16 %v971
        %v976 = vunpack.c.l.b16 %v972
        %v977 = vpack.c.b16 %v976, %v975
        %979 = vst [vmem:[%s332] sm:$0xff] %v977
        %s980 = sand.u32 %s165, 1
        %s981 = scalar_lea.sflag [#allocation4], %s980
        %s982 = sand.u32 %s165, 1
        %s983 = smul.addr %s982, 8
        %s984 = scalar_lea.vmem [#allocation13], %s983
        // Predicated region
        $region69: #{up_forward.5} parent=43 // pred_check
          %p985 = pneg %p175
        $region70: #{up_forward.5} parent=43 // pred_check_branch
          %987 = sbr.rel (%p985) target = $region72
        $region71: #{up_forward.5} parent=43 // pred_region
          %s989 = ssub.s32 128, 128
          %990 = vsyncadd %s981, %s989
          %s991 = smul.addr %s26, 2
          %s992 = smul.addr %s991, 64
          %s993 = scalar_lea.hbm %s6, %s992
          %s995 = sshll.u32 %s984, 4
          %s996 = int_to_ptr.vmem [resolvable:$true] %s995
          %998 = dma.vmem_to_hbm [thread:$0]  %s996, 128, %s993, %s981
        $region72: #{up_forward.5} parent=43 // pred_fallthru
          _
      $region44: #{up_forward.5} parent=5 // pred_fallthru
        _
      %p999 = scmp.le.s32.totalorder 2, %s21
      // Predicated region
      $region73: #{up_forward.5} parent=5 // pred_check
        %p1000 = pneg %p999
      $region74: #{up_forward.5} parent=5 // pred_check_branch
        %1002 = sbr.rel (%p1000) target = $region76
      $region75: #{up_forward.5} parent=5 // pred_region
        %s1003 = ssub.s32 %s21, 2
        // Predicated region
        $region77: #{up_forward.5} parent=75 // pred_check
          %p1004 = pneg %p181
        $region78: #{up_forward.5} parent=75 // pred_check_branch
          %1006 = sbr.rel (%p1004) target = $region80
        $region79: #{up_forward.5} parent=75 // pred_region
          %s1007 = sand.u32 %s166, 1
          %s1008 = scalar_lea.sflag [#allocation4], %s1007
          %s1009 = sand.u32 %s166, 1
          %s1010 = smul.addr %s1009, 8
          %s1011 = scalar_lea.vmem [#allocation13], %s1010
          %1012 = dma.done %s1008, 128
        $region80: #{up_forward.5} parent=75 // pred_fallthru
          _
      $region76: #{up_forward.5} parent=5 // pred_fallthru
        _
    $region6: #{up_forward.5} parent=1 // loop_footer
      %s25 = sadd.s32 1, %s21
    $region7: #{up_forward.5} parent=1 // loop_footer_branch
      %20 = sbr.rel target = $region3
    $region8: #{up_forward.5} parent=1 // loop_exit
      _
    %1013 = vsyncpa [#allocation3], 1
    %s1014 = scalar_lea.sflag [#allocation3], 1
    %1015 = vsyncpa %s1014, 1
    %1016 = vsyncpa [#allocation6], 1
    %1017 = vsyncpa [#allocation9], 1
    %1018 = vsyncpa [#allocation12], 1
    %1019 = vsyncpa [#allocation4], 1
    %s1020 = scalar_lea.sflag [#allocation4], 1
    %1021 = vsyncpa %s1020, 1

// kernel: up_forward.4
$region0: #{up_forward.4}
  #allocation0 [shape = 'u32[]', space=smem, size = 0x4, offset = 0x4, fixed_abs, tag = 'smem constant byte address 0x4 - core index']
  #allocation1 [shape = 'u32[144,128]{1,0:T(1,128)}', space=vmem, size = 0x12000, scoped, tag = 'internal scratch']
  %s0 = inlined_call_operand.hbm [shape: bf16[2,4,256], index: 0, kind: input, shape index: {}]
  %s1 = inlined_call_operand.hbm [shape: bf16[2,4,256], index: 1, kind: input, shape index: {}]
  %s2 = inlined_call_operand.hbm [shape: bf16[9,8,4], index: 2, kind: input, shape index: {}]
  %s3 = inlined_call_operand.hbm [shape: bf16[9,8,4], index: 3, kind: input, shape index: {}]
  %s4 = inlined_call_operand.hbm [shape: s32[1,256], index: 4, kind: input, shape index: {}]
  %s5 = inlined_call_operand.hbm [shape: s32[1,256], index: 5, kind: input, shape index: {}]
  %s6 = inlined_call_operand.hbm [shape: f32[8,1], index: 6, kind: input, shape index: {}]
  %s7 = inlined_call_operand.hbm [shape: f32[8,1], index: 7, kind: input, shape index: {}]
  %s8 = inlined_call_operand.hbm [shape: bf16[2,8,256], index: 8, kind: output, shape index: {}]
  %s9 = sld [smem:[#allocation0]]
  $region97: #{up_forward.4} parent=0
    _
  %s11 = ssub.s32 1, %s9
  %s12 = scalar_select 0, %s11, %s9
  $region1: #{up_forward.4} parent=0
    #allocation2 [shape = 'u8[4096]{0}', space=vmem, size = 0x1000, scoped, tag = 'input window, operand 0']
    #allocation3 [shape = 's32[2]{0}', space=sflag, size = 0x8, scoped, tag = 'scoped memory for up_forward.4']
    #allocation4 [shape = 's32[2]{0}', space=sflag, size = 0x8, scoped, tag = 'scoped memory for up_forward.4']
    #allocation5 [shape = 'u8[4096]{0}', space=vmem, size = 0x1000, scoped, tag = 'input window, operand 1']
    #allocation6 [shape = 's32[2]{0}', space=sflag, size = 0x8, scoped, tag = 'scoped memory for up_forward.4']
    #allocation7 [shape = 'u8[18432]{0}', space=vmem, size = 0x4800, scoped, tag = 'input window, operand 2, single buffered']
    #allocation8 [shape = 'u8[18432]{0}', space=vmem, size = 0x4800, scoped, tag = 'input window, operand 3, single buffered']
    #allocation9 [shape = 's32[1]{0}', space=sflag, size = 0x4, scoped, tag = 'scoped memory for up_forward.4']
    #allocation10 [shape = 'u8[1024]{0}', space=vmem, size = 0x400, scoped, tag = 'input window, operand 4, single buffered']
    #allocation11 [shape = 'u8[1024]{0}', space=vmem, size = 0x400, scoped, tag = 'input window, operand 5, single buffered']
    #allocation12 [shape = 's32[1]{0}', space=sflag, size = 0x4, scoped, tag = 'scoped memory for up_forward.4']
    #allocation13 [shape = 'u8[4096]{0}', space=vmem, size = 0x1000, scoped, tag = 'input window, operand 6, single buffered']
    #allocation14 [shape = 'u8[4096]{0}', space=vmem, size = 0x1000, scoped, tag = 'input window, operand 7, single buffered']
    #allocation15 [shape = 's32[1]{0}', space=sflag, size = 0x4, scoped, tag = 'scoped memory for up_forward.4']
    #allocation16 [shape = 'u8[8192]{0}', space=vmem, size = 0x2000, scoped, tag = 'output window, operand 0']
    %13 = vsyncpa [#allocation3], 0
    %s14 = scalar_lea.sflag [#allocation3], 1
    %15 = vsyncpa %s14, 0
    %16 = vsyncpa [#allocation6], 0
    %s17 = scalar_lea.sflag [#allocation6], 1
    %18 = vsyncpa %s17, 0
    %19 = vsyncpa [#allocation9], 0
    %20 = vsyncpa [#allocation12], 0
    %21 = vsyncpa [#allocation15], 0
    %22 = vsyncpa [#allocation4], 0
    %s23 = scalar_lea.sflag [#allocation4], 1
    %24 = vsyncpa %s23, 0
    loop: start=0, step=1, limit=4
    $region2: #{up_forward.4} parent=1 // loop_pre_header
      _
    $region3: #{up_forward.4} parent=1 // loop_header
      %s26 = sphi 0, %s30
      %p27 = scmp.ge.s32.totalorder %s26, 4
      %s36 = sphi 0, %s38
      %s39 = sphi 0, %s36
      %s40 = sphi 0, %s39
      %s56 = sphi 0, %s40
      %s62 = sphi 0, %s64
      %s65 = sphi 0, %s62
      %s66 = sphi 0, %s65
      %s82 = sphi 0, %s66
      %s86 = sphi 0, %s86
      %s88 = sphi 0, %s86
      %s89 = sphi 0, %s88
      %s103 = sphi 0, %s89
      %s107 = sphi 0, %s107
      %s109 = sphi 0, %s107
      %s110 = sphi 0, %s109
      %s124 = sphi 0, %s110
      %s128 = sphi 0, %s128
      %s130 = sphi 0, %s128
      %s131 = sphi 0, %s130
      %s145 = sphi 0, %s131
      %s149 = sphi 0, %s149
      %s151 = sphi 0, %s149
      %s152 = sphi 0, %s151
      %s166 = sphi 0, %s152
      %s170 = sphi 0, %s170
      %s172 = sphi 0, %s170
      %s173 = sphi 0, %s172
      %s187 = sphi 0, %s173
      %s191 = sphi 0, %s191
      %s193 = sphi 0, %s191
      %s194 = sphi 0, %s193
      %s208 = sphi 0, %s194
      %s214 = sphi 0, %s216
      %s217 = sphi 0, %s214
      %s218 = sphi 0, %s217
      %s234 = sphi 0, %s218
    $region4: #{up_forward.4} parent=1 // loop_header_branch
      %29 = sbr.rel (%p27) target = $region8
    $region5: #{up_forward.4} parent=1 // loop_body
      %s31 = ssub.s32 %s26, 1
      %s32 = ssub.s32 %s26, 2
      %s33 = sadd.s32 %s26, 1
      %s34 = ssub.s32 %s26, %s33
      %p35 = scmp.eq.s32.totalorder %s34, 0
      %s37 = sadd.s32 %s36, 1
      %s38 = scalar_select %p35, %s36, %s37
      %p41 = pneg %p35
      %p42 = scmp.eq.s32.totalorder %s26, 1
      %p43 = por %p41, %p42
      %p44 = scmp.ne.s32.totalorder %s36, %s39
      %p45 = scmp.eq.s32.totalorder %s26, 0
      %p46 = por %p44, %p45
      %p47 = scmp.ne.s32.totalorder %s36, %s39
      %p48 = scmp.eq.s32.totalorder %s31, 1
      %p49 = por %p47, %p48
      %p50 = scmp.ne.s32.totalorder %s39, %s40
      %p51 = scmp.eq.s32.totalorder %s31, 0
      %p52 = por %p50, %p51
      %p53 = scmp.ne.s32.totalorder %s39, %s40
      %p54 = scmp.eq.s32.totalorder %s32, 1
      %p55 = por %p53, %p54
      %p57 = scmp.ne.s32.totalorder %s40, %s56
      %p58 = scmp.eq.s32.totalorder %s32, 0
      %p59 = por %p57, %p58
      %s60 = ssub.s32 %s26, %s33
      %p61 = scmp.eq.s32.totalorder %s60, 0
      %s63 = sadd.s32 %s62, 1
      %s64 = scalar_select %p61, %s62, %s63
      %p67 = pneg %p61
      %p68 = scmp.eq.s32.totalorder %s26, 1
      %p69 = por %p67, %p68
      %p70 = scmp.ne.s32.totalorder %s62, %s65
      %p71 = scmp.eq.s32.totalorder %s26, 0
      %p72 = por %p70, %p71
      %p73 = scmp.ne.s32.totalorder %s62, %s65
      %p74 = scmp.eq.s32.totalorder %s31, 1
      %p75 = por %p73, %p74
      %p76 = scmp.ne.s32.totalorder %s65, %s66
      %p77 = scmp.eq.s32.totalorder %s31, 0
      %p78 = por %p76, %p77
      %p79 = scmp.ne.s32.totalorder %s65, %s66
      %p80 = scmp.eq.s32.totalorder %s32, 1
      %p81 = por %p79, %p80
      %p83 = scmp.ne.s32.totalorder %s66, %s82
      %p84 = scmp.eq.s32.totalorder %s32, 0
      %p85 = por %p83, %p84
      %s87 = sadd.s32 %s86, 1
      %p90 = scmp.eq.s32.totalorder %s26, 1
      %p91 = scmp.ne.s32.totalorder %s86, %s88
      %p92 = scmp.eq.s32.totalorder %s26, 0
      %p93 = por %p91, %p92
      %p94 = scmp.ne.s32.totalorder %s86, %s88
      %p95 = scmp.eq.s32.totalorder %s31, 1
      %p96 = por %p94, %p95
      %p97 = scmp.ne.s32.totalorder %s88, %s89
      %p98 = scmp.eq.s32.totalorder %s31, 0
      %p99 = por %p97, %p98
      %p100 = scmp.ne.s32.totalorder %s88, %s89
      %p101 = scmp.eq.s32.totalorder %s32, 1
      %p102 = por %p100, %p101
      %p104 = scmp.ne.s32.totalorder %s89, %s103
      %p105 = scmp.eq.s32.totalorder %s32, 0
      %p106 = por %p104, %p105
      %s108 = sadd.s32 %s107, 1
      %p111 = scmp.eq.s32.totalorder %s26, 1
      %p112 = scmp.ne.s32.totalorder %s107, %s109
      %p113 = scmp.eq.s32.totalorder %s26, 0
      %p114 = por %p112, %p113
      %p115 = scmp.ne.s32.totalorder %s107, %s109
      %p116 = scmp.eq.s32.totalorder %s31, 1
      %p117 = por %p115, %p116
      %p118 = scmp.ne.s32.totalorder %s109, %s110
      %p119 = scmp.eq.s32.totalorder %s31, 0
      %p120 = por %p118, %p119
      %p121 = scmp.ne.s32.totalorder %s109, %s110
      %p122 = scmp.eq.s32.totalorder %s32, 1
      %p123 = por %p121, %p122
      %p125 = scmp.ne.s32.totalorder %s110, %s124
      %p126 = scmp.eq.s32.totalorder %s32, 0
      %p127 = por %p125, %p126
      %s129 = sadd.s32 %s128, 1
      %p132 = scmp.eq.s32.totalorder %s26, 1
      %p133 = scmp.ne.s32.totalorder %s128, %s130
      %p134 = scmp.eq.s32.totalorder %s26, 0
      %p135 = por %p133, %p134
      %p136 = scmp.ne.s32.totalorder %s128, %s130
      %p137 = scmp.eq.s32.totalorder %s31, 1
      %p138 = por %p136, %p137
      %p139 = scmp.ne.s32.totalorder %s130, %s131
      %p140 = scmp.eq.s32.totalorder %s31, 0
      %p141 = por %p139, %p140
      %p142 = scmp.ne.s32.totalorder %s130, %s131
      %p143 = scmp.eq.s32.totalorder %s32, 1
      %p144 = por %p142, %p143
      %p146 = scmp.ne.s32.totalorder %s131, %s145
      %p147 = scmp.eq.s32.totalorder %s32, 0
      %p148 = por %p146, %p147
      %s150 = sadd.s32 %s149, 1
      %p153 = scmp.eq.s32.totalorder %s26, 1
      %p154 = scmp.ne.s32.totalorder %s149, %s151
      %p155 = scmp.eq.s32.totalorder %s26, 0
      %p156 = por %p154, %p155
      %p157 = scmp.ne.s32.totalorder %s149, %s151
      %p158 = scmp.eq.s32.totalorder %s31, 1
      %p159 = por %p157, %p158
      %p160 = scmp.ne.s32.totalorder %s151, %s152
      %p161 = scmp.eq.s32.totalorder %s31, 0
      %p162 = por %p160, %p161
      %p163 = scmp.ne.s32.totalorder %s151, %s152
      %p164 = scmp.eq.s32.totalorder %s32, 1
      %p165 = por %p163, %p164
      %p167 = scmp.ne.s32.totalorder %s152, %s166
      %p168 = scmp.eq.s32.totalorder %s32, 0
      %p169 = por %p167, %p168
      %s171 = sadd.s32 %s170, 1
      %p174 = scmp.eq.s32.totalorder %s26, 1
      %p175 = scmp.ne.s32.totalorder %s170, %s172
      %p176 = scmp.eq.s32.totalorder %s26, 0
      %p177 = por %p175, %p176
      %p178 = scmp.ne.s32.totalorder %s170, %s172
      %p179 = scmp.eq.s32.totalorder %s31, 1
      %p180 = por %p178, %p179
      %p181 = scmp.ne.s32.totalorder %s172, %s173
      %p182 = scmp.eq.s32.totalorder %s31, 0
      %p183 = por %p181, %p182
      %p184 = scmp.ne.s32.totalorder %s172, %s173
      %p185 = scmp.eq.s32.totalorder %s32, 1
      %p186 = por %p184, %p185
      %p188 = scmp.ne.s32.totalorder %s173, %s187
      %p189 = scmp.eq.s32.totalorder %s32, 0
      %p190 = por %p188, %p189
      %s192 = sadd.s32 %s191, 1
      %p195 = scmp.eq.s32.totalorder %s26, 1
      %p196 = scmp.ne.s32.totalorder %s191, %s193
      %p197 = scmp.eq.s32.totalorder %s26, 0
      %p198 = por %p196, %p197
      %p199 = scmp.ne.s32.totalorder %s191, %s193
      %p200 = scmp.eq.s32.totalorder %s31, 1
      %p201 = por %p199, %p200
      %p202 = scmp.ne.s32.totalorder %s193, %s194
      %p203 = scmp.eq.s32.totalorder %s31, 0
      %p204 = por %p202, %p203
      %p205 = scmp.ne.s32.totalorder %s193, %s194
      %p206 = scmp.eq.s32.totalorder %s32, 1
      %p207 = por %p205, %p206
      %p209 = scmp.ne.s32.totalorder %s194, %s208
      %p210 = scmp.eq.s32.totalorder %s32, 0
      %p211 = por %p209, %p210
      %s212 = ssub.s32 %s26, %s33
      %p213 = scmp.eq.s32.totalorder %s212, 0
      %s215 = sadd.s32 %s214, 1
      %s216 = scalar_select %p213, %s214, %s215
      %p219 = pneg %p213
      %p220 = scmp.eq.s32.totalorder %s26, 1
      %p221 = por %p219, %p220
      %p222 = scmp.ne.s32.totalorder %s214, %s217
      %p223 = scmp.eq.s32.totalorder %s26, 0
      %p224 = por %p222, %p223
      %p225 = scmp.ne.s32.totalorder %s214, %s217
      %p226 = scmp.eq.s32.totalorder %s31, 1
      %p227 = por %p225, %p226
      %p228 = scmp.ne.s32.totalorder %s217, %s218
      %p229 = scmp.eq.s32.totalorder %s31, 0
      %p230 = por %p228, %p229
      %p231 = scmp.ne.s32.totalorder %s217, %s218
      %p232 = scmp.eq.s32.totalorder %s32, 1
      %p233 = por %p231, %p232
      %p235 = scmp.ne.s32.totalorder %s218, %s234
      %p236 = scmp.eq.s32.totalorder %s32, 0
      %p237 = por %p235, %p236
      %p238 = scmp.le.s32.totalorder 1, %s26
      %p239 = scmp.lt.s32.totalorder %s26, 3
      %p240 = pnand %p238, %p239
      %p241 = pneg %p240
      // Predicated region
      $region9: #{up_forward.4} parent=5 // pred_check
        _
      $region10: #{up_forward.4} parent=5 // pred_check_branch
        %243 = sbr.rel (%p240) target = $region12
      $region11: #{up_forward.4} parent=5 // pred_region
        %s244 = ssub.s32 %s26, 1
        // Predicated region
        $region13: #{up_forward.4} parent=11 // pred_check
          %p245 = pneg %p99
        $region14: #{up_forward.4} parent=11 // pred_check_branch
          %247 = sbr.rel (%p245) target = $region16
        $region15: #{up_forward.4} parent=11 // pred_region
          %s249 = ssub.s32 576, 576
          %250 = vsyncadd [#allocation6], %s249
          %s251 = sshll.u32 [#allocation7], 4
          %s252 = int_to_ptr.vmem [resolvable:$true] %s251
          %257 = dma.hbm_to_vmem [thread:$0]  %s2, 576, %s252, [#allocation6], 64, 64, 4
        $region16: #{up_forward.4} parent=11 // pred_fallthru
          _
        // Predicated region
        $region17: #{up_forward.4} parent=11 // pred_check
          %p258 = pneg %p120
        $region18: #{up_forward.4} parent=11 // pred_check_branch
          %260 = sbr.rel (%p258) target = $region20
        $region19: #{up_forward.4} parent=11 // pred_region
          %s262 = ssub.s32 576, 576
          %263 = vsyncadd [#allocation9], %s262
          %s264 = sshll.u32 [#allocation8], 4
          %s265 = int_to_ptr.vmem [resolvable:$true] %s264
          %270 = dma.hbm_to_vmem [thread:$0]  %s3, 576, %s265, [#allocation9], 64, 64, 4
        $region20: #{up_forward.4} parent=11 // pred_fallthru
          _
        // Predicated region
        $region21: #{up_forward.4} parent=11 // pred_check
          %p271 = pneg %p141
        $region22: #{up_forward.4} parent=11 // pred_check_branch
          %273 = sbr.rel (%p271) target = $region24
        $region23: #{up_forward.4} parent=11 // pred_region
          %s275 = ssub.s32 32, 32
          %276 = vsyncadd [#allocation9], %s275
          %s278 = sshll.u32 [#allocation10], 4
          %s279 = int_to_ptr.vmem [resolvable:$true] %s278
          %281 = dma.hbm_to_vmem [thread:$0]  %s4, 32, %s279, [#allocation9]
        $region24: #{up_forward.4} parent=11 // pred_fallthru
          _
        // Predicated region
        $region25: #{up_forward.4} parent=11 // pred_check
          %p282 = pneg %p162
        $region26: #{up_forward.4} parent=11 // pred_check_branch
          %284 = sbr.rel (%p282) target = $region28
        $region27: #{up_forward.4} parent=11 // pred_region
          %s286 = ssub.s32 32, 32
          %287 = vsyncadd [#allocation12], %s286
          %s289 = sshll.u32 [#allocation11], 4
          %s290 = int_to_ptr.vmem [resolvable:$true] %s289
          %292 = dma.hbm_to_vmem [thread:$0]  %s5, 32, %s290, [#allocation12]
        $region28: #{up_forward.4} parent=11 // pred_fallthru
          _
        // Predicated region
        $region29: #{up_forward.4} parent=11 // pred_check
          %p293 = pneg %p183
        $region30: #{up_forward.4} parent=11 // pred_check_branch
          %295 = sbr.rel (%p293) target = $region32
        $region31: #{up_forward.4} parent=11 // pred_region
          %s297 = ssub.s32 128, 128
          %298 = vsyncadd [#allocation12], %s297
          %s300 = sshll.u32 [#allocation13], 4
          %s301 = int_to_ptr.vmem [resolvable:$true] %s300
          %303 = dma.hbm_to_vmem [thread:$0]  %s6, 128, %s301, [#allocation12]
        $region32: #{up_forward.4} parent=11 // pred_fallthru
          _
        // Predicated region
        $region33: #{up_forward.4} parent=11 // pred_check
          %p304 = pneg %p204
        $region34: #{up_forward.4} parent=11 // pred_check_branch
          %306 = sbr.rel (%p304) target = $region36
        $region35: #{up_forward.4} parent=11 // pred_region
          %s308 = ssub.s32 128, 128
          %309 = vsyncadd [#allocation15], %s308
          %s311 = sshll.u32 [#allocation14], 4
          %s312 = int_to_ptr.vmem [resolvable:$true] %s311
          %314 = dma.hbm_to_vmem [thread:$0]  %s7, 128, %s312, [#allocation15]
        $region36: #{up_forward.4} parent=11 // pred_fallthru
          _
      $region12: #{up_forward.4} parent=5 // pred_fallthru
        _
      %p315 = scmp.lt.s32.totalorder %s26, 2
      // Predicated region
      $region37: #{up_forward.4} parent=5 // pred_check
        %p316 = pneg %p315
      $region38: #{up_forward.4} parent=5 // pred_check_branch
        %318 = sbr.rel (%p316) target = $region40
      $region39: #{up_forward.4} parent=5 // pred_region
        // Predicated region
        $region41: #{up_forward.4} parent=39 // pred_check
          %p319 = pneg %p46
        $region42: #{up_forward.4} parent=39 // pred_check_branch
          %321 = sbr.rel (%p319) target = $region44
        $region43: #{up_forward.4} parent=39 // pred_region
          %s322 = sand.u32 %s36, 1
          %s323 = scalar_lea.sflag [#allocation3], %s322
          %s324 = sand.u32 %s36, 1
          %s325 = smul.addr %s324, 4
          %s326 = scalar_lea.vmem [#allocation2], %s325
          %s328 = ssub.s32 64, 64
          %329 = vsyncadd %s323, %s328
          %s330 = smul.addr %s26, 2
          %s331 = smul.addr %s330, 32
          %s332 = scalar_lea.hbm %s0, %s331
          %s334 = sshll.u32 %s326, 4
          %s335 = int_to_ptr.vmem [resolvable:$true] %s334
          %337 = dma.hbm_to_vmem [thread:$0]  %s332, 64, %s335, %s323
        $region44: #{up_forward.4} parent=39 // pred_fallthru
          _
        // Predicated region
        $region45: #{up_forward.4} parent=39 // pred_check
          %p338 = pneg %p72
        $region46: #{up_forward.4} parent=39 // pred_check_branch
          %340 = sbr.rel (%p338) target = $region48
        $region47: #{up_forward.4} parent=39 // pred_region
          %s341 = sand.u32 %s26, 1
          %s342 = scalar_lea.sflag [#allocation6], %s341
          %s343 = sand.u32 %s62, 1
          %s344 = smul.addr %s343, 4
          %s345 = scalar_lea.vmem [#allocation5], %s344
          %s347 = ssub.s32 64, 64
          %348 = vsyncadd %s342, %s347
          %s349 = smul.addr %s26, 2
          %s350 = smul.addr %s349, 32
          %s351 = scalar_lea.hbm %s1, %s350
          %s353 = sshll.u32 %s345, 4
          %s354 = int_to_ptr.vmem [resolvable:$true] %s353
          %356 = dma.hbm_to_vmem [thread:$0]  %s351, 64, %s354, %s342
        $region48: #{up_forward.4} parent=39 // pred_fallthru
          _
      $region40: #{up_forward.4} parent=5 // pred_fallthru
        _
      %p357 = scmp.le.s32.totalorder 1, %s26
      %p358 = scmp.lt.s32.totalorder %s26, 3
      %p359 = pnand %p357, %p358
      %p360 = pneg %p359
      // Predicated region
      $region49: #{up_forward.4} parent=5 // pred_check
        _
      $region50: #{up_forward.4} parent=5 // pred_check_branch
        %362 = sbr.rel (%p359) target = $region52
      $region51: #{up_forward.4} parent=5 // pred_region
        %s363 = ssub.s32 %s26, 1
        %s364 = sand.u32 %s39, 1
        %s365 = scalar_lea.sflag [#allocation3], %s364
        %s366 = sand.u32 %s39, 1
        %s367 = smul.addr %s366, 4
        %s368 = scalar_lea.vmem [#allocation2], %s367
        // Predicated region
        $region53: #{up_forward.4} parent=51 // pred_check
          %p369 = pneg %p52
        $region54: #{up_forward.4} parent=51 // pred_check_branch
          %371 = sbr.rel (%p369) target = $region56
        $region55: #{up_forward.4} parent=51 // pred_region
          %372 = dma.done %s365, 64
        $region56: #{up_forward.4} parent=51 // pred_fallthru
          _
        %s373 = sand.u32 %s31, 1
        %s374 = scalar_lea.sflag [#allocation6], %s373
        %s375 = sand.u32 %s65, 1
        %s376 = smul.addr %s375, 4
        %s377 = scalar_lea.vmem [#allocation5], %s376
        // Predicated region
        $region57: #{up_forward.4} parent=51 // pred_check
          %p378 = pneg %p78
        $region58: #{up_forward.4} parent=51 // pred_check_branch
          %380 = sbr.rel (%p378) target = $region60
        $region59: #{up_forward.4} parent=51 // pred_region
          %381 = dma.done %s374, 64
        $region60: #{up_forward.4} parent=51 // pred_fallthru
          _
        // Predicated region
        $region61: #{up_forward.4} parent=51 // pred_check
          %p382 = pneg %p99
        $region62: #{up_forward.4} parent=51 // pred_check_branch
          %384 = sbr.rel (%p382) target = $region64
        $region63: #{up_forward.4} parent=51 // pred_region
          %385 = dma.done [#allocation6], 576
        $region64: #{up_forward.4} parent=51 // pred_fallthru
          _
        // Predicated region
        $region65: #{up_forward.4} parent=51 // pred_check
          %p386 = pneg %p120
        $region66: #{up_forward.4} parent=51 // pred_check_branch
          %388 = sbr.rel (%p386) target = $region68
        $region67: #{up_forward.4} parent=51 // pred_region
          %389 = dma.done [#allocation9], 576
        $region68: #{up_forward.4} parent=51 // pred_fallthru
          _
        // Predicated region
        $region69: #{up_forward.4} parent=51 // pred_check
          %p390 = pneg %p141
        $region70: #{up_forward.4} parent=51 // pred_check_branch
          %392 = sbr.rel (%p390) target = $region72
        $region71: #{up_forward.4} parent=51 // pred_region
          %393 = dma.done [#allocation9], 32
        $region72: #{up_forward.4} parent=51 // pred_fallthru
          _
        // Predicated region
        $region73: #{up_forward.4} parent=51 // pred_check
          %p394 = pneg %p162
        $region74: #{up_forward.4} parent=51 // pred_check_branch
          %396 = sbr.rel (%p394) target = $region76
        $region75: #{up_forward.4} parent=51 // pred_region
          %397 = dma.done [#allocation12], 32
        $region76: #{up_forward.4} parent=51 // pred_fallthru
          _
        // Predicated region
        $region77: #{up_forward.4} parent=51 // pred_check
          %p398 = pneg %p183
        $region78: #{up_forward.4} parent=51 // pred_check_branch
          %400 = sbr.rel (%p398) target = $region80
        $region79: #{up_forward.4} parent=51 // pred_region
          %401 = dma.done [#allocation12], 128
        $region80: #{up_forward.4} parent=51 // pred_fallthru
          _
        // Predicated region
        $region81: #{up_forward.4} parent=51 // pred_check
          %p402 = pneg %p204
        $region82: #{up_forward.4} parent=51 // pred_check_branch
          %404 = sbr.rel (%p402) target = $region84
        $region83: #{up_forward.4} parent=51 // pred_region
          %405 = dma.done [#allocation15], 128
        $region84: #{up_forward.4} parent=51 // pred_fallthru
          _
        %s406 = sand.u32 %s39, 1
        %s407 = scalar_lea.sflag [#allocation3], %s406
        %s408 = sand.u32 %s39, 1
        %s409 = smul.addr %s408, 4
        %s410 = scalar_lea.vmem [#allocation2], %s409
        %p411 = pneg %p52
        %p412 = pneg %p49
        %s413 = sand.u32 %s31, 1
        %s414 = scalar_lea.sflag [#allocation6], %s413
        %s415 = sand.u32 %s65, 1
        %s416 = smul.addr %s415, 4
        %s417 = scalar_lea.vmem [#allocation5], %s416
        %p418 = pneg %p78
        %p419 = pneg %p75
        %p420 = pneg %p99
        %p421 = pneg %p96
        %p422 = pneg %p120
        %p423 = pneg %p117
        %p424 = pneg %p141
        %p425 = pneg %p138
        %p426 = pneg %p162
        %p427 = pneg %p159
        %p428 = pneg %p183
        %p429 = pneg %p180
        %p430 = pneg %p204
        %p431 = pneg %p201
        %p432 = pneg %p230
        %p433 = pneg %p227
        %s434 = sand.u32 %s217, 1
        %s435 = scalar_lea.sflag [#allocation4], %s434
        %s436 = sand.u32 %s217, 1
        %s437 = smul.addr %s436, 8
        %s438 = scalar_lea.vmem [#allocation16], %s437
        %v440 = vld [vmem:[%s368] sm:$0xf]
        %v441 = vld [vmem:[%s377] sm:$0xf]
        %v442 = vld [vmem:[#allocation10] sm:$0x3]
        %v443 = vld [vmem:[#allocation11] sm:$0x3]
        %vm444 = vcmp.eq.s32.totalorder %v442, 0
        %vm445 = vcmp.eq.s32.totalorder %v442, 15
        %vm446 = vcmp.eq.s32.totalorder %v443, 0
        %vm447 = vcmp.eq.s32.totalorder %v443, 15
        %v448 = vld [vmem:[#allocation7] sm:$0xf]
        %v449 = vld [vmem:[#allocation8] sm:$0xf]
        %v452 = vunpack.c.l.s4 1983009808
        %v453 = vunpack.c.0.s8 %v452
        %v454 = vlaneseq
        %v455 = vshrl.u32 %v454, 7
        %v456 = vsub.s32 %v453, %v455
        %v457 = vrot.slane %v441, %v456
        %v458 = vcombine.high %v457, %v457
        %vm459 = vcmask 31744
        %v461 = vsel %vm459, %v449, 0
        %vm463 = vcmask 1041408
        %v465 = vsel %vm463, %v457, 0
        %v468 = vsel %vm463, %v458, 0
        %470 = vmatprep.subr.bf16.mxu0 %v468
        %471 = vmatpush1.bf16.msra.mxu0 %v465
        %472 = vmatprep.subr.bf16.mxu0 0
        %473 = vmatpush1.bf16.msra.mxu0 0
        %474 = vmatprep.subr.bf16.mxu0 0
        %475 = vmatpush1.bf16.msra.mxu0 0
        %476 = vmatprep.subr.bf16.mxu0 0
        %477 = vmatpush1.bf16.msra.mxu0 0
        %478 = vmatprep.subr.bf16.mxu0 0
        %479 = vmatpush1.bf16.msra.mxu0 0
        %480 = vmatprep.subr.bf16.mxu0 0
        %481 = vmatpush1.bf16.msra.mxu0 0
        %482 = vmatprep.subr.bf16.mxu0 0
        %483 = vmatpush1.bf16.msra.mxu0 0
        %484 = vmatprep.subr.bf16.mxu0 0
        %485 = vmatpush1.bf16.msra.mxu0 0
        %486 = vmatprep.subr.bf16.mxu0 0
        %487 = vmatpush1.bf16.msra.mxu0 0
        %488 = vmatprep.subr.bf16.mxu0 0
        %489 = vmatpush1.bf16.msra.mxu0 0
        %490 = vmatprep.subr.bf16.mxu0 0
        %491 = vmatpush1.bf16.msra.mxu0 0
        %492 = vmatprep.subr.bf16.mxu0 0
        %493 = vmatpush1.bf16.msra.mxu0 0
        %494 = vmatprep.subr.bf16.mxu0 0
        %495 = vmatpush1.bf16.msra.mxu0 0
        %496 = vmatprep.subr.bf16.mxu0 0
        %497 = vmatpush1.bf16.msra.mxu0 0
        %498 = vmatprep.subr.bf16.mxu0 0
        %499 = vmatpush1.bf16.msra.mxu0 0
        %500 = vmatprep.subr.bf16.mxu0 0
        %501 = vmatpush1.bf16.msra.mxu0 0
        %502 = vmatprep.mubr.bf16.mxu0 0
        %503 = vmatmul.mubr.bf16.gmra.mrb[0].mxu0 %v461
        %v504 = vpop.f32.mrb[0].mxu0
        %v505 = vadd.f32 0.0, %v504
        %v506 = vpop.f32.mrb[0].mxu0
        %v507 = vadd.f32 0.0, %v506
        %v508 = vpop.f32.mrb[0].mxu0
        %v509 = vpop.f32.mrb[0].mxu0
        %510 = vdwg.mxu0
        %v513 = vunpack.c.l.s4 1983009808
        %v514 = vunpack.c.0.s8 %v513
        %v515 = vlaneseq
        %v516 = vshrl.u32 %v515, 7
        %v517 = vsub.s32 %v514, %v516
        %v518 = vrot.slane %v440, %v517
        %v519 = vcombine.high %v518, %v518
        %v521 = vsel %vm459, %v448, 0
        %v524 = vsel %vm463, %v518, 0
        %v527 = vsel %vm463, %v519, 0
        %529 = vmatprep.subr.bf16.mxu0 %v527
        %530 = vmatpush1.bf16.msra.mxu0 %v524
        %531 = vmatprep.subr.bf16.mxu0 0
        %532 = vmatpush1.bf16.msra.mxu0 0
        %533 = vmatprep.subr.bf16.mxu0 0
        %534 = vmatpush1.bf16.msra.mxu0 0
        %535 = vmatprep.subr.bf16.mxu0 0
        %536 = vmatpush1.bf16.msra.mxu0 0
        %537 = vmatprep.subr.bf16.mxu0 0
        %538 = vmatpush1.bf16.msra.mxu0 0
        %539 = vmatprep.subr.bf16.mxu0 0
        %540 = vmatpush1.bf16.msra.mxu0 0
        %541 = vmatprep.subr.bf16.mxu0 0
        %542 = vmatpush1.bf16.msra.mxu0 0
        %543 = vmatprep.subr.bf16.mxu0 0
        %544 = vmatpush1.bf16.msra.mxu0 0
        %545 = vmatprep.subr.bf16.mxu0 0
        %546 = vmatpush1.bf16.msra.mxu0 0
        %547 = vmatprep.subr.bf16.mxu0 0
        %548 = vmatpush1.bf16.msra.mxu0 0
        %549 = vmatprep.subr.bf16.mxu0 0
        %550 = vmatpush1.bf16.msra.mxu0 0
        %551 = vmatprep.subr.bf16.mxu0 0
        %552 = vmatpush1.bf16.msra.mxu0 0
        %553 = vmatprep.subr.bf16.mxu0 0
        %554 = vmatpush1.bf16.msra.mxu0 0
        %555 = vmatprep.subr.bf16.mxu0 0
        %556 = vmatpush1.bf16.msra.mxu0 0
        %557 = vmatprep.subr.bf16.mxu0 0
        %558 = vmatpush1.bf16.msra.mxu0 0
        %559 = vmatprep.subr.bf16.mxu0 0
        %560 = vmatpush1.bf16.msra.mxu0 0
        %561 = vmatprep.mubr.bf16.mxu0 0
        %562 = vmatmul.mubr.bf16.gmra.mrb[0].mxu0 %v521
        %v563 = vpop.f32.mrb[0].mxu0
        %v564 = vadd.f32 %v505, %v563
        %v565 = vpop.f32.mrb[0].mxu0
        %v566 = vadd.f32 %v507, %v565
        %v567 = vpop.f32.mrb[0].mxu0
        %v568 = vpop.f32.mrb[0].mxu0
        %569 = vdwg.mxu0
        %570 = vrot.lane.b32.xlu0 %v564, 17
        %v571 = vpop.permute.xlu0 %570
        %572 = vrot.lane.b32.xlu0 %v566, 17
        %v573 = vpop.permute.xlu0 %572
        %v574 = vlaneseq
        %v575 = vand.u32 %v574, 127
        %vm576 = vcmp.lt.s32.totalorder %v575, 17
        %v577 = vsel %vm576, %v571, %v573
        %v578 = vsel %vm576, %v573, %v571
        %vm579 = vmor %vm444, %vm446
        %v580 = vsel %vm579, 1, 0
        %v581 = vlaneseq
        %v582 = vshrl.u32 %v581, 7
        %v583 = vsub.s32 0, %v582
        %v584 = vrot.slane %v580, %v583
        %v585 = vlaneseq
        %v586 = vshrl.u32 %v585, 7
        %v587 = vsub.s32 1, %v586
        %v588 = vrot.slane %v580, %v587
        %vm589 = vcmp.eq.s32.totalorder %v584, 1
        %vm590 = vcmp.eq.s32.totalorder %v588, 1
        %v591 = vsel %vm589, 0.0, %v578
        %v592 = vsel %vm590, 0.0, %v577
        %v593 = vadd.f32 %v591, 0.0
        %v594 = vadd.f32 %v592, 0.0
        %s595 = scalar_lea.vmem [#allocation7], 4
        %v596 = vld [vmem:[%s595] sm:$0xf]
        %s597 = scalar_lea.vmem [#allocation8], 4
        %v598 = vld [vmem:[%s597] sm:$0xf]
        %v600 = vsel %vm459, %v598, 0
        %602 = vmatprep.subr.bf16.mxu0 %v468
        %603 = vmatpush1.bf16.msra.mxu0 %v465
        %604 = vmatprep.subr.bf16.mxu0 0
        %605 = vmatpush1.bf16.msra.mxu0 0
        %606 = vmatprep.subr.bf16.mxu0 0
        %607 = vmatpush1.bf16.msra.mxu0 0
        %608 = vmatprep.subr.bf16.mxu0 0
        %609 = vmatpush1.bf16.msra.mxu0 0
        %610 = vmatprep.subr.bf16.mxu0 0
        %611 = vmatpush1.bf16.msra.mxu0 0
        %612 = vmatprep.subr.bf16.mxu0 0
        %613 = vmatpush1.bf16.msra.mxu0 0
        %614 = vmatprep.subr.bf16.mxu0 0
        %615 = vmatpush1.bf16.msra.mxu0 0
        %616 = vmatprep.subr.bf16.mxu0 0
        %617 = vmatpush1.bf16.msra.mxu0 0
        %618 = vmatprep.subr.bf16.mxu0 0
        %619 = vmatpush1.bf16.msra.mxu0 0
        %620 = vmatprep.subr.bf16.mxu0 0
        %621 = vmatpush1.bf16.msra.mxu0 0
        %622 = vmatprep.subr.bf16.mxu0 0
        %623 = vmatpush1.bf16.msra.mxu0 0
        %624 = vmatprep.subr.bf16.mxu0 0
        %625 = vmatpush1.bf16.msra.mxu0 0
        %626 = vmatprep.subr.bf16.mxu0 0
        %627 = vmatpush1.bf16.msra.mxu0 0
        %628 = vmatprep.subr.bf16.mxu0 0
        %629 = vmatpush1.bf16.msra.mxu0 0
        %630 = vmatprep.subr.bf16.mxu0 0
        %631 = vmatpush1.bf16.msra.mxu0 0
        %632 = vmatprep.subr.bf16.mxu0 0
        %633 = vmatpush1.bf16.msra.mxu0 0
        %634 = vmatprep.mubr.bf16.mxu0 0
        %635 = vmatmul.mubr.bf16.gmra.mrb[0].mxu0 %v600
        %v636 = vpop.f32.mrb[0].mxu0
        %v637 = vadd.f32 0.0, %v636
        %v638 = vpop.f32.mrb[0].mxu0
        %v639 = vadd.f32 0.0, %v638
        %v640 = vpop.f32.mrb[0].mxu0
        %v641 = vpop.f32.mrb[0].mxu0
        %642 = vdwg.mxu0
        %v644 = vsel %vm459, %v596, 0
        %646 = vmatprep.subr.bf16.mxu0 %v527
        %647 = vmatpush1.bf16.msra.mxu0 %v524
        %648 = vmatprep.subr.bf16.mxu0 0
        %649 = vmatpush1.bf16.msra.mxu0 0
        %650 = vmatprep.subr.bf16.mxu0 0
        %651 = vmatpush1.bf16.msra.mxu0 0
        %652 = vmatprep.subr.bf16.mxu0 0
        %653 = vmatpush1.bf16.msra.mxu0 0
        %654 = vmatprep.subr.bf16.mxu0 0
        %655 = vmatpush1.bf16.msra.mxu0 0
        %656 = vmatprep.subr.bf16.mxu0 0
        %657 = vmatpush1.bf16.msra.mxu0 0
        %658 = vmatprep.subr.bf16.mxu0 0
        %659 = vmatpush1.bf16.msra.mxu0 0
        %660 = vmatprep.subr.bf16.mxu0 0
        %661 = vmatpush1.bf16.msra.mxu0 0
        %662 = vmatprep.subr.bf16.mxu0 0
        %663 = vmatpush1.bf16.msra.mxu0 0
        %664 = vmatprep.subr.bf16.mxu0 0
        %665 = vmatpush1.bf16.msra.mxu0 0
        %666 = vmatprep.subr.bf16.mxu0 0
        %667 = vmatpush1.bf16.msra.mxu0 0
        %668 = vmatprep.subr.bf16.mxu0 0
        %669 = vmatpush1.bf16.msra.mxu0 0
        %670 = vmatprep.subr.bf16.mxu0 0
        %671 = vmatpush1.bf16.msra.mxu0 0
        %672 = vmatprep.subr.bf16.mxu0 0
        %673 = vmatpush1.bf16.msra.mxu0 0
        %674 = vmatprep.subr.bf16.mxu0 0
        %675 = vmatpush1.bf16.msra.mxu0 0
        %676 = vmatprep.subr.bf16.mxu0 0
        %677 = vmatpush1.bf16.msra.mxu0 0
        %678 = vmatprep.mubr.bf16.mxu0 0
        %679 = vmatmul.mubr.bf16.gmra.mrb[0].mxu0 %v644
        %v680 = vpop.f32.mrb[0].mxu0
        %v681 = vadd.f32 %v637, %v680
        %v682 = vpop.f32.mrb[0].mxu0
        %v683 = vadd.f32 %v639, %v682
        %v684 = vpop.f32.mrb[0].mxu0
        %v685 = vpop.f32.mrb[0].mxu0
        %686 = vdwg.mxu0
        %687 = vrot.lane.b32.xlu0 %v681, 16
        %v688 = vpop.permute.xlu0 %687
        %689 = vrot.lane.b32.xlu0 %v683, 16
        %v690 = vpop.permute.xlu0 %689
        %vm691 = vcmp.lt.s32.totalorder %v575, 16
        %v692 = vsel %vm691, %v688, %v690
        %v693 = vsel %vm691, %v690, %v688
        %v694 = vsel %vm444, 1, 0
        %v695 = vlaneseq
        %v696 = vshrl.u32 %v695, 7
        %v697 = vsub.s32 0, %v696
        %v698 = vrot.slane %v694, %v697
        %v699 = vlaneseq
        %v700 = vshrl.u32 %v699, 7
        %v701 = vsub.s32 1, %v700
        %v702 = vrot.slane %v694, %v701
        %vm703 = vcmp.eq.s32.totalorder %v698, 1
        %vm704 = vcmp.eq.s32.totalorder %v702, 1
        %v705 = vsel %vm703, 0.0, %v693
        %v706 = vsel %vm704, 0.0, %v692
        %v707 = vadd.f32 %v593, %v705
        %v708 = vadd.f32 %v594, %v706
        %s709 = scalar_lea.vmem [#allocation7], 8
        %v710 = vld [vmem:[%s709] sm:$0xf]
        %s711 = scalar_lea.vmem [#allocation8], 8
        %v712 = vld [vmem:[%s711] sm:$0xf]
        %v714 = vsel %vm459, %v712, 0
        %716 = vmatprep.subr.bf16.mxu0 %v468
        %717 = vmatpush1.bf16.msra.mxu0 %v465
        %718 = vmatprep.subr.bf16.mxu0 0
        %719 = vmatpush1.bf16.msra.mxu0 0
        %720 = vmatprep.subr.bf16.mxu0 0
        %721 = vmatpush1.bf16.msra.mxu0 0
        %722 = vmatprep.subr.bf16.mxu0 0
        %723 = vmatpush1.bf16.msra.mxu0 0
        %724 = vmatprep.subr.bf16.mxu0 0
        %725 = vmatpush1.bf16.msra.mxu0 0
        %726 = vmatprep.subr.bf16.mxu0 0
        %727 = vmatpush1.bf16.msra.mxu0 0
        %728 = vmatprep.subr.bf16.mxu0 0
        %729 = vmatpush1.bf16.msra.mxu0 0
        %730 = vmatprep.subr.bf16.mxu0 0
        %731 = vmatpush1.bf16.msra.mxu0 0
        %732 = vmatprep.subr.bf16.mxu0 0
        %733 = vmatpush1.bf16.msra.mxu0 0
        %734 = vmatprep.subr.bf16.mxu0 0
        %735 = vmatpush1.bf16.msra.mxu0 0
        %736 = vmatprep.subr.bf16.mxu0 0
        %737 = vmatpush1.bf16.msra.mxu0 0
        %738 = vmatprep.subr.bf16.mxu0 0
        %739 = vmatpush1.bf16.msra.mxu0 0
        %740 = vmatprep.subr.bf16.mxu0 0
        %741 = vmatpush1.bf16.msra.mxu0 0
        %742 = vmatprep.subr.bf16.mxu0 0
        %743 = vmatpush1.bf16.msra.mxu0 0
        %744 = vmatprep.subr.bf16.mxu0 0
        %745 = vmatpush1.bf16.msra.mxu0 0
        %746 = vmatprep.subr.bf16.mxu0 0
        %747 = vmatpush1.bf16.msra.mxu0 0
        %748 = vmatprep.mubr.bf16.mxu0 0
        %749 = vmatmul.mubr.bf16.gmra.mrb[0].mxu0 %v714
        %v750 = vpop.f32.mrb[0].mxu0
        %v751 = vadd.f32 0.0, %v750
        %v752 = vpop.f32.mrb[0].mxu0
        %v753 = vadd.f32 0.0, %v752
        %v754 = vpop.f32.mrb[0].mxu0
        %v755 = vpop.f32.mrb[0].mxu0
        %756 = vdwg.mxu0
        %v758 = vsel %vm459, %v710, 0
        %760 = vmatprep.subr.bf16.mxu0 %v527
        %761 = vmatpush1.bf16.msra.mxu0 %v524
        %762 = vmatprep.subr.bf16.mxu0 0
        %763 = vmatpush1.bf16.msra.mxu0 0
        %764 = vmatprep.subr.bf16.mxu0 0
        %765 = vmatpush1.bf16.msra.mxu0 0
        %766 = vmatprep.subr.bf16.mxu0 0
        %767 = vmatpush1.bf16.msra.mxu0 0
        %768 = vmatprep.subr.bf16.mxu0 0
        %769 = vmatpush1.bf16.msra.mxu0 0
        %770 = vmatprep.subr.bf16.mxu0 0
        %771 = vmatpush1.bf16.msra.mxu0 0
        %772 = vmatprep.subr.bf16.mxu0 0
        %773 = vmatpush1.bf16.msra.mxu0 0
        %774 = vmatprep.subr.bf16.mxu0 0
        %775 = vmatpush1.bf16.msra.mxu0 0
        %776 = vmatprep.subr.bf16.mxu0 0
        %777 = vmatpush1.bf16.msra.mxu0 0
        %778 = vmatprep.subr.bf16.mxu0 0
        %779 = vmatpush1.bf16.msra.mxu0 0
        %780 = vmatprep.subr.bf16.mxu0 0
        %781 = vmatpush1.bf16.msra.mxu0 0
        %782 = vmatprep.subr.bf16.mxu0 0
        %783 = vmatpush1.bf16.msra.mxu0 0
        %784 = vmatprep.subr.bf16.mxu0 0
        %785 = vmatpush1.bf16.msra.mxu0 0
        %786 = vmatprep.subr.bf16.mxu0 0
        %787 = vmatpush1.bf16.msra.mxu0 0
        %788 = vmatprep.subr.bf16.mxu0 0
        %789 = vmatpush1.bf16.msra.mxu0 0
        %790 = vmatprep.subr.bf16.mxu0 0
        %791 = vmatpush1.bf16.msra.mxu0 0
        %792 = vmatprep.mubr.bf16.mxu0 0
        %793 = vmatmul.mubr.bf16.gmra.mrb[0].mxu0 %v758
        %v794 = vpop.f32.mrb[0].mxu0
        %v795 = vadd.f32 %v751, %v794
        %v796 = vpop.f32.mrb[0].mxu0
        %v797 = vadd.f32 %v753, %v796
        %v798 = vpop.f32.mrb[0].mxu0
        %v799 = vpop.f32.mrb[0].mxu0
        %800 = vdwg.mxu0
        %801 = vrot.lane.b32.xlu0 %v795, 15
        %v802 = vpop.permute.xlu0 %801
        %803 = vrot.lane.b32.xlu0 %v797, 15
        %v804 = vpop.permute.xlu0 %803
        %vm805 = vcmp.lt.s32.totalorder %v575, 15
        %v806 = vsel %vm805, %v802, %v804
        %v807 = vsel %vm805, %v804, %v802
        %vm808 = vmor %vm444, %vm447
        %v809 = vsel %vm808, 1, 0
        %v810 = vlaneseq
        %v811 = vshrl.u32 %v810, 7
        %v812 = vsub.s32 0, %v811
        %v813 = vrot.slane %v809, %v812
        %v814 = vlaneseq
        %v815 = vshrl.u32 %v814, 7
        %v816 = vsub.s32 1, %v815
        %v817 = vrot.slane %v809, %v816
        %vm818 = vcmp.eq.s32.totalorder %v813, 1
        %vm819 = vcmp.eq.s32.totalorder %v817, 1
        %v820 = vsel %vm818, 0.0, %v807
        %v821 = vsel %vm819, 0.0, %v806
        %v822 = vadd.f32 %v707, %v820
        %v823 = vadd.f32 %v708, %v821
        %s824 = scalar_lea.vmem [#allocation7], 12
        %v825 = vld [vmem:[%s824] sm:$0xf]
        %s826 = scalar_lea.vmem [#allocation8], 12
        %v827 = vld [vmem:[%s826] sm:$0xf]
        %v829 = vsel %vm459, %v827, 0
        %831 = vmatprep.subr.bf16.mxu0 %v468
        %832 = vmatpush1.bf16.msra.mxu0 %v465
        %833 = vmatprep.subr.bf16.mxu0 0
        %834 = vmatpush1.bf16.msra.mxu0 0
        %835 = vmatprep.subr.bf16.mxu0 0
        %836 = vmatpush1.bf16.msra.mxu0 0
        %837 = vmatprep.subr.bf16.mxu0 0
        %838 = vmatpush1.bf16.msra.mxu0 0
        %839 = vmatprep.subr.bf16.mxu0 0
        %840 = vmatpush1.bf16.msra.mxu0 0
        %841 = vmatprep.subr.bf16.mxu0 0
        %842 = vmatpush1.bf16.msra.mxu0 0
        %843 = vmatprep.subr.bf16.mxu0 0
        %844 = vmatpush1.bf16.msra.mxu0 0
        %845 = vmatprep.subr.bf16.mxu0 0
        %846 = vmatpush1.bf16.msra.mxu0 0
        %847 = vmatprep.subr.bf16.mxu0 0
        %848 = vmatpush1.bf16.msra.mxu0 0
        %849 = vmatprep.subr.bf16.mxu0 0
        %850 = vmatpush1.bf16.msra.mxu0 0
        %851 = vmatprep.subr.bf16.mxu0 0
        %852 = vmatpush1.bf16.msra.mxu0 0
        %853 = vmatprep.subr.bf16.mxu0 0
        %854 = vmatpush1.bf16.msra.mxu0 0
        %855 = vmatprep.subr.bf16.mxu0 0
        %856 = vmatpush1.bf16.msra.mxu0 0
        %857 = vmatprep.subr.bf16.mxu0 0
        %858 = vmatpush1.bf16.msra.mxu0 0
        %859 = vmatprep.subr.bf16.mxu0 0
        %860 = vmatpush1.bf16.msra.mxu0 0
        %861 = vmatprep.subr.bf16.mxu0 0
        %862 = vmatpush1.bf16.msra.mxu0 0
        %863 = vmatprep.mubr.bf16.mxu0 0
        %864 = vmatmul.mubr.bf16.gmra.mrb[0].mxu0 %v829
        %v865 = vpop.f32.mrb[0].mxu0
        %v866 = vadd.f32 0.0, %v865
        %v867 = vpop.f32.mrb[0].mxu0
        %v868 = vadd.f32 0.0, %v867
        %v869 = vpop.f32.mrb[0].mxu0
        %v870 = vpop.f32.mrb[0].mxu0
        %871 = vdwg.mxu0
        %v873 = vsel %vm459, %v825, 0
        %875 = vmatprep.subr.bf16.mxu0 %v527
        %876 = vmatpush1.bf16.msra.mxu0 %v524
        %877 = vmatprep.subr.bf16.mxu0 0
        %878 = vmatpush1.bf16.msra.mxu0 0
        %879 = vmatprep.subr.bf16.mxu0 0
        %880 = vmatpush1.bf16.msra.mxu0 0
        %881 = vmatprep.subr.bf16.mxu0 0
        %882 = vmatpush1.bf16.msra.mxu0 0
        %883 = vmatprep.subr.bf16.mxu0 0
        %884 = vmatpush1.bf16.msra.mxu0 0
        %885 = vmatprep.subr.bf16.mxu0 0
        %886 = vmatpush1.bf16.msra.mxu0 0
        %887 = vmatprep.subr.bf16.mxu0 0
        %888 = vmatpush1.bf16.msra.mxu0 0
        %889 = vmatprep.subr.bf16.mxu0 0
        %890 = vmatpush1.bf16.msra.mxu0 0
        %891 = vmatprep.subr.bf16.mxu0 0
        %892 = vmatpush1.bf16.msra.mxu0 0
        %893 = vmatprep.subr.bf16.mxu0 0
        %894 = vmatpush1.bf16.msra.mxu0 0
        %895 = vmatprep.subr.bf16.mxu0 0
        %896 = vmatpush1.bf16.msra.mxu0 0
        %897 = vmatprep.subr.bf16.mxu0 0
        %898 = vmatpush1.bf16.msra.mxu0 0
        %899 = vmatprep.subr.bf16.mxu0 0
        %900 = vmatpush1.bf16.msra.mxu0 0
        %901 = vmatprep.subr.bf16.mxu0 0
        %902 = vmatpush1.bf16.msra.mxu0 0
        %903 = vmatprep.subr.bf16.mxu0 0
        %904 = vmatpush1.bf16.msra.mxu0 0
        %905 = vmatprep.subr.bf16.mxu0 0
        %906 = vmatpush1.bf16.msra.mxu0 0
        %907 = vmatprep.mubr.bf16.mxu0 0
        %908 = vmatmul.mubr.bf16.gmra.mrb[0].mxu0 %v873
        %v909 = vpop.f32.mrb[0].mxu0
        %v910 = vadd.f32 %v866, %v909
        %v911 = vpop.f32.mrb[0].mxu0
        %v912 = vadd.f32 %v868, %v911
        %v913 = vpop.f32.mrb[0].mxu0
        %v914 = vpop.f32.mrb[0].mxu0
        %915 = vdwg.mxu0
        %916 = vrot.lane.b32.xlu0 %v910, 1
        %v917 = vpop.permute.xlu0 %916
        %918 = vrot.lane.b32.xlu0 %v912, 1
        %v919 = vpop.permute.xlu0 %918
        %vm920 = vcmp.lt.s32.totalorder %v575, 1
        %v921 = vsel %vm920, %v917, %v919
        %v922 = vsel %vm920, %v919, %v917
        %v923 = vsel %vm446, 1, 0
        %v924 = vlaneseq
        %v925 = vshrl.u32 %v924, 7
        %v926 = vsub.s32 0, %v925
        %v927 = vrot.slane %v923, %v926
        %v928 = vlaneseq
        %v929 = vshrl.u32 %v928, 7
        %v930 = vsub.s32 1, %v929
        %v931 = vrot.slane %v923, %v930
        %vm932 = vcmp.eq.s32.totalorder %v927, 1
        %vm933 = vcmp.eq.s32.totalorder %v931, 1
        %v934 = vsel %vm932, 0.0, %v922
        %v935 = vsel %vm933, 0.0, %v921
        %v936 = vadd.f32 %v822, %v934
        %v937 = vadd.f32 %v823, %v935
        %s938 = scalar_lea.vmem [#allocation7], 16
        %v939 = vld [vmem:[%s938] sm:$0xf]
        %s940 = scalar_lea.vmem [#allocation8], 16
        %v941 = vld [vmem:[%s940] sm:$0xf]
        %v943 = vsel %vm459, %v941, 0
        %945 = vmatprep.subr.bf16.mxu0 %v468
        %946 = vmatpush1.bf16.msra.mxu0 %v465
        %947 = vmatprep.subr.bf16.mxu0 0
        %948 = vmatpush1.bf16.msra.mxu0 0
        %949 = vmatprep.subr.bf16.mxu0 0
        %950 = vmatpush1.bf16.msra.mxu0 0
        %951 = vmatprep.subr.bf16.mxu0 0
        %952 = vmatpush1.bf16.msra.mxu0 0
        %953 = vmatprep.subr.bf16.mxu0 0
        %954 = vmatpush1.bf16.msra.mxu0 0
        %955 = vmatprep.subr.bf16.mxu0 0
        %956 = vmatpush1.bf16.msra.mxu0 0
        %957 = vmatprep.subr.bf16.mxu0 0
        %958 = vmatpush1.bf16.msra.mxu0 0
        %959 = vmatprep.subr.bf16.mxu0 0
        %960 = vmatpush1.bf16.msra.mxu0 0
        %961 = vmatprep.subr.bf16.mxu0 0
        %962 = vmatpush1.bf16.msra.mxu0 0
        %963 = vmatprep.subr.bf16.mxu0 0
        %964 = vmatpush1.bf16.msra.mxu0 0
        %965 = vmatprep.subr.bf16.mxu0 0
        %966 = vmatpush1.bf16.msra.mxu0 0
        %967 = vmatprep.subr.bf16.mxu0 0
        %968 = vmatpush1.bf16.msra.mxu0 0
        %969 = vmatprep.subr.bf16.mxu0 0
        %970 = vmatpush1.bf16.msra.mxu0 0
        %971 = vmatprep.subr.bf16.mxu0 0
        %972 = vmatpush1.bf16.msra.mxu0 0
        %973 = vmatprep.subr.bf16.mxu0 0
        %974 = vmatpush1.bf16.msra.mxu0 0
        %975 = vmatprep.subr.bf16.mxu0 0
        %976 = vmatpush1.bf16.msra.mxu0 0
        %977 = vmatprep.mubr.bf16.mxu0 0
        %978 = vmatmul.mubr.bf16.gmra.mrb[0].mxu0 %v943
        %v979 = vpop.f32.mrb[0].mxu0
        %v980 = vadd.f32 0.0, %v979
        %v981 = vpop.f32.mrb[0].mxu0
        %v982 = vadd.f32 0.0, %v981
        %v983 = vpop.f32.mrb[0].mxu0
        %v984 = vpop.f32.mrb[0].mxu0
        %985 = vdwg.mxu0
        %v987 = vsel %vm459, %v939, 0
        %989 = vmatprep.subr.bf16.mxu0 %v527
        %990 = vmatpush1.bf16.msra.mxu0 %v524
        %991 = vmatprep.subr.bf16.mxu0 0
        %992 = vmatpush1.bf16.msra.mxu0 0
        %993 = vmatprep.subr.bf16.mxu0 0
        %994 = vmatpush1.bf16.msra.mxu0 0
        %995 = vmatprep.subr.bf16.mxu0 0
        %996 = vmatpush1.bf16.msra.mxu0 0
        %997 = vmatprep.subr.bf16.mxu0 0
        %998 = vmatpush1.bf16.msra.mxu0 0
        %999 = vmatprep.subr.bf16.mxu0 0
        %1000 = vmatpush1.bf16.msra.mxu0 0
        %1001 = vmatprep.subr.bf16.mxu0 0
        %1002 = vmatpush1.bf16.msra.mxu0 0
        %1003 = vmatprep.subr.bf16.mxu0 0
        %1004 = vmatpush1.bf16.msra.mxu0 0
        %1005 = vmatprep.subr.bf16.mxu0 0
        %1006 = vmatpush1.bf16.msra.mxu0 0
        %1007 = vmatprep.subr.bf16.mxu0 0
        %1008 = vmatpush1.bf16.msra.mxu0 0
        %1009 = vmatprep.subr.bf16.mxu0 0
        %1010 = vmatpush1.bf16.msra.mxu0 0
        %1011 = vmatprep.subr.bf16.mxu0 0
        %1012 = vmatpush1.bf16.msra.mxu0 0
        %1013 = vmatprep.subr.bf16.mxu0 0
        %1014 = vmatpush1.bf16.msra.mxu0 0
        %1015 = vmatprep.subr.bf16.mxu0 0
        %1016 = vmatpush1.bf16.msra.mxu0 0
        %1017 = vmatprep.subr.bf16.mxu0 0
        %1018 = vmatpush1.bf16.msra.mxu0 0
        %1019 = vmatprep.subr.bf16.mxu0 0
        %1020 = vmatpush1.bf16.msra.mxu0 0
        %1021 = vmatprep.mubr.bf16.mxu0 0
        %1022 = vmatmul.mubr.bf16.gmra.mrb[0].mxu0 %v987
        %v1023 = vpop.f32.mrb[0].mxu0
        %v1024 = vadd.f32 %v980, %v1023
        %v1025 = vpop.f32.mrb[0].mxu0
        %v1026 = vadd.f32 %v982, %v1025
        %v1027 = vpop.f32.mrb[0].mxu0
        %v1028 = vpop.f32.mrb[0].mxu0
        %1029 = vdwg.mxu0
        %v1030 = vadd.f32 %v936, %v1024
        %v1031 = vadd.f32 %v937, %v1026
        %s1032 = scalar_lea.vmem [#allocation7], 20
        %v1033 = vld [vmem:[%s1032] sm:$0xf]
        %s1034 = scalar_lea.vmem [#allocation8], 20
        %v1035 = vld [vmem:[%s1034] sm:$0xf]
        %v1037 = vsel %vm459, %v1035, 0
        %1039 = vmatprep.subr.bf16.mxu0 %v468
        %1040 = vmatpush1.bf16.msra.mxu0 %v465
        %1041 = vmatprep.subr.bf16.mxu0 0
        %1042 = vmatpush1.bf16.msra.mxu0 0
        %1043 = vmatprep.subr.bf16.mxu0 0
        %1044 = vmatpush1.bf16.msra.mxu0 0
        %1045 = vmatprep.subr.bf16.mxu0 0
        %1046 = vmatpush1.bf16.msra.mxu0 0
        %1047 = vmatprep.subr.bf16.mxu0 0
        %1048 = vmatpush1.bf16.msra.mxu0 0
        %1049 = vmatprep.subr.bf16.mxu0 0
        %1050 = vmatpush1.bf16.msra.mxu0 0
        %1051 = vmatprep.subr.bf16.mxu0 0
        %1052 = vmatpush1.bf16.msra.mxu0 0
        %1053 = vmatprep.subr.bf16.mxu0 0
        %1054 = vmatpush1.bf16.msra.mxu0 0
        %1055 = vmatprep.subr.bf16.mxu0 0
        %1056 = vmatpush1.bf16.msra.mxu0 0
        %1057 = vmatprep.subr.bf16.mxu0 0
        %1058 = vmatpush1.bf16.msra.mxu0 0
        %1059 = vmatprep.subr.bf16.mxu0 0
        %1060 = vmatpush1.bf16.msra.mxu0 0
        %1061 = vmatprep.subr.bf16.mxu0 0
        %1062 = vmatpush1.bf16.msra.mxu0 0
        %1063 = vmatprep.subr.bf16.mxu0 0
        %1064 = vmatpush1.bf16.msra.mxu0 0
        %1065 = vmatprep.subr.bf16.mxu0 0
        %1066 = vmatpush1.bf16.msra.mxu0 0
        %1067 = vmatprep.subr.bf16.mxu0 0
        %1068 = vmatpush1.bf16.msra.mxu0 0
        %1069 = vmatprep.subr.bf16.mxu0 0
        %1070 = vmatpush1.bf16.msra.mxu0 0
        %1071 = vmatprep.mubr.bf16.mxu0 0
        %1072 = vmatmul.mubr.bf16.gmra.mrb[0].mxu0 %v1037
        %v1073 = vpop.f32.mrb[0].mxu0
        %v1074 = vadd.f32 0.0, %v1073
        %v1075 = vpop.f32.mrb[0].mxu0
        %v1076 = vadd.f32 0.0, %v1075
        %v1077 = vpop.f32.mrb[0].mxu0
        %v1078 = vpop.f32.mrb[0].mxu0
        %1079 = vdwg.mxu0
        %v1081 = vsel %vm459, %v1033, 0
        %1083 = vmatprep.subr.bf16.mxu0 %v527
        %1084 = vmatpush1.bf16.msra.mxu0 %v524
        %1085 = vmatprep.subr.bf16.mxu0 0
        %1086 = vmatpush1.bf16.msra.mxu0 0
        %1087 = vmatprep.subr.bf16.mxu0 0
        %1088 = vmatpush1.bf16.msra.mxu0 0
        %1089 = vmatprep.subr.bf16.mxu0 0
        %1090 = vmatpush1.bf16.msra.mxu0 0
        %1091 = vmatprep.subr.bf16.mxu0 0
        %1092 = vmatpush1.bf16.msra.mxu0 0
        %1093 = vmatprep.subr.bf16.mxu0 0
        %1094 = vmatpush1.bf16.msra.mxu0 0
        %1095 = vmatprep.subr.bf16.mxu0 0
        %1096 = vmatpush1.bf16.msra.mxu0 0
        %1097 = vmatprep.subr.bf16.mxu0 0
        %1098 = vmatpush1.bf16.msra.mxu0 0
        %1099 = vmatprep.subr.bf16.mxu0 0
        %1100 = vmatpush1.bf16.msra.mxu0 0
        %1101 = vmatprep.subr.bf16.mxu0 0
        %1102 = vmatpush1.bf16.msra.mxu0 0
        %1103 = vmatprep.subr.bf16.mxu0 0
        %1104 = vmatpush1.bf16.msra.mxu0 0
        %1105 = vmatprep.subr.bf16.mxu0 0
        %1106 = vmatpush1.bf16.msra.mxu0 0
        %1107 = vmatprep.subr.bf16.mxu0 0
        %1108 = vmatpush1.bf16.msra.mxu0 0
        %1109 = vmatprep.subr.bf16.mxu0 0
        %1110 = vmatpush1.bf16.msra.mxu0 0
        %1111 = vmatprep.subr.bf16.mxu0 0
        %1112 = vmatpush1.bf16.msra.mxu0 0
        %1113 = vmatprep.subr.bf16.mxu0 0
        %1114 = vmatpush1.bf16.msra.mxu0 0
        %1115 = vmatprep.mubr.bf16.mxu0 0
        %1116 = vmatmul.mubr.bf16.gmra.mrb[0].mxu0 %v1081
        %v1117 = vpop.f32.mrb[0].mxu0
        %v1118 = vadd.f32 %v1074, %v1117
        %v1119 = vpop.f32.mrb[0].mxu0
        %v1120 = vadd.f32 %v1076, %v1119
        %v1121 = vpop.f32.mrb[0].mxu0
        %v1122 = vpop.f32.mrb[0].mxu0
        %1123 = vdwg.mxu0
        %1124 = vrot.lane.b32.xlu0 %v1118, 127
        %v1125 = vpop.permute.xlu0 %1124
        %1126 = vrot.lane.b32.xlu0 %v1120, 127
        %v1127 = vpop.permute.xlu0 %1126
        %vm1128 = vcmp.lt.s32.totalorder %v575, 127
        %v1129 = vsel %vm1128, %v1125, %v1127
        %v1130 = vsel %vm1128, %v1127, %v1125
        %v1131 = vsel %vm447, 1, 0
        %v1132 = vlaneseq
        %v1133 = vshrl.u32 %v1132, 7
        %v1134 = vsub.s32 0, %v1133
        %v1135 = vrot.slane %v1131, %v1134
        %v1136 = vlaneseq
        %v1137 = vshrl.u32 %v1136, 7
        %v1138 = vsub.s32 1, %v1137
        %v1139 = vrot.slane %v1131, %v1138
        %vm1140 = vcmp.eq.s32.totalorder %v1135, 1
        %vm1141 = vcmp.eq.s32.totalorder %v1139, 1
        %v1142 = vsel %vm1140, 0.0, %v1129
        %v1143 = vsel %vm1141, 0.0, %v1130
        %v1144 = vadd.f32 %v1030, %v1142
        %v1145 = vadd.f32 %v1031, %v1143
        %s1146 = scalar_lea.vmem [#allocation7], 24
        %v1147 = vld [vmem:[%s1146] sm:$0xf]
        %s1148 = scalar_lea.vmem [#allocation8], 24
        %v1149 = vld [vmem:[%s1148] sm:$0xf]
        %v1151 = vsel %vm459, %v1149, 0
        %1153 = vmatprep.subr.bf16.mxu0 %v468
        %1154 = vmatpush1.bf16.msra.mxu0 %v465
        %1155 = vmatprep.subr.bf16.mxu0 0
        %1156 = vmatpush1.bf16.msra.mxu0 0
        %1157 = vmatprep.subr.bf16.mxu0 0
        %1158 = vmatpush1.bf16.msra.mxu0 0
        %1159 = vmatprep.subr.bf16.mxu0 0
        %1160 = vmatpush1.bf16.msra.mxu0 0
        %1161 = vmatprep.subr.bf16.mxu0 0
        %1162 = vmatpush1.bf16.msra.mxu0 0
        %1163 = vmatprep.subr.bf16.mxu0 0
        %1164 = vmatpush1.bf16.msra.mxu0 0
        %1165 = vmatprep.subr.bf16.mxu0 0
        %1166 = vmatpush1.bf16.msra.mxu0 0
        %1167 = vmatprep.subr.bf16.mxu0 0
        %1168 = vmatpush1.bf16.msra.mxu0 0
        %1169 = vmatprep.subr.bf16.mxu0 0
        %1170 = vmatpush1.bf16.msra.mxu0 0
        %1171 = vmatprep.subr.bf16.mxu0 0
        %1172 = vmatpush1.bf16.msra.mxu0 0
        %1173 = vmatprep.subr.bf16.mxu0 0
        %1174 = vmatpush1.bf16.msra.mxu0 0
        %1175 = vmatprep.subr.bf16.mxu0 0
        %1176 = vmatpush1.bf16.msra.mxu0 0
        %1177 = vmatprep.subr.bf16.mxu0 0
        %1178 = vmatpush1.bf16.msra.mxu0 0
        %1179 = vmatprep.subr.bf16.mxu0 0
        %1180 = vmatpush1.bf16.msra.mxu0 0
        %1181 = vmatprep.subr.bf16.mxu0 0
        %1182 = vmatpush1.bf16.msra.mxu0 0
        %1183 = vmatprep.subr.bf16.mxu0 0
        %1184 = vmatpush1.bf16.msra.mxu0 0
        %1185 = vmatprep.mubr.bf16.mxu0 0
        %1186 = vmatmul.mubr.bf16.gmra.mrb[0].mxu0 %v1151
        %v1187 = vpop.f32.mrb[0].mxu0
        %v1188 = vadd.f32 0.0, %v1187
        %v1189 = vpop.f32.mrb[0].mxu0
        %v1190 = vadd.f32 0.0, %v1189
        %v1191 = vpop.f32.mrb[0].mxu0
        %v1192 = vpop.f32.mrb[0].mxu0
        %1193 = vdwg.mxu0
        %v1195 = vsel %vm459, %v1147, 0
        %1197 = vmatprep.subr.bf16.mxu0 %v527
        %1198 = vmatpush1.bf16.msra.mxu0 %v524
        %1199 = vmatprep.subr.bf16.mxu0 0
        %1200 = vmatpush1.bf16.msra.mxu0 0
        %1201 = vmatprep.subr.bf16.mxu0 0
        %1202 = vmatpush1.bf16.msra.mxu0 0
        %1203 = vmatprep.subr.bf16.mxu0 0
        %1204 = vmatpush1.bf16.msra.mxu0 0
        %1205 = vmatprep.subr.bf16.mxu0 0
        %1206 = vmatpush1.bf16.msra.mxu0 0
        %1207 = vmatprep.subr.bf16.mxu0 0
        %1208 = vmatpush1.bf16.msra.mxu0 0
        %1209 = vmatprep.subr.bf16.mxu0 0
        %1210 = vmatpush1.bf16.msra.mxu0 0
        %1211 = vmatprep.subr.bf16.mxu0 0
        %1212 = vmatpush1.bf16.msra.mxu0 0
        %1213 = vmatprep.subr.bf16.mxu0 0
        %1214 = vmatpush1.bf16.msra.mxu0 0
        %1215 = vmatprep.subr.bf16.mxu0 0
        %1216 = vmatpush1.bf16.msra.mxu0 0
        %1217 = vmatprep.subr.bf16.mxu0 0
        %1218 = vmatpush1.bf16.msra.mxu0 0
        %1219 = vmatprep.subr.bf16.mxu0 0
        %1220 = vmatpush1.bf16.msra.mxu0 0
        %1221 = vmatprep.subr.bf16.mxu0 0
        %1222 = vmatpush1.bf16.msra.mxu0 0
        %1223 = vmatprep.subr.bf16.mxu0 0
        %1224 = vmatpush1.bf16.msra.mxu0 0
        %1225 = vmatprep.subr.bf16.mxu0 0
        %1226 = vmatpush1.bf16.msra.mxu0 0
        %1227 = vmatprep.subr.bf16.mxu0 0
        %1228 = vmatpush1.bf16.msra.mxu0 0
        %1229 = vmatprep.mubr.bf16.mxu0 0
        %1230 = vmatmul.mubr.bf16.gmra.mrb[0].mxu0 %v1195
        %v1231 = vpop.f32.mrb[0].mxu0
        %v1232 = vadd.f32 %v1188, %v1231
        %v1233 = vpop.f32.mrb[0].mxu0
        %v1234 = vadd.f32 %v1190, %v1233
        %v1235 = vpop.f32.mrb[0].mxu0
        %v1236 = vpop.f32.mrb[0].mxu0
        %1237 = vdwg.mxu0
        %1238 = vrot.lane.b32.xlu0 %v1232, 113
        %v1239 = vpop.permute.xlu0 %1238
        %1240 = vrot.lane.b32.xlu0 %v1234, 113
        %v1241 = vpop.permute.xlu0 %1240
        %vm1242 = vcmp.lt.s32.totalorder %v575, 113
        %v1243 = vsel %vm1242, %v1239, %v1241
        %v1244 = vsel %vm1242, %v1241, %v1239
        %vm1245 = vmor %vm445, %vm446
        %v1246 = vsel %vm1245, 1, 0
        %v1247 = vlaneseq
        %v1248 = vshrl.u32 %v1247, 7
        %v1249 = vsub.s32 0, %v1248
        %v1250 = vrot.slane %v1246, %v1249
        %v1251 = vlaneseq
        %v1252 = vshrl.u32 %v1251, 7
        %v1253 = vsub.s32 1, %v1252
        %v1254 = vrot.slane %v1246, %v1253
        %vm1255 = vcmp.eq.s32.totalorder %v1250, 1
        %vm1256 = vcmp.eq.s32.totalorder %v1254, 1
        %v1257 = vsel %vm1255, 0.0, %v1243
        %v1258 = vsel %vm1256, 0.0, %v1244
        %v1259 = vadd.f32 %v1144, %v1257
        %v1260 = vadd.f32 %v1145, %v1258
        %s1261 = scalar_lea.vmem [#allocation7], 28
        %v1262 = vld [vmem:[%s1261] sm:$0xf]
        %s1263 = scalar_lea.vmem [#allocation8], 28
        %v1264 = vld [vmem:[%s1263] sm:$0xf]
        %v1266 = vsel %vm459, %v1264, 0
        %1268 = vmatprep.subr.bf16.mxu0 %v468
        %1269 = vmatpush1.bf16.msra.mxu0 %v465
        %1270 = vmatprep.subr.bf16.mxu0 0
        %1271 = vmatpush1.bf16.msra.mxu0 0
        %1272 = vmatprep.subr.bf16.mxu0 0
        %1273 = vmatpush1.bf16.msra.mxu0 0
        %1274 = vmatprep.subr.bf16.mxu0 0
        %1275 = vmatpush1.bf16.msra.mxu0 0
        %1276 = vmatprep.subr.bf16.mxu0 0
        %1277 = vmatpush1.bf16.msra.mxu0 0
        %1278 = vmatprep.subr.bf16.mxu0 0
        %1279 = vmatpush1.bf16.msra.mxu0 0
        %1280 = vmatprep.subr.bf16.mxu0 0
        %1281 = vmatpush1.bf16.msra.mxu0 0
        %1282 = vmatprep.subr.bf16.mxu0 0
        %1283 = vmatpush1.bf16.msra.mxu0 0
        %1284 = vmatprep.subr.bf16.mxu0 0
        %1285 = vmatpush1.bf16.msra.mxu0 0
        %1286 = vmatprep.subr.bf16.mxu0 0
        %1287 = vmatpush1.bf16.msra.mxu0 0
        %1288 = vmatprep.subr.bf16.mxu0 0
        %1289 = vmatpush1.bf16.msra.mxu0 0
        %1290 = vmatprep.subr.bf16.mxu0 0
        %1291 = vmatpush1.bf16.msra.mxu0 0
        %1292 = vmatprep.subr.bf16.mxu0 0
        %1293 = vmatpush1.bf16.msra.mxu0 0
        %1294 = vmatprep.subr.bf16.mxu0 0
        %1295 = vmatpush1.bf16.msra.mxu0 0
        %1296 = vmatprep.subr.bf16.mxu0 0
        %1297 = vmatpush1.bf16.msra.mxu0 0
        %1298 = vmatprep.subr.bf16.mxu0 0
        %1299 = vmatpush1.bf16.msra.mxu0 0
        %1300 = vmatprep.mubr.bf16.mxu0 0
        %1301 = vmatmul.mubr.bf16.gmra.mrb[0].mxu0 %v1266
        %v1302 = vpop.f32.mrb[0].mxu0
        %v1303 = vadd.f32 0.0, %v1302
        %v1304 = vpop.f32.mrb[0].mxu0
        %v1305 = vadd.f32 0.0, %v1304
        %v1306 = vpop.f32.mrb[0].mxu0
        %v1307 = vpop.f32.mrb[0].mxu0
        %1308 = vdwg.mxu0
        %v1310 = vsel %vm459, %v1262, 0
        %1312 = vmatprep.subr.bf16.mxu0 %v527
        %1313 = vmatpush1.bf16.msra.mxu0 %v524
        %1314 = vmatprep.subr.bf16.mxu0 0
        %1315 = vmatpush1.bf16.msra.mxu0 0
        %1316 = vmatprep.subr.bf16.mxu0 0
        %1317 = vmatpush1.bf16.msra.mxu0 0
        %1318 = vmatprep.subr.bf16.mxu0 0
        %1319 = vmatpush1.bf16.msra.mxu0 0
        %1320 = vmatprep.subr.bf16.mxu0 0
        %1321 = vmatpush1.bf16.msra.mxu0 0
        %1322 = vmatprep.subr.bf16.mxu0 0
        %1323 = vmatpush1.bf16.msra.mxu0 0
        %1324 = vmatprep.subr.bf16.mxu0 0
        %1325 = vmatpush1.bf16.msra.mxu0 0
        %1326 = vmatprep.subr.bf16.mxu0 0
        %1327 = vmatpush1.bf16.msra.mxu0 0
        %1328 = vmatprep.subr.bf16.mxu0 0
        %1329 = vmatpush1.bf16.msra.mxu0 0
        %1330 = vmatprep.subr.bf16.mxu0 0
        %1331 = vmatpush1.bf16.msra.mxu0 0
        %1332 = vmatprep.subr.bf16.mxu0 0
        %1333 = vmatpush1.bf16.msra.mxu0 0
        %1334 = vmatprep.subr.bf16.mxu0 0
        %1335 = vmatpush1.bf16.msra.mxu0 0
        %1336 = vmatprep.subr.bf16.mxu0 0
        %1337 = vmatpush1.bf16.msra.mxu0 0
        %1338 = vmatprep.subr.bf16.mxu0 0
        %1339 = vmatpush1.bf16.msra.mxu0 0
        %1340 = vmatprep.subr.bf16.mxu0 0
        %1341 = vmatpush1.bf16.msra.mxu0 0
        %1342 = vmatprep.subr.bf16.mxu0 0
        %1343 = vmatpush1.bf16.msra.mxu0 0
        %1344 = vmatprep.mubr.bf16.mxu0 0
        %1345 = vmatmul.mubr.bf16.gmra.mrb[0].mxu0 %v1310
        %v1346 = vpop.f32.mrb[0].mxu0
        %v1347 = vadd.f32 %v1303, %v1346
        %v1348 = vpop.f32.mrb[0].mxu0
        %v1349 = vadd.f32 %v1305, %v1348
        %v1350 = vpop.f32.mrb[0].mxu0
        %v1351 = vpop.f32.mrb[0].mxu0
        %1352 = vdwg.mxu0
        %1353 = vrot.lane.b32.xlu0 %v1347, 112
        %v1354 = vpop.permute.xlu0 %1353
        %1355 = vrot.lane.b32.xlu0 %v1349, 112
        %v1356 = vpop.permute.xlu0 %1355
        %vm1357 = vcmp.lt.s32.totalorder %v575, 112
        %v1358 = vsel %vm1357, %v1354, %v1356
        %v1359 = vsel %vm1357, %v1356, %v1354
        %v1360 = vsel %vm445, 1, 0
        %v1361 = vlaneseq
        %v1362 = vshrl.u32 %v1361, 7
        %v1363 = vsub.s32 0, %v1362
        %v1364 = vrot.slane %v1360, %v1363
        %v1365 = vlaneseq
        %v1366 = vshrl.u32 %v1365, 7
        %v1367 = vsub.s32 1, %v1366
        %v1368 = vrot.slane %v1360, %v1367
        %vm1369 = vcmp.eq.s32.totalorder %v1364, 1
        %vm1370 = vcmp.eq.s32.totalorder %v1368, 1
        %v1371 = vsel %vm1369, 0.0, %v1358
        %v1372 = vsel %vm1370, 0.0, %v1359
        %v1373 = vadd.f32 %v1259, %v1371
        %v1374 = vadd.f32 %v1260, %v1372
        %s1375 = scalar_lea.vmem [#allocation7], 32
        %v1376 = vld [vmem:[%s1375] sm:$0xf]
        %s1377 = scalar_lea.vmem [#allocation8], 32
        %v1378 = vld [vmem:[%s1377] sm:$0xf]
        %v1380 = vsel %vm459, %v1378, 0
        %1382 = vmatprep.subr.bf16.mxu0 %v468
        %1383 = vmatpush1.bf16.msra.mxu0 %v465
        %1384 = vmatprep.subr.bf16.mxu0 0
        %1385 = vmatpush1.bf16.msra.mxu0 0
        %1386 = vmatprep.subr.bf16.mxu0 0
        %1387 = vmatpush1.bf16.msra.mxu0 0
        %1388 = vmatprep.subr.bf16.mxu0 0
        %1389 = vmatpush1.bf16.msra.mxu0 0
        %1390 = vmatprep.subr.bf16.mxu0 0
        %1391 = vmatpush1.bf16.msra.mxu0 0
        %1392 = vmatprep.subr.bf16.mxu0 0
        %1393 = vmatpush1.bf16.msra.mxu0 0
        %1394 = vmatprep.subr.bf16.mxu0 0
        %1395 = vmatpush1.bf16.msra.mxu0 0
        %1396 = vmatprep.subr.bf16.mxu0 0
        %1397 = vmatpush1.bf16.msra.mxu0 0
        %1398 = vmatprep.subr.bf16.mxu0 0
        %1399 = vmatpush1.bf16.msra.mxu0 0
        %1400 = vmatprep.subr.bf16.mxu0 0
        %1401 = vmatpush1.bf16.msra.mxu0 0
        %1402 = vmatprep.subr.bf16.mxu0 0
        %1403 = vmatpush1.bf16.msra.mxu0 0
        %1404 = vmatprep.subr.bf16.mxu0 0
        %1405 = vmatpush1.bf16.msra.mxu0 0
        %1406 = vmatprep.subr.bf16.mxu0 0
        %1407 = vmatpush1.bf16.msra.mxu0 0
        %1408 = vmatprep.subr.bf16.mxu0 0
        %1409 = vmatpush1.bf16.msra.mxu0 0
        %1410 = vmatprep.subr.bf16.mxu0 0
        %1411 = vmatpush1.bf16.msra.mxu0 0
        %1412 = vmatprep.subr.bf16.mxu0 0
        %1413 = vmatpush1.bf16.msra.mxu0 0
        %1414 = vmatprep.mubr.bf16.mxu0 0
        %1415 = vmatmul.mubr.bf16.gmra.mrb[0].mxu0 %v1380
        %v1416 = vpop.f32.mrb[0].mxu0
        %v1417 = vadd.f32 0.0, %v1416
        %v1418 = vpop.f32.mrb[0].mxu0
        %v1419 = vadd.f32 0.0, %v1418
        %v1420 = vpop.f32.mrb[0].mxu0
        %v1421 = vpop.f32.mrb[0].mxu0
        %1422 = vdwg.mxu0
        %v1424 = vsel %vm459, %v1376, 0
        %1426 = vmatprep.subr.bf16.mxu0 %v527
        %1427 = vmatpush1.bf16.msra.mxu0 %v524
        %1428 = vmatprep.subr.bf16.mxu0 0
        %1429 = vmatpush1.bf16.msra.mxu0 0
        %1430 = vmatprep.subr.bf16.mxu0 0
        %1431 = vmatpush1.bf16.msra.mxu0 0
        %1432 = vmatprep.subr.bf16.mxu0 0
        %1433 = vmatpush1.bf16.msra.mxu0 0
        %1434 = vmatprep.subr.bf16.mxu0 0
        %1435 = vmatpush1.bf16.msra.mxu0 0
        %1436 = vmatprep.subr.bf16.mxu0 0
        %1437 = vmatpush1.bf16.msra.mxu0 0
        %1438 = vmatprep.subr.bf16.mxu0 0
        %1439 = vmatpush1.bf16.msra.mxu0 0
        %1440 = vmatprep.subr.bf16.mxu0 0
        %1441 = vmatpush1.bf16.msra.mxu0 0
        %1442 = vmatprep.subr.bf16.mxu0 0
        %1443 = vmatpush1.bf16.msra.mxu0 0
        %1444 = vmatprep.subr.bf16.mxu0 0
        %1445 = vmatpush1.bf16.msra.mxu0 0
        %1446 = vmatprep.subr.bf16.mxu0 0
        %1447 = vmatpush1.bf16.msra.mxu0 0
        %1448 = vmatprep.subr.bf16.mxu0 0
        %1449 = vmatpush1.bf16.msra.mxu0 0
        %1450 = vmatprep.subr.bf16.mxu0 0
        %1451 = vmatpush1.bf16.msra.mxu0 0
        %1452 = vmatprep.subr.bf16.mxu0 0
        %1453 = vmatpush1.bf16.msra.mxu0 0
        %1454 = vmatprep.subr.bf16.mxu0 0
        %1455 = vmatpush1.bf16.msra.mxu0 0
        %1456 = vmatprep.subr.bf16.mxu0 0
        %1457 = vmatpush1.bf16.msra.mxu0 0
        %1458 = vmatprep.mubr.bf16.mxu0 0
        %1459 = vmatmul.mubr.bf16.gmra.mrb[0].mxu0 %v1424
        %v1460 = vpop.f32.mrb[0].mxu0
        %v1461 = vadd.f32 %v1417, %v1460
        %v1462 = vpop.f32.mrb[0].mxu0
        %v1463 = vadd.f32 %v1419, %v1462
        %v1464 = vpop.f32.mrb[0].mxu0
        %v1465 = vpop.f32.mrb[0].mxu0
        %1466 = vdwg.mxu0
        %1467 = vrot.lane.b32.xlu0 %v1461, 111
        %v1468 = vpop.permute.xlu0 %1467
        %1469 = vrot.lane.b32.xlu0 %v1463, 111
        %v1470 = vpop.permute.xlu0 %1469
        %vm1471 = vcmp.lt.s32.totalorder %v575, 111
        %v1472 = vsel %vm1471, %v1468, %v1470
        %v1473 = vsel %vm1471, %v1470, %v1468
        %vm1474 = vmor %vm445, %vm447
        %v1475 = vsel %vm1474, 1, 0
        %v1476 = vlaneseq
        %v1477 = vshrl.u32 %v1476, 7
        %v1478 = vsub.s32 0, %v1477
        %v1479 = vrot.slane %v1475, %v1478
        %v1480 = vlaneseq
        %v1481 = vshrl.u32 %v1480, 7
        %v1482 = vsub.s32 1, %v1481
        %v1483 = vrot.slane %v1475, %v1482
        %vm1484 = vcmp.eq.s32.totalorder %v1479, 1
        %vm1485 = vcmp.eq.s32.totalorder %v1483, 1
        %v1486 = vsel %vm1484, 0.0, %v1472
        %v1487 = vsel %vm1485, 0.0, %v1473
        %v1488 = vadd.f32 %v1373, %v1486
        %v1489 = vadd.f32 %v1374, %v1487
        %v1490 = vld [vmem:[#allocation13] sm:$0xff]
        %1492 = vset.pattern.permute.xlu0 0
        %1493 = vperm.xlu0 %1492, %v1490
        %v1494 = vpop.permute.xlu0 %1493
        %v1496 = vmul.f32 %v1488, %v1494
        %v1497 = vmul.f32 %v1489, %v1494
        %v1498 = vld [vmem:[#allocation14] sm:$0xff]
        %1500 = vset.pattern.permute.xlu0 0
        %1501 = vperm.xlu0 %1500, %v1498
        %v1502 = vpop.permute.xlu0 %1501
        %v1504 = vadd.f32 %v1496, %v1502
        %v1505 = vadd.f32 %v1497, %v1502
        %v1506 = vmul.f32 %v1504, 0.1
        %v1507 = vmul.f32 %v1505, 0.1
        %v1508 = vmax.f32 %v1504, %v1506
        %v1509 = vmax.f32 %v1505, %v1507
        %v1510 = vpack.c.bf16 %v1508, %v1508
        %v1511 = vpack.c.bf16 %v1509, %v1509
        %v1514 = vunpack.c.l.b16 %v1510
        %v1515 = vunpack.c.l.b16 %v1511
        %v1516 = vpack.c.b16 %v1515, %v1514
        %1518 = vst [vmem:[%s438] sm:$0xff] %v1516
        %s1519 = sand.u32 %s217, 1
        %s1520 = scalar_lea.sflag [#allocation4], %s1519
        %s1521 = sand.u32 %s217, 1
        %s1522 = smul.addr %s1521, 8
        %s1523 = scalar_lea.vmem [#allocation16], %s1522
        // Predicated region
        $region85: #{up_forward.4} parent=51 // pred_check
          %p1524 = pneg %p227
        $region86: #{up_forward.4} parent=51 // pred_check_branch
          %1526 = sbr.rel (%p1524) target = $region88
        $region87: #{up_forward.4} parent=51 // pred_region
          %s1528 = ssub.s32 128, 128
          %1529 = vsyncadd %s1520, %s1528
          %s1530 = smul.addr %s31, 2
          %s1531 = smul.addr %s1530, 64
          %s1532 = scalar_lea.hbm %s8, %s1531
          %s1534 = sshll.u32 %s1523, 4
          %s1535 = int_to_ptr.vmem [resolvable:$true] %s1534
          %1537 = dma.vmem_to_hbm [thread:$0]  %s1535, 128, %s1532, %s1520
        $region88: #{up_forward.4} parent=51 // pred_fallthru
          _
      $region52: #{up_forward.4} parent=5 // pred_fallthru
        _
      %p1538 = scmp.le.s32.totalorder 2, %s26
      // Predicated region
      $region89: #{up_forward.4} parent=5 // pred_check
        %p1539 = pneg %p1538
      $region90: #{up_forward.4} parent=5 // pred_check_branch
        %1541 = sbr.rel (%p1539) target = $region92
      $region91: #{up_forward.4} parent=5 // pred_region
        %s1542 = ssub.s32 %s26, 2
        // Predicated region
        $region93: #{up_forward.4} parent=91 // pred_check
          %p1543 = pneg %p233
        $region94: #{up_forward.4} parent=91 // pred_check_branch
          %1545 = sbr.rel (%p1543) target = $region96
        $region95: #{up_forward.4} parent=91 // pred_region
          %s1546 = sand.u32 %s218, 1
          %s1547 = scalar_lea.sflag [#allocation4], %s1546
          %s1548 = sand.u32 %s218, 1
          %s1549 = smul.addr %s1548, 8
          %s1550 = scalar_lea.vmem [#allocation16], %s1549
          %1551 = dma.done %s1547, 128
        $region96: #{up_forward.4} parent=91 // pred_fallthru
          _
      $region92: #{up_forward.4} parent=5 // pred_fallthru
        _
    $region6: #{up_forward.4} parent=1 // loop_footer
      %s30 = sadd.s32 1, %s26
    $region7: #{up_forward.4} parent=1 // loop_footer_branch
      %25 = sbr.rel target = $region3
    $region8: #{up_forward.4} parent=1 // loop_exit
      _
    %1552 = vsyncpa [#allocation3], 1
    %s1553 = scalar_lea.sflag [#allocation3], 1
    %1554 = vsyncpa %s1553, 1
    %1555 = vsyncpa [#allocation6], 1
    %s1556 = scalar_lea.sflag [#allocation6], 1
    %1557 = vsyncpa %s1556, 1
    %1558 = vsyncpa [#allocation9], 1
    %1559 = vsyncpa [#allocation12], 1
    %1560 = vsyncpa [#allocation15], 1
    %1561 = vsyncpa [#allocation4], 1
    %s1562 = scalar_lea.sflag [#allocation4], 1
    %1563 = vsyncpa %s1562, 1

</llo_original>
